<compile_context>
chip_gen: v7x
topology: tpu7x:2x2x1
jax: 0.10.0
libtpu: 0.0.40
codegen_flags: <defaults>
</compile_context>

<pallas_src>
import math
from functools import partial

import jax
import jax.numpy as jnp
from jax import lax
from jax.experimental import pallas as pl
from jax.experimental.pallas import tpu as pltpu

SELU_ALPHA = 1.6732632423543772
SELU_SCALE = 1.0507009873554805
BN_EPS = 1e-5
LANE = 128
VMEM_LIMIT = 48 * 1024 * 1024   # sized against v7x's 64 MiB physical VMEM


def _round_up(x, m):
    return (x + m - 1) // m * m


def _lcm(a, b):
    return a * b // math.gcd(a, b)


def _choose_tiles(r, wp, target_rows=1024):
    """Pick (tile_m, halo) for the flat-pixel axis.

    Constraints: 8 | tile_m (sublane), wp | tile_m (phase-2 bitcast reshape),
    halo | tile_m, 8 | halo, halo >= 2*wp + 2 (largest 3x3 tap offset).
    Aim for >= ~8 grid steps so both v7x TensorCores keep a full DMA pipeline
    even at small problem sizes.
    """
    base = _lcm(8, wp)
    want = max(base, min(target_rows, _round_up(max(1, pl.cdiv(r, 8)), base)))
    tile_m = max(want, _round_up(2 * wp + 2, base))
    halo = _round_up(2 * wp + 2, 8)
    while tile_m % halo:
        halo += 8
    return tile_m, halo


def _selu(z):
    return SELU_SCALE * jnp.where(z > 0, z, SELU_ALPHA * (jnp.exp(z) - 1.0))


# ---------------------------------------------------------------------------
# Phase 1 kernel: implicit-GEMM 3x3 conv (single packed-K dot) + BN partials
# ---------------------------------------------------------------------------
def _conv_stats_kernel(x_ref, xh_ref, w_ref, y_ref, stats_ref, *, offs):
    tile_m, cin1 = x_ref.shape
    cin = cin1 - 1                      # last channel carries the BN mask
    cpad = y_ref.shape[1]

    # Tile + halo rows, channels only.  Widened to f32 once so the nine
    # arbitrary-offset sublane slices below stay on the well-supported 32-bit
    # relayout path (packed-bf16 odd-row shifts are the risky lowering).
    xt = x_ref[...].astype(jnp.float32)                 # (tile_m, cin+1)
    xh = xh_ref[...].astype(jnp.float32)                # (halo,  cin+1)
    xc = jnp.concatenate([xt[:, :cin], xh[:, :cin]], axis=0)

    # Implicit im2col in registers: ONE MXU GEMM with K = 9*cin (instead of
    # nine K=cin dots + nine accumulator read-modify-write passes).
    lhs = jnp.concatenate([xc[off:off + tile_m, :] for off in offs], axis=1)
    acc = jnp.dot(lhs.astype(jnp.bfloat16), w_ref[...],
                  preferred_element_type=jnp.float32)   # (tile_m, cpad) f32
    y_ref[...] = acc.astype(y_ref.dtype)                # bf16 conv output

    # BN partial sums over VALID output rows only; the 0/1 mask is the extra
    # input channel (zero on padding, off-stride and out-of-image rows).
    m = xt[:, cin:cin + 1]                              # (tile_m, 1)
    ym = acc * m
    s0 = jnp.sum(ym, axis=0, keepdims=True)             # per-channel sum
    s1 = jnp.sum(acc * ym, axis=0, keepdims=True)       # per-channel sum-sq
    stats_ref[...] = jnp.concatenate(
        [s0, s1, jnp.zeros((6, cpad), jnp.float32)], axis=0)


# ---------------------------------------------------------------------------
# Phase 2 kernels: y*scale + shift (folded BN) then SELU
# ---------------------------------------------------------------------------
def _bn_selu_rows_kernel(y_ref, scale_ref, shift_ref, o_ref):
    # stride-1 fused compaction: y_ref is one padded image row (1, wp, cpad);
    # only the first wo columns are valid conv outputs.
    wo = o_ref.shape[2]
    z = y_ref[0, :wo, :].astype(jnp.float32) * scale_ref[...] + shift_ref[...]
    o_ref[0, 0] = _selu(z).astype(o_ref.dtype)


def _bn_selu_flat_kernel(y_ref, scale_ref, shift_ref, o_ref):
    z = y_ref[...].astype(jnp.float32) * scale_ref[...] + shift_ref[...]
    o_ref[...] = _selu(z).astype(o_ref.dtype)


# ---------------------------------------------------------------------------
# One conv + BN(batch stats) + SELU block (NHWC in / NHWC bf16 out)
# ---------------------------------------------------------------------------
def _conv_bn_selu(x_nhwc, w_hwio, gamma, beta, stride):
    n, h, w, cin = x_nhwc.shape
    cout = w_hwio.shape[3]
    ho = (h - 1) // stride + 1          # floor((h + 2 - 3)/stride) + 1
    wo = (w - 1) // stride + 1
    hp, wp = h + 2, w + 2
    cpad = _round_up(cout, LANE)

    r = n * hp * wp                     # rows of the flat padded activation
    tile_m, halo = _choose_tiles(r, wp)
    num_tiles = pl.cdiv(r, tile_m)
    rm = num_tiles * tile_m
    tmh = tile_m // halo

    # ---- host-side prep (cheap XLA): flat padded bf16 activation with the
    #      BN validity mask folded in as an extra channel --------------------
    rr = jnp.arange(hp)
    cc = jnp.arange(wp)
    row_ok = (rr % stride == 0) & (rr < stride * ho)
    col_ok = (cc % stride == 0) & (cc < stride * wo)
    mask2d = (row_ok[:, None] & col_ok[None, :]).astype(jnp.bfloat16)
    mask = jnp.broadcast_to(mask2d[None, :, :, None], (n, hp, wp, 1))
    xp = jnp.pad(x_nhwc.astype(jnp.bfloat16), ((0, 0), (1, 1), (1, 1), (0, 0)))
    x_flat = jnp.concatenate([xp, mask], axis=-1).reshape(r, cin + 1)
    x_flat = jnp.pad(x_flat, ((0, rm + halo - r), (0, 0)))

    # per-tap weights packed along K -> one (9*cin, cpad) bf16 GEMM operand
    w_packed = jnp.pad(w_hwio.reshape(9 * cin, cout),
                       ((0, 0), (0, cpad - cout))).astype(jnp.bfloat16)

    offs = tuple(kh * wp + kw for kh in range(3) for kw in range(3))

    # --- phase 1: conv GEMM + per-tile BN partial sums ----------------------
    y_virt, stats = pl.pallas_call(
        partial(_conv_stats_kernel, offs=offs),
        out_shape=(jax.ShapeDtypeStruct((rm, cpad), jnp.bfloat16),
                   jax.ShapeDtypeStruct((num_tiles * 8, cpad), jnp.float32)),
        grid=(num_tiles,),
        in_specs=[
            pl.BlockSpec((tile_m, cin + 1), lambda i: (i, 0)),            # tile
            pl.BlockSpec((halo, cin + 1), lambda i: ((i + 1) * tmh, 0)),  # halo
            pl.BlockSpec((9 * cin, cpad), lambda i: (0, 0)),              # W
        ],
        out_specs=(pl.BlockSpec((tile_m, cpad), lambda i: (i, 0)),        # y
                   pl.BlockSpec((8, cpad), lambda i: (i, 0))),            # stats
        compiler_params=pltpu.CompilerParams(
            dimension_semantics=("parallel",), vmem_limit_bytes=VMEM_LIMIT),
    )(x_flat, x_flat, w_packed)

    # --- global batch statistics -> folded per-channel scale / shift --------
    stats = stats.reshape(num_tiles, 8, cpad)
    count = float(n * ho * wo)
    mean = jnp.sum(stats[:, 0, :], axis=0) / count
    var = jnp.maximum(jnp.sum(stats[:, 1, :], axis=0) / count - mean * mean, 0.0)
    gamma_p = jnp.pad(gamma.reshape(-1).astype(jnp.float32), (0, cpad - cout))
    beta_p = jnp.pad(beta.reshape(-1).astype(jnp.float32), (0, cpad - cout))
    scale_v = gamma_p * lax.rsqrt(var + BN_EPS)   # padded channels: gamma=0 -> 0
    shift_v = beta_p - mean * scale_v
    scale = scale_v.reshape(1, cpad)
    shift = shift_v.reshape(1, cpad)

    # --- phase 2: folded BN + SELU -------------------------------------------
    if stride == 1:
        # crop fused into the read: one lane-dense bf16 pass over y
        y3 = y_virt.reshape(rm // wp, wp, cpad)        # free bitcast (wp | rm)
        out4 = pl.pallas_call(
            _bn_selu_rows_kernel,
            out_shape=jax.ShapeDtypeStruct((n, ho, wo, cpad), jnp.bfloat16),
            grid=(n, ho),
            in_specs=[
                pl.BlockSpec((1, wp, cpad), lambda ni, oi: (ni * hp + oi, 0, 0)),
                pl.BlockSpec((1, cpad), lambda ni, oi: (0, 0)),
                pl.BlockSpec((1, cpad), lambda ni, oi: (0, 0)),
            ],
            out_specs=pl.BlockSpec((1, 1, wo, cpad),
                                   lambda ni, oi: (ni, oi, 0, 0)),
            compiler_params=pltpu.CompilerParams(
                dimension_semantics=("parallel", "parallel"),
                vmem_limit_bytes=VMEM_LIMIT),
        )(y3, scale, shift)
    else:
        # TODO(synk): stride-2 path still computes the dense conv and compacts
        #             in XLA; space-to-depth would remove the 4x oversampling.
        m_out = n * ho * wo
        y_sel = y_virt[:r].reshape(n, hp, wp, cpad)
        y_sel = y_sel[:, 0:stride * ho:stride, 0:stride * wo:stride, :]
        y_sel = y_sel.reshape(m_out, cpad)
        t2 = min(512, _round_up(m_out, 8))
        nt2 = pl.cdiv(m_out, t2)
        mp2 = nt2 * t2
        y_sel = jnp.pad(y_sel, ((0, mp2 - m_out), (0, 0)))
        out = pl.pallas_call(
            _bn_selu_flat_kernel,
            out_shape=jax.ShapeDtypeStruct((mp2, cpad), jnp.bfloat16),
            grid=(nt2,),
            in_specs=[pl.BlockSpec((t2, cpad), lambda i: (i, 0)),
                      pl.BlockSpec((1, cpad), lambda i: (0, 0)),
                      pl.BlockSpec((1, cpad), lambda i: (0, 0))],
            out_specs=pl.BlockSpec((t2, cpad), lambda i: (i, 0)),
            compiler_params=pltpu.CompilerParams(
                dimension_semantics=("parallel",),
                vmem_limit_bytes=VMEM_LIMIT),
        )(y_sel, scale, shift)
        out4 = out[:m_out].reshape(n, ho, wo, cpad)

    return out4[..., :cout]              # bf16 NHWC


# ---------------------------------------------------------------------------
# Full conv_block forward (PyTorch-compatible NCHW interface)
# ---------------------------------------------------------------------------
def conv_block_forward(x_nchw, params, down=False):
    stride = 2 if down else 1
    w1, b1, g1, be1, w2, b2, g2, be2 = params
    del b1, b2   # conv bias is exactly cancelled by train-mode BatchNorm
    x = jnp.transpose(x_nchw, (0, 2, 3, 1))            # NCHW -> NHWC
    # TODO(synk): fuse block-1 phase 2 with block-2 phase 1 so the inter-block
    #             activation never round-trips HBM.
    y1 = _conv_bn_selu(x, w1, g1, be1, stride)          # bf16 NHWC
    y2 = _conv_bn_selu(y1, w2, g2, be2, 1)              # bf16 NHWC
    return jnp.transpose(y2, (0, 3, 1, 2)).astype(jnp.float32)


# ---------------------------------------------------------------------------
# Deterministic parameter init (shapes from the nn.Module __init__)
# ---------------------------------------------------------------------------
def init_params(key, in_ch, out_ch):
    ks = jax.random.split(key, 8)
    w1 = 0.1 * jax.random.normal(ks[0], (3, 3, in_ch, out_ch), jnp.float32)   # HWIO
    b1 = 0.1 * jax.random.normal(ks[1], (1, out_ch), jnp.float32)
    g1 = 1.0 + 0.1 * jax.random.normal(ks[2], (1, out_ch), jnp.float32)
    be1 = 0.1 * jax.random.normal(ks[3], (1, out_ch), jnp.float32)
    w2 = 0.1 * jax.random.normal(ks[4], (3, 3, out_ch, out_ch), jnp.float32)
    b2 = 0.1 * jax.random.normal(ks[5], (1, out_ch), jnp.float32)
    g2 = 1.0 + 0.1 * jax.random.normal(ks[6], (1, out_ch), jnp.float32)
    be2 = 0.1 * jax.random.normal(ks[7], (1, out_ch), jnp.float32)
    return (w1, b1, g1, be1, w2, b2, g2, be2)


# ---------------------------------------------------------------------------
# Pure-JAX f32 reference (lax.conv) for correctness check
# ---------------------------------------------------------------------------
def ref_forward(x_nchw, params, down=False):
    stride = 2 if down else 1
    w1, b1, g1, be1, w2, b2, g2, be2 = params

    def block(x, w, b, g, be, s):
        w_oihw = jnp.transpose(w, (3, 2, 0, 1))
        y = lax.conv_general_dilated(x, w_oihw, (s, s), ((1, 1), (1, 1)),
                                     dimension_numbers=('NCHW', 'OIHW', 'NCHW'))
        y = y + b.reshape(1, -1, 1, 1)
        mean = jnp.mean(y, axis=(0, 2, 3), keepdims=True)
        var = jnp.var(y, axis=(0, 2, 3), keepdims=True)     # biased, like BN
        y = (y - mean) / jnp.sqrt(var + BN_EPS)
        y = y * g.reshape(1, -1, 1, 1) + be.reshape(1, -1, 1, 1)
        return _selu(y)

    y = block(x_nchw.astype(jnp.float32), w1, b1, g1, be1, stride)
    y = block(y, w2, b2, g2, be2, 1)
    return y


if __name__ == "__main__":
    key = jax.random.PRNGKey(0)
    kx, kp = jax.random.split(key)

    N, IN_CH, OUT_CH, H, W = 2, 4, 8, 16, 16
    x = jax.random.normal(kx, (N, IN_CH, H, W), jnp.float32)      # PyTorch NCHW
    params = init_params(kp, IN_CH, OUT_CH)

    fwd = jax.jit(conv_block_forward, static_argnames=("down",))

    # down=False (stride 1)
    out = jax.block_until_ready(fwd(x, params, down=False))
    ref = ref_forward(x, params, down=False)
    assert out.shape == (N, OUT_CH, H, W), out.shape
    err = float(jnp.max(jnp.abs(out - ref)))
    # bf16 activations/weights end-to-end (MXU + stored intermediates) vs the
    # f32 reference -> loosened tolerance
    assert jnp.allclose(out, ref, rtol=8e-2, atol=8e-2), f"mismatch down=False {err}"

    # down=True (stride-2 first conv)
    out_d = jax.block_until_ready(fwd(x, params, down=True))
    ref_d = ref_forward(x, params, down=True)
    assert out_d.shape == (N, OUT_CH, H // 2, W // 2), out_d.shape
    err_d = float(jnp.max(jnp.abs(out_d - ref_d)))
    assert jnp.allclose(out_d, ref_d, rtol=8e-2, atol=8e-2), f"mismatch down=True {err_d}"

    print("KERNEL_OK")
</pallas_src>

<mosaic_0001>
module attributes {stable_mosaic.version = 11 : i64} {
  func.func @_conv_stats_kernel(%arg0: i32, %arg1: memref<144x5xbf16, #tpu.memory_space<vmem>>, %arg2: memref<48x5xbf16, #tpu.memory_space<vmem>>, %arg3: memref<36x128xbf16, #tpu.memory_space<vmem>>, %arg4: memref<144x128xbf16, #tpu.memory_space<vmem>>, %arg5: memref<8x128xf32, #tpu.memory_space<vmem>>) attributes {dimension_semantics = [#tpu.dimension_semantics<parallel>], iteration_bounds = array<i64: 5>, scalar_prefetch = 0 : i64, scratch_operands = 0 : i64, tpu.core_type = #tpu.core_type<tc>, window_params = [{transform_indices = @transform_0, window_bounds = array<i64: 144, 5>}, {transform_indices = @transform_1, window_bounds = array<i64: 48, 5>}, {pipeline_mode = #tpu.pipeline_mode<synchronous>, transform_indices = @transform_2, window_bounds = array<i64: 36, 128>}, {transform_indices = @transform_3, window_bounds = array<i64: 144, 128>}, {transform_indices = @transform_4, window_bounds = array<i64: 8, 128>}]} {
    %c0 = arith.constant 0 : index
    %c0_0 = arith.constant 0 : index
    %0 = vector.load %arg1[%c0, %c0_0] : memref<144x5xbf16, #tpu.memory_space<vmem>>, vector<144x5xbf16>
    %1 = arith.extf %0 : vector<144x5xbf16> to vector<144x5xf32>
    %c0_1 = arith.constant 0 : index
    %c0_2 = arith.constant 0 : index
    %2 = vector.load %arg2[%c0_1, %c0_2] : memref<48x5xbf16, #tpu.memory_space<vmem>>, vector<48x5xbf16>
    %3 = arith.extf %2 : vector<48x5xbf16> to vector<48x5xf32>
    %4 = vector.extract_strided_slice %1 {offsets = [0, 0], sizes = [144, 4], strides = [1, 1]} : vector<144x5xf32> to vector<144x4xf32>
    %5 = vector.extract_strided_slice %3 {offsets = [0, 0], sizes = [48, 4], strides = [1, 1]} : vector<48x5xf32> to vector<48x4xf32>
    %6 = tpu.concatenate %4, %5 in 0 : vector<144x4xf32>, vector<48x4xf32> -> vector<192x4xf32>
    %7 = vector.extract_strided_slice %6 {offsets = [0, 0], sizes = [144, 4], strides = [1, 1]} : vector<192x4xf32> to vector<144x4xf32>
    %8 = vector.extract_strided_slice %6 {offsets = [1, 0], sizes = [144, 4], strides = [1, 1]} : vector<192x4xf32> to vector<144x4xf32>
    %9 = vector.extract_strided_slice %6 {offsets = [2, 0], sizes = [144, 4], strides = [1, 1]} : vector<192x4xf32> to vector<144x4xf32>
    %10 = vector.extract_strided_slice %6 {offsets = [18, 0], sizes = [144, 4], strides = [1, 1]} : vector<192x4xf32> to vector<144x4xf32>
    %11 = vector.extract_strided_slice %6 {offsets = [19, 0], sizes = [144, 4], strides = [1, 1]} : vector<192x4xf32> to vector<144x4xf32>
    %12 = vector.extract_strided_slice %6 {offsets = [20, 0], sizes = [144, 4], strides = [1, 1]} : vector<192x4xf32> to vector<144x4xf32>
    %13 = vector.extract_strided_slice %6 {offsets = [36, 0], sizes = [144, 4], strides = [1, 1]} : vector<192x4xf32> to vector<144x4xf32>
    %14 = vector.extract_strided_slice %6 {offsets = [37, 0], sizes = [144, 4], strides = [1, 1]} : vector<192x4xf32> to vector<144x4xf32>
    %15 = vector.extract_strided_slice %6 {offsets = [38, 0], sizes = [144, 4], strides = [1, 1]} : vector<192x4xf32> to vector<144x4xf32>
    %16 = tpu.concatenate %7, %8, %9, %10, %11, %12, %13, %14, %15 in 1 : vector<144x4xf32>, vector<144x4xf32>, vector<144x4xf32>, vector<144x4xf32>, vector<144x4xf32>, vector<144x4xf32>, vector<144x4xf32>, vector<144x4xf32>, vector<144x4xf32> -> vector<144x36xf32>
    %17 = arith.truncf %16 : vector<144x36xf32> to vector<144x36xbf16>
    %c0_3 = arith.constant 0 : index
    %c0_4 = arith.constant 0 : index
    %18 = vector.load %arg3[%c0_3, %c0_4] : memref<36x128xbf16, #tpu.memory_space<vmem>>, vector<36x128xbf16>
    %cst = arith.constant dense<0.000000e+00> : vector<144x128xf32>
    %19 = tpu.matmul %17, %18, %cst {dimension_numbers = #tpu.dot_dimension_numbers<[1], [0], [0], [1], [0, 0, 1, 1], [], []>} : vector<144x36xbf16>, vector<36x128xbf16>, vector<144x128xf32> -> vector<144x128xf32>
    %20 = arith.truncf %19 : vector<144x128xf32> to vector<144x128xbf16>
    %c0_5 = arith.constant 0 : index
    %c0_6 = arith.constant 0 : index
    %21 = vector.load %arg4[%c0_5, %c0_6] : memref<144x128xbf16, #tpu.memory_space<vmem>>, vector<144x128xbf16>
    tpu.vector_store %arg4[%c0_5, %c0_6], %20 {strides = array<i32>} : memref<144x128xbf16, #tpu.memory_space<vmem>>, vector<144x128xbf16>,
    %22 = vector.extract_strided_slice %1 {offsets = [0, 4], sizes = [144, 1], strides = [1, 1]} : vector<144x5xf32> to vector<144x1xf32>
    %23 = vector.broadcast %22 : vector<144x1xf32> to vector<144x128xf32>
    %24 = arith.mulf %19, %23 : vector<144x128xf32>
    %cst_7 = arith.constant dense<0.000000e+00> : vector<128xf32>
    %25 = vector.multi_reduction <add>, %24, %cst_7 [0] : vector<144x128xf32> to vector<128xf32>
    %26 = vector.shape_cast %25 : vector<128xf32> to vector<1x128xf32>
    %27 = arith.mulf %19, %24 : vector<144x128xf32>
    %cst_8 = arith.constant dense<0.000000e+00> : vector<128xf32>
    %28 = vector.multi_reduction <add>, %27, %cst_8 [0] : vector<144x128xf32> to vector<128xf32>
    %29 = vector.shape_cast %28 : vector<128xf32> to vector<1x128xf32>
    %cst_9 = arith.constant 0.000000e+00 : f32
    %30 = vector.broadcast %cst_9 : f32 to vector<6x128xf32>
    %31 = tpu.concatenate %26, %29, %30 in 0 : vector<1x128xf32>, vector<1x128xf32>, vector<6x128xf32> -> vector<8x128xf32>
    %c0_10 = arith.constant 0 : index
    %c0_11 = arith.constant 0 : index
    %32 = vector.load %arg5[%c0_10, %c0_11] : memref<8x128xf32, #tpu.memory_space<vmem>>, vector<8x128xf32>
    tpu.vector_store %arg5[%c0_10, %c0_11], %31 {strides = array<i32>} : memref<8x128xf32, #tpu.memory_space<vmem>>, vector<8x128xf32>,
    return
  }
  func.func @transform_0(%arg0: i32) -> (i32, i32) {
    %c0_i32 = arith.constant 0 : i32
    %c0_i32_0 = arith.constant 0 : i32
    return %arg0, %c0_i32 : i32, i32
  }
  func.func @transform_1(%arg0: i32) -> (i32, i32) {
    %c1_i32 = arith.constant 1 : i32
    %0 = arith.addi %arg0, %c1_i32 : i32
    %c3_i32 = arith.constant 3 : i32
    %1 = arith.muli %0, %c3_i32 : i32
    %c0_i32 = arith.constant 0 : i32
    %c0_i32_0 = arith.constant 0 : i32
    return %1, %c0_i32 : i32, i32
  }
  func.func @transform_2(%arg0: i32) -> (i32, i32) {
    %c0_i32 = arith.constant 0 : i32
    %c0_i32_0 = arith.constant 0 : i32
    %c0_i32_1 = arith.constant 0 : i32
    return %c0_i32, %c0_i32_0 : i32, i32
  }
  func.func @transform_3(%arg0: i32) -> (i32, i32) {
    %c0_i32 = arith.constant 0 : i32
    %c0_i32_0 = arith.constant 0 : i32
    return %arg0, %c0_i32 : i32, i32
  }
  func.func @transform_4(%arg0: i32) -> (i32, i32) {
    %c0_i32 = arith.constant 0 : i32
    %c0_i32_0 = arith.constant 0 : i32
    return %arg0, %c0_i32 : i32, i32
  }
}

module attributes {stable_mosaic.version = 11 : i64} {
  func.func @_bn_selu_rows_kernel(%arg0: i32, %arg1: i32, %arg2: memref<1x18x128xbf16, #tpu.memory_space<vmem>>, %arg3: memref<1x128xf32, #tpu.memory_space<vmem>>, %arg4: memref<1x128xf32, #tpu.memory_space<vmem>>, %arg5: memref<1x1x16x128xbf16, #tpu.memory_space<vmem>>) attributes {dimension_semantics = [#tpu.dimension_semantics<parallel>, #tpu.dimension_semantics<parallel>], iteration_bounds = array<i64: 2, 16>, scalar_prefetch = 0 : i64, scratch_operands = 0 : i64, tpu.core_type = #tpu.core_type<tc>, window_params = [{transform_indices = @transform_0, window_bounds = array<i64: 1, 18, 128>}, {pipeline_mode = #tpu.pipeline_mode<synchronous>, transform_indices = @transform_1, window_bounds = array<i64: 1, 128>}, {pipeline_mode = #tpu.pipeline_mode<synchronous>, transform_indices = @transform_2, window_bounds = array<i64: 1, 128>}, {transform_indices = @transform_3, window_bounds = array<i64: 1, 1, 16, 128>}]} {
    %c0 = arith.constant 0 : index
    %c0_0 = arith.constant 0 : index
    %c0_1 = arith.constant 0 : index
    %0 = vector.load %arg2[%c0, %c0_0, %c0_1] : memref<1x18x128xbf16, #tpu.memory_space<vmem>>, vector<1x16x128xbf16>
    %1 = vector.shape_cast %0 : vector<1x16x128xbf16> to vector<16x128xbf16>
    %2 = arith.extf %1 : vector<16x128xbf16> to vector<16x128xf32>
    %c0_2 = arith.constant 0 : index
    %c0_3 = arith.constant 0 : index
    %3 = vector.load %arg3[%c0_2, %c0_3] : memref<1x128xf32, #tpu.memory_space<vmem>>, vector<1x128xf32>
    %4 = vector.broadcast %3 : vector<1x128xf32> to vector<16x128xf32>
    %5 = arith.mulf %2, %4 : vector<16x128xf32>
    %c0_4 = arith.constant 0 : index
    %c0_5 = arith.constant 0 : index
    %6 = vector.load %arg4[%c0_4, %c0_5] : memref<1x128xf32, #tpu.memory_space<vmem>>, vector<1x128xf32>
    %7 = vector.broadcast %6 : vector<1x128xf32> to vector<16x128xf32>
    %8 = arith.addf %5, %7 : vector<16x128xf32>
    %cst = arith.constant 0.000000e+00 : f32
    %9 = vector.broadcast %cst : f32 to vector<16x128xf32>
    %10 = arith.cmpf ogt, %8, %9 : vector<16x128xf32>
    %11 = math.exp %8 : vector<16x128xf32>
    %cst_6 = arith.constant 1.000000e+00 : f32
    %12 = vector.broadcast %cst_6 : f32 to vector<16x128xf32>
    %13 = arith.subf %11, %12 : vector<16x128xf32>
    %cst_7 = arith.constant 1.67326319 : f32
    %14 = vector.broadcast %cst_7 : f32 to vector<16x128xf32>
    %15 = arith.mulf %14, %13 : vector<16x128xf32>
    %16 = arith.select %10, %8, %15 : vector<16x128xi1>, vector<16x128xf32>
    %cst_8 = arith.constant 1.05070102 : f32
    %17 = vector.broadcast %cst_8 : f32 to vector<16x128xf32>
    %18 = arith.mulf %17, %16 : vector<16x128xf32>
    %19 = arith.truncf %18 : vector<16x128xf32> to vector<16x128xbf16>
    %c0_9 = arith.constant 0 : index
    %c0_10 = arith.constant 0 : index
    %c0_11 = arith.constant 0 : index
    %c0_12 = arith.constant 0 : index
    %20 = vector.load %arg5[%c0_9, %c0_10, %c0_11, %c0_12] : memref<1x1x16x128xbf16, #tpu.memory_space<vmem>>, vector<1x1x16x128xbf16>
    %21 = vector.shape_cast %20 : vector<1x1x16x128xbf16> to vector<16x128xbf16>
    %22 = vector.shape_cast %19 : vector<16x128xbf16> to vector<1x1x16x128xbf16>
    tpu.vector_store %arg5[%c0_9, %c0_10, %c0_11, %c0_12], %22 {strides = array<i32>} : memref<1x1x16x128xbf16, #tpu.memory_space<vmem>>, vector<1x1x16x128xbf16>,
    return
  }
  func.func @transform_0(%arg0: i32, %arg1: i32) -> (i32, i32, i32) {
    %c18_i32 = arith.constant 18 : i32
    %0 = arith.muli %arg0, %c18_i32 : i32
    %1 = arith.addi %0, %arg1 : i32
    %c0_i32 = arith.constant 0 : i32
    %c0_i32_0 = arith.constant 0 : i32
    %c0_i32_1 = arith.constant 0 : i32
    return %1, %c0_i32, %c0_i32_0 : i32, i32, i32
  }
  func.func @transform_1(%arg0: i32, %arg1: i32) -> (i32, i32) {
    %c0_i32 = arith.constant 0 : i32
    %c0_i32_0 = arith.constant 0 : i32
    %c0_i32_1 = arith.constant 0 : i32
    return %c0_i32, %c0_i32_0 : i32, i32
  }
  func.func @transform_2(%arg0: i32, %arg1: i32) -> (i32, i32) {
    %c0_i32 = arith.constant 0 : i32
    %c0_i32_0 = arith.constant 0 : i32
    %c0_i32_1 = arith.constant 0 : i32
    return %c0_i32, %c0_i32_0 : i32, i32
  }
  func.func @transform_3(%arg0: i32, %arg1: i32) -> (i32, i32, i32, i32) {
    %c0_i32 = arith.constant 0 : i32
    %c0_i32_0 = arith.constant 0 : i32
    %c0_i32_1 = arith.constant 0 : i32
    return %arg0, %arg1, %c0_i32, %c0_i32_0 : i32, i32, i32, i32
  }
}

module attributes {stable_mosaic.version = 11 : i64} {
  func.func @_conv_stats_kernel(%arg0: i32, %arg1: memref<144x9xbf16, #tpu.memory_space<vmem>>, %arg2: memref<48x9xbf16, #tpu.memory_space<vmem>>, %arg3: memref<72x128xbf16, #tpu.memory_space<vmem>>, %arg4: memref<144x128xbf16, #tpu.memory_space<vmem>>, %arg5: memref<8x128xf32, #tpu.memory_space<vmem>>) attributes {dimension_semantics = [#tpu.dimension_semantics<parallel>], iteration_bounds = array<i64: 5>, scalar_prefetch = 0 : i64, scratch_operands = 0 : i64, tpu.core_type = #tpu.core_type<tc>, window_params = [{transform_indices = @transform_0, window_bounds = array<i64: 144, 9>}, {transform_indices = @transform_1, window_bounds = array<i64: 48, 9>}, {pipeline_mode = #tpu.pipeline_mode<synchronous>, transform_indices = @transform_2, window_bounds = array<i64: 72, 128>}, {transform_indices = @transform_3, window_bounds = array<i64: 144, 128>}, {transform_indices = @transform_4, window_bounds = array<i64: 8, 128>}]} {
    %c0 = arith.constant 0 : index
    %c0_0 = arith.constant 0 : index
    %0 = vector.load %arg1[%c0, %c0_0] : memref<144x9xbf16, #tpu.memory_space<vmem>>, vector<144x9xbf16>
    %1 = arith.extf %0 : vector<144x9xbf16> to vector<144x9xf32>
    %c0_1 = arith.constant 0 : index
    %c0_2 = arith.constant 0 : index
    %2 = vector.load %arg2[%c0_1, %c0_2] : memref<48x9xbf16, #tpu.memory_space<vmem>>, vector<48x9xbf16>
    %3 = arith.extf %2 : vector<48x9xbf16> to vector<48x9xf32>
    %4 = vector.extract_strided_slice %1 {offsets = [0, 0], sizes = [144, 8], strides = [1, 1]} : vector<144x9xf32> to vector<144x8xf32>
    %5 = vector.extract_strided_slice %3 {offsets = [0, 0], sizes = [48, 8], strides = [1, 1]} : vector<48x9xf32> to vector<48x8xf32>
    %6 = tpu.concatenate %4, %5 in 0 : vector<144x8xf32>, vector<48x8xf32> -> vector<192x8xf32>
    %7 = vector.extract_strided_slice %6 {offsets = [0, 0], sizes = [144, 8], strides = [1, 1]} : vector<192x8xf32> to vector<144x8xf32>
    %8 = vector.extract_strided_slice %6 {offsets = [1, 0], sizes = [144, 8], strides = [1, 1]} : vector<192x8xf32> to vector<144x8xf32>
    %9 = vector.extract_strided_slice %6 {offsets = [2, 0], sizes = [144, 8], strides = [1, 1]} : vector<192x8xf32> to vector<144x8xf32>
    %10 = vector.extract_strided_slice %6 {offsets = [18, 0], sizes = [144, 8], strides = [1, 1]} : vector<192x8xf32> to vector<144x8xf32>
    %11 = vector.extract_strided_slice %6 {offsets = [19, 0], sizes = [144, 8], strides = [1, 1]} : vector<192x8xf32> to vector<144x8xf32>
    %12 = vector.extract_strided_slice %6 {offsets = [20, 0], sizes = [144, 8], strides = [1, 1]} : vector<192x8xf32> to vector<144x8xf32>
    %13 = vector.extract_strided_slice %6 {offsets = [36, 0], sizes = [144, 8], strides = [1, 1]} : vector<192x8xf32> to vector<144x8xf32>
    %14 = vector.extract_strided_slice %6 {offsets = [37, 0], sizes = [144, 8], strides = [1, 1]} : vector<192x8xf32> to vector<144x8xf32>
    %15 = vector.extract_strided_slice %6 {offsets = [38, 0], sizes = [144, 8], strides = [1, 1]} : vector<192x8xf32> to vector<144x8xf32>
    %16 = tpu.concatenate %7, %8, %9, %10, %11, %12, %13, %14, %15 in 1 : vector<144x8xf32>, vector<144x8xf32>, vector<144x8xf32>, vector<144x8xf32>, vector<144x8xf32>, vector<144x8xf32>, vector<144x8xf32>, vector<144x8xf32>, vector<144x8xf32> -> vector<144x72xf32>
    %17 = arith.truncf %16 : vector<144x72xf32> to vector<144x72xbf16>
    %c0_3 = arith.constant 0 : index
    %c0_4 = arith.constant 0 : index
    %18 = vector.load %arg3[%c0_3, %c0_4] : memref<72x128xbf16, #tpu.memory_space<vmem>>, vector<72x128xbf16>
    %cst = arith.constant dense<0.000000e+00> : vector<144x128xf32>
    %19 = tpu.matmul %17, %18, %cst {dimension_numbers = #tpu.dot_dimension_numbers<[1], [0], [0], [1], [0, 0, 1, 1], [], []>} : vector<144x72xbf16>, vector<72x128xbf16>, vector<144x128xf32> -> vector<144x128xf32>
    %20 = arith.truncf %19 : vector<144x128xf32> to vector<144x128xbf16>
    %c0_5 = arith.constant 0 : index
    %c0_6 = arith.constant 0 : index
    %21 = vector.load %arg4[%c0_5, %c0_6] : memref<144x128xbf16, #tpu.memory_space<vmem>>, vector<144x128xbf16>
    tpu.vector_store %arg4[%c0_5, %c0_6], %20 {strides = array<i32>} : memref<144x128xbf16, #tpu.memory_space<vmem>>, vector<144x128xbf16>,
    %22 = vector.extract_strided_slice %1 {offsets = [0, 8], sizes = [144, 1], strides = [1, 1]} : vector<144x9xf32> to vector<144x1xf32>
    %23 = vector.broadcast %22 : vector<144x1xf32> to vector<144x128xf32>
    %24 = arith.mulf %19, %23 : vector<144x128xf32>
    %cst_7 = arith.constant dense<0.000000e+00> : vector<128xf32>
    %25 = vector.multi_reduction <add>, %24, %cst_7 [0] : vector<144x128xf32> to vector<128xf32>
    %26 = vector.shape_cast %25 : vector<128xf32> to vector<1x128xf32>
    %27 = arith.mulf %19, %24 : vector<144x128xf32>
    %cst_8 = arith.constant dense<0.000000e+00> : vector<128xf32>
    %28 = vector.multi_reduction <add>, %27, %cst_8 [0] : vector<144x128xf32> to vector<128xf32>
    %29 = vector.shape_cast %28 : vector<128xf32> to vector<1x128xf32>
    %cst_9 = arith.constant 0.000000e+00 : f32
    %30 = vector.broadcast %cst_9 : f32 to vector<6x128xf32>
    %31 = tpu.concatenate %26, %29, %30 in 0 : vector<1x128xf32>, vector<1x128xf32>, vector<6x128xf32> -> vector<8x128xf32>
    %c0_10 = arith.constant 0 : index
    %c0_11 = arith.constant 0 : index
    %32 = vector.load %arg5[%c0_10, %c0_11] : memref<8x128xf32, #tpu.memory_space<vmem>>, vector<8x128xf32>
    tpu.vector_store %arg5[%c0_10, %c0_11], %31 {strides = array<i32>} : memref<8x128xf32, #tpu.memory_space<vmem>>, vector<8x128xf32>,
    return
  }
  func.func @transform_0(%arg0: i32) -> (i32, i32) {
    %c0_i32 = arith.constant 0 : i32
    %c0_i32_0 = arith.constant 0 : i32
    return %arg0, %c0_i32 : i32, i32
  }
  func.func @transform_1(%arg0: i32) -> (i32, i32) {
    %c1_i32 = arith.constant 1 : i32
    %0 = arith.addi %arg0, %c1_i32 : i32
    %c3_i32 = arith.constant 3 : i32
    %1 = arith.muli %0, %c3_i32 : i32
    %c0_i32 = arith.constant 0 : i32
    %c0_i32_0 = arith.constant 0 : i32
    return %1, %c0_i32 : i32, i32
  }
  func.func @transform_2(%arg0: i32) -> (i32, i32) {
    %c0_i32 = arith.constant 0 : i32
    %c0_i32_0 = arith.constant 0 : i32
    %c0_i32_1 = arith.constant 0 : i32
    return %c0_i32, %c0_i32_0 : i32, i32
  }
  func.func @transform_3(%arg0: i32) -> (i32, i32) {
    %c0_i32 = arith.constant 0 : i32
    %c0_i32_0 = arith.constant 0 : i32
    return %arg0, %c0_i32 : i32, i32
  }
  func.func @transform_4(%arg0: i32) -> (i32, i32) {
    %c0_i32 = arith.constant 0 : i32
    %c0_i32_0 = arith.constant 0 : i32
    return %arg0, %c0_i32 : i32, i32
  }
}

</mosaic_0001>

<llo_original>
// kernel: conv_block_forward.5
$region0: #{conv_block_forward.5}
  #allocation0 [shape = 'u32[]', space=smem, size = 0x4, offset = 0x4, fixed_abs, tag = 'smem constant byte address 0x4 - core index']
  #allocation1 [shape = 'u32[144,128]{1,0:T(1,128)}', space=vmem, size = 0x12000, scoped, tag = 'internal scratch']
  %s0 = inlined_call_operand.vmem [shape: bf16[40,18,128], index: 0, kind: input, shape index: {}]
  %s1 = inlined_call_operand.vmem [shape: f32[1,128], index: 1, kind: input, shape index: {}]
  %s2 = inlined_call_operand.vmem [shape: f32[1,128], index: 2, kind: input, shape index: {}]
  %s3 = inlined_call_operand.vmem [shape: bf16[2,16,16,128], index: 3, kind: output, shape index: {}]
  %s4 = sld [smem:[#allocation0]]
  $region45: #{conv_block_forward.5} parent=0
    _
  %s6 = ssub.s32 1, %s4
  %s7 = scalar_select 0, %s6, %s4
  loop: start=0, step=1, limit=34
  $region2: #{conv_block_forward.5} parent=0 // loop_pre_header
    _
  $region3: #{conv_block_forward.5} parent=0 // loop_header
    %s9 = sphi 0, %s13
    %p10 = scmp.ge.s32.totalorder %s9, 34
    %s16 = sphi 0, %s28
    %s17 = sphi 0, %s24
    %s18 = sphi 0, %s16
    %s19 = sphi 0, %s17
    %s20 = sphi 0, %s18
    %s21 = sphi 0, %s19
    %s35 = sphi 0, %s37
    %s38 = sphi 0, %s35
    %s39 = sphi 0, %s38
    %s55 = sphi 0, %s39
    %s59 = sphi 0, %s59
    %s61 = sphi 0, %s59
    %s62 = sphi 0, %s61
    %s76 = sphi 0, %s62
    %s80 = sphi 0, %s80
    %s82 = sphi 0, %s80
    %s83 = sphi 0, %s82
    %s97 = sphi 0, %s83
    %s105 = sphi 0, %s107
    %s108 = sphi 0, %s105
    %s109 = sphi 0, %s108
    %s125 = sphi 0, %s109
  $region4: #{conv_block_forward.5} parent=0 // loop_header_branch
    %12 = sbr.rel (%p10) target = $region8
  $region5: #{conv_block_forward.5} parent=0 // loop_body
    %s14 = ssub.s32 %s9, 1
    %s15 = ssub.s32 %s9, 2
    %s22 = sadd.s32 1, %s17
    %p23 = scmp.ge.s32.totalorder %s22, 16
    %s24 = scalar_select %p23, 0, %s22
    %s25 = sadd.s32 1, %s16
    %s26 = scalar_select %p23, %s25, %s16
    %p27 = scmp.ge.s32.totalorder %s26, 2
    %s28 = scalar_select %p27, 0, %s26
    %s29 = smul.u32 %s16, 18
    %s30 = sadd.s32 %s29, %s17
    %s31 = smul.u32 %s28, 18
    %s32 = sadd.s32 %s31, %s24
    %s33 = ssub.s32 %s30, %s32
    %p34 = scmp.eq.s32.totalorder %s33, 0
    %s36 = sadd.s32 %s35, 1
    %s37 = scalar_select %p34, %s35, %s36
    %p40 = pneg %p34
    %p41 = scmp.eq.s32.totalorder %s9, 31
    %p42 = por %p40, %p41
    %p43 = scmp.ne.s32.totalorder %s35, %s38
    %p44 = scmp.eq.s32.totalorder %s9, 0
    %p45 = por %p43, %p44
    %p46 = scmp.ne.s32.totalorder %s35, %s38
    %p47 = scmp.eq.s32.totalorder %s14, 31
    %p48 = por %p46, %p47
    %p49 = scmp.ne.s32.totalorder %s38, %s39
    %p50 = scmp.eq.s32.totalorder %s14, 0
    %p51 = por %p49, %p50
    %p52 = scmp.ne.s32.totalorder %s38, %s39
    %p53 = scmp.eq.s32.totalorder %s15, 31
    %p54 = por %p52, %p53
    %p56 = scmp.ne.s32.totalorder %s39, %s55
    %p57 = scmp.eq.s32.totalorder %s15, 0
    %p58 = por %p56, %p57
    %s60 = sadd.s32 %s59, 1
    %p63 = scmp.eq.s32.totalorder %s9, 31
    %p64 = scmp.ne.s32.totalorder %s59, %s61
    %p65 = scmp.eq.s32.totalorder %s9, 0
    %p66 = por %p64, %p65
    %p67 = scmp.ne.s32.totalorder %s59, %s61
    %p68 = scmp.eq.s32.totalorder %s14, 31
    %p69 = por %p67, %p68
    %p70 = scmp.ne.s32.totalorder %s61, %s62
    %p71 = scmp.eq.s32.totalorder %s14, 0
    %p72 = por %p70, %p71
    %p73 = scmp.ne.s32.totalorder %s61, %s62
    %p74 = scmp.eq.s32.totalorder %s15, 31
    %p75 = por %p73, %p74
    %p77 = scmp.ne.s32.totalorder %s62, %s76
    %p78 = scmp.eq.s32.totalorder %s15, 0
    %p79 = por %p77, %p78
    %s81 = sadd.s32 %s80, 1
    %p84 = scmp.eq.s32.totalorder %s9, 31
    %p85 = scmp.ne.s32.totalorder %s80, %s82
    %p86 = scmp.eq.s32.totalorder %s9, 0
    %p87 = por %p85, %p86
    %p88 = scmp.ne.s32.totalorder %s80, %s82
    %p89 = scmp.eq.s32.totalorder %s14, 31
    %p90 = por %p88, %p89
    %p91 = scmp.ne.s32.totalorder %s82, %s83
    %p92 = scmp.eq.s32.totalorder %s14, 0
    %p93 = por %p91, %p92
    %p94 = scmp.ne.s32.totalorder %s82, %s83
    %p95 = scmp.eq.s32.totalorder %s15, 31
    %p96 = por %p94, %p95
    %p98 = scmp.ne.s32.totalorder %s83, %s97
    %p99 = scmp.eq.s32.totalorder %s15, 0
    %p100 = por %p98, %p99
    %s101 = ssub.s32 %s16, %s28
    %s102 = ssub.s32 %s17, %s24
    %s103 = sor.u32 %s101, %s102
    %p104 = scmp.eq.s32.totalorder %s103, 0
    %s106 = sadd.s32 %s105, 1
    %s107 = scalar_select %p104, %s105, %s106
    %p110 = pneg %p104
    %p111 = scmp.eq.s32.totalorder %s9, 31
    %p112 = por %p110, %p111
    %p113 = scmp.ne.s32.totalorder %s105, %s108
    %p114 = scmp.eq.s32.totalorder %s9, 0
    %p115 = por %p113, %p114
    %p116 = scmp.ne.s32.totalorder %s105, %s108
    %p117 = scmp.eq.s32.totalorder %s14, 31
    %p118 = por %p116, %p117
    %p119 = scmp.ne.s32.totalorder %s108, %s109
    %p120 = scmp.eq.s32.totalorder %s14, 0
    %p121 = por %p119, %p120
    %p122 = scmp.ne.s32.totalorder %s108, %s109
    %p123 = scmp.eq.s32.totalorder %s15, 31
    %p124 = por %p122, %p123
    %p126 = scmp.ne.s32.totalorder %s109, %s125
    %p127 = scmp.eq.s32.totalorder %s15, 0
    %p128 = por %p126, %p127
    %p129 = scmp.le.s32.totalorder 1, %s9
    %p130 = scmp.lt.s32.totalorder %s9, 33
    %p131 = pnand %p129, %p130
    %p132 = pneg %p131
    // Predicated region
    $region9: #{conv_block_forward.5} parent=5 // pred_check
      _
    $region10: #{conv_block_forward.5} parent=5 // pred_check_branch
      %134 = sbr.rel (%p131) target = $region12
    $region11: #{conv_block_forward.5} parent=5 // pred_region
      %s135 = ssub.s32 %s9, 1
      // Predicated region
      $region13: #{conv_block_forward.5} parent=11 // pred_check
        %p136 = pneg %p72
      $region14: #{conv_block_forward.5} parent=11 // pred_check_branch
        %138 = sbr.rel (%p136) target = $region16
      $region15: #{conv_block_forward.5} parent=11 // pred_region
        _
      $region16: #{conv_block_forward.5} parent=11 // pred_fallthru
        _
      // Predicated region
      $region17: #{conv_block_forward.5} parent=11 // pred_check
        %p139 = pneg %p93
      $region18: #{conv_block_forward.5} parent=11 // pred_check_branch
        %141 = sbr.rel (%p139) target = $region20
      $region19: #{conv_block_forward.5} parent=11 // pred_region
        _
      $region20: #{conv_block_forward.5} parent=11 // pred_fallthru
        _
    $region12: #{conv_block_forward.5} parent=5 // pred_fallthru
      _
    %p142 = scmp.lt.s32.totalorder %s9, 32
    // Predicated region
    $region21: #{conv_block_forward.5} parent=5 // pred_check
      %p143 = pneg %p142
    $region22: #{conv_block_forward.5} parent=5 // pred_check_branch
      %145 = sbr.rel (%p143) target = $region24
    $region23: #{conv_block_forward.5} parent=5 // pred_region
      // Predicated region
      $region25: #{conv_block_forward.5} parent=23 // pred_check
        %p146 = pneg %p45
      $region26: #{conv_block_forward.5} parent=23 // pred_check_branch
        %148 = sbr.rel (%p146) target = $region28
      $region27: #{conv_block_forward.5} parent=23 // pred_region
        %s149 = smul.u32 %s16, 18
        %s150 = sadd.s32 %s149, %s17
        %p151 = scmp.lt.s32.totalorder %s150, 39
        %s152 = scalar_select %p151, %s150, 39
        %s153 = smul.addr %s152, 3
        %s154 = smul.addr %s153, 4
        %s155 = scalar_lea.vmem %s0, %s154
        %s156 = smul.u32 %s16, 18
        %s157 = sadd.s32 %s156, %s17
      $region28: #{conv_block_forward.5} parent=23 // pred_fallthru
        _
    $region24: #{conv_block_forward.5} parent=5 // pred_fallthru
      _
    %p158 = scmp.le.s32.totalorder 1, %s9
    %p159 = scmp.lt.s32.totalorder %s9, 33
    %p160 = pnand %p158, %p159
    %p161 = pneg %p160
    // Predicated region
    $region29: #{conv_block_forward.5} parent=5 // pred_check
      _
    $region30: #{conv_block_forward.5} parent=5 // pred_check_branch
      %163 = sbr.rel (%p160) target = $region32
    $region31: #{conv_block_forward.5} parent=5 // pred_region
      %s164 = ssub.s32 %s9, 1
      %s165 = smul.u32 %s18, 18
      %s166 = sadd.s32 %s165, %s19
      %p167 = scmp.lt.s32.totalorder %s166, 39
      %s168 = scalar_select %p167, %s166, 39
      %s169 = smul.addr %s168, 3
      %s170 = smul.addr %s169, 4
      %s171 = scalar_lea.vmem %s0, %s170
      %p172 = pneg %p51
      %p173 = pneg %p48
      %p174 = pneg %p72
      %p175 = pneg %p69
      %p176 = pneg %p93
      %p177 = pneg %p90
      %p178 = pneg %p121
      %p179 = pneg %p118
      %p180 = scmp.lt.s32.totalorder %s18, 1
      %s181 = scalar_select %p180, %s18, 1
      %p182 = scmp.lt.s32.totalorder %s19, 15
      %s183 = scalar_select %p182, %s19, 15
      %s184 = smul.addr %s183, 2
      %s185 = smul.addr %s181, 32
      %s186 = sadd.s32 %s184, %s185
      %s187 = smul.addr %s186, 4
      %s188 = scalar_lea.vmem %s3, %s187
      %s189 = smul.u32 %s18, 18
      %s190 = sadd.s32 %s189, %s19
      %p191 = scmp.lt.s32.totalorder %s190, 39
      %s192 = scalar_select %p191, %s190, 39
      %s193 = smul.addr %s192, 3
      %s194 = smul.addr %s193, 4
      %s195 = scalar_lea.vmem %s0, %s194
      %s196 = smul.u32 %s18, 18
      %s197 = sadd.s32 %s196, %s19
      %p198 = scmp.lt.s32.totalorder %s18, 1
      %s199 = scalar_select %p198, %s18, 1
      %p200 = scmp.lt.s32.totalorder %s19, 15
      %s201 = scalar_select %p200, %s19, 15
      %s202 = smul.addr %s201, 2
      %s203 = smul.addr %s199, 32
      %s204 = sadd.s32 %s202, %s203
      %s205 = smul.addr %s204, 4
      %s206 = scalar_lea.vmem %s3, %s205
      %v207 = vld [vmem:[%s195] sm:$0xf]
      %v208 = vld [vmem:[%s195 + $0x4] sm:$0xf]
      %v209 = vunpack.c.l.bf16 %v207
      %v210 = vunpack.c.l.bf16 %v208
      %v211 = vld [vmem:[%s1] sm:$0x1]
      %v213 = vlaneseq
      %v214 = vshrl.u32 %v213, 7
      %v215 = vsub.s32 0, %v214
      %v216 = vrot.slane %v211, %v215
      %v218 = vmul.f32 %v209, %v216
      %v219 = vmul.f32 %v210, %v216
      %v220 = vld [vmem:[%s2] sm:$0x1]
      %v222 = vlaneseq
      %v223 = vshrl.u32 %v222, 7
      %v224 = vsub.s32 0, %v223
      %v225 = vrot.slane %v220, %v224
      %v227 = vadd.f32 %v218, %v225
      %v228 = vadd.f32 %v219, %v225
      %vm229 = vcmp.gt.f32.partialorder %v227, 0.0
      %vm230 = vcmp.gt.f32.partialorder %v228, 0.0
      %v231 = vmul.f32 %v227, 1.442695
      %v232 = vpow.pop %v231
      %v233 = vmul.f32 %v228, 1.442695
      %v234 = vpow.pop %v233
      %v235 = vsub.f32 %v232, 1.0
      %v236 = vsub.f32 %v234, 1.0
      %v237 = vmul.f32 %v235, 1.6732632
      %v238 = vmul.f32 %v236, 1.6732632
      %v239 = vsel %vm229, %v227, %v237
      %v240 = vsel %vm230, %v228, %v238
      %v241 = vmul.f32 %v239, 1.050701
      %v242 = vmul.f32 %v240, 1.050701
      %v243 = vpack.c.bf16 %v242, %v241
      %v245 = vunpack.c.l.b16 %v243
      %v246 = vunpack.c.h.b16 %v243
      %v247 = vpack.c.b16 %v245, %v245
      %v248 = vpack.c.b16 %v246, %v246
      %251 = vst [vmem:[%s206] sm:$0xf] %v247
      %252 = vst [vmem:[%s206 + $0x4] sm:$0xf] %v248
      %p253 = scmp.lt.s32.totalorder %s18, 1
      %s254 = scalar_select %p253, %s18, 1
      %p255 = scmp.lt.s32.totalorder %s19, 15
      %s256 = scalar_select %p255, %s19, 15
      %s257 = smul.addr %s256, 2
      %s258 = smul.addr %s254, 32
      %s259 = sadd.s32 %s257, %s258
      %s260 = smul.addr %s259, 4
      %s261 = scalar_lea.vmem %s3, %s260
      // Predicated region
      $region33: #{conv_block_forward.5} parent=31 // pred_check
        %p262 = pneg %p118
      $region34: #{conv_block_forward.5} parent=31 // pred_check_branch
        %264 = sbr.rel (%p262) target = $region36
      $region35: #{conv_block_forward.5} parent=31 // pred_region
        _
      $region36: #{conv_block_forward.5} parent=31 // pred_fallthru
        _
    $region32: #{conv_block_forward.5} parent=5 // pred_fallthru
      _
    %p265 = scmp.le.s32.totalorder 2, %s9
    // Predicated region
    $region37: #{conv_block_forward.5} parent=5 // pred_check
      %p266 = pneg %p265
    $region38: #{conv_block_forward.5} parent=5 // pred_check_branch
      %268 = sbr.rel (%p266) target = $region40
    $region39: #{conv_block_forward.5} parent=5 // pred_region
      %s269 = ssub.s32 %s9, 2
      // Predicated region
      $region41: #{conv_block_forward.5} parent=39 // pred_check
        %p270 = pneg %p124
      $region42: #{conv_block_forward.5} parent=39 // pred_check_branch
        %272 = sbr.rel (%p270) target = $region44
      $region43: #{conv_block_forward.5} parent=39 // pred_region
        %p273 = scmp.lt.s32.totalorder %s20, 1
        %s274 = scalar_select %p273, %s20, 1
        %p275 = scmp.lt.s32.totalorder %s21, 15
        %s276 = scalar_select %p275, %s21, 15
        %s277 = smul.addr %s276, 2
        %s278 = smul.addr %s274, 32
        %s279 = sadd.s32 %s277, %s278
        %s280 = smul.addr %s279, 4
        %s281 = scalar_lea.vmem %s3, %s280
      $region44: #{conv_block_forward.5} parent=39 // pred_fallthru
        _
    $region40: #{conv_block_forward.5} parent=5 // pred_fallthru
      _
  $region6: #{conv_block_forward.5} parent=0 // loop_footer
    %s13 = sadd.s32 1, %s9
  $region7: #{conv_block_forward.5} parent=0 // loop_footer_branch
    %8 = sbr.rel target = $region3
  $region8: #{conv_block_forward.5} parent=0 // loop_exit
    _

// kernel: conv_block_forward.4
$region0: #{conv_block_forward.4}
  #allocation0 [shape = 'u32[]', space=smem, size = 0x4, offset = 0x4, fixed_abs, tag = 'smem constant byte address 0x4 - core index']
  #allocation1 [shape = 'u32[144,128]{1,0:T(1,128)}', space=vmem, size = 0x12000, scoped, tag = 'internal scratch']
  %s0 = inlined_call_operand.vmem [shape: bf16[768,5], index: 0, kind: input, shape index: {}, may-alias: {0,1}]
  %s1 = inlined_call_operand.vmem [shape: bf16[768,5], index: 1, kind: input, shape index: {}, may-alias: {0,1}]
  %s2 = inlined_call_operand.vmem [shape: bf16[36,128], index: 2, kind: input, shape index: {}]
  %s3 = inlined_call_operand.vmem [shape: bf16[720,128], index: 3, kind: output, shape index: {0}]
  %s4 = inlined_call_operand.vmem [shape: f32[40,128], index: 4, kind: output, shape index: {1}]
  %5 = xla_tuple %s3, %s4
  %s6 = sld [smem:[#allocation0]]
  $region53: #{conv_block_forward.4} parent=0
    _
  %s8 = ssub.s32 1, %s6
  %s9 = scalar_select 0, %s8, %s6
  loop: start=0, step=1, limit=7
  $region2: #{conv_block_forward.4} parent=0 // loop_pre_header
    _
  $region3: #{conv_block_forward.4} parent=0 // loop_header
    %s11 = sphi 0, %s15
    %p12 = scmp.ge.s32.totalorder %s11, 7
    %s21 = sphi 0, %s23
    %s24 = sphi 0, %s21
    %s25 = sphi 0, %s24
    %s41 = sphi 0, %s25
    %s51 = sphi 0, %s53
    %s54 = sphi 0, %s51
    %s55 = sphi 0, %s54
    %s71 = sphi 0, %s55
    %s75 = sphi 0, %s75
    %s77 = sphi 0, %s75
    %s78 = sphi 0, %s77
    %s92 = sphi 0, %s78
    %s98 = sphi 0, %s100
    %s101 = sphi 0, %s98
    %s102 = sphi 0, %s101
    %s118 = sphi 0, %s102
    %s124 = sphi 0, %s126
    %s127 = sphi 0, %s124
    %s128 = sphi 0, %s127
    %s144 = sphi 0, %s128
  $region4: #{conv_block_forward.4} parent=0 // loop_header_branch
    %14 = sbr.rel (%p12) target = $region8
  $region5: #{conv_block_forward.4} parent=0 // loop_body
    %s16 = ssub.s32 %s11, 1
    %s17 = ssub.s32 %s11, 2
    %s18 = sadd.s32 %s11, 1
    %s19 = ssub.s32 %s11, %s18
    %p20 = scmp.eq.s32.totalorder %s19, 0
    %s22 = sadd.s32 %s21, 1
    %s23 = scalar_select %p20, %s21, %s22
    %p26 = pneg %p20
    %p27 = scmp.eq.s32.totalorder %s11, 4
    %p28 = por %p26, %p27
    %p29 = scmp.ne.s32.totalorder %s21, %s24
    %p30 = scmp.eq.s32.totalorder %s11, 0
    %p31 = por %p29, %p30
    %p32 = scmp.ne.s32.totalorder %s21, %s24
    %p33 = scmp.eq.s32.totalorder %s16, 4
    %p34 = por %p32, %p33
    %p35 = scmp.ne.s32.totalorder %s24, %s25
    %p36 = scmp.eq.s32.totalorder %s16, 0
    %p37 = por %p35, %p36
    %p38 = scmp.ne.s32.totalorder %s24, %s25
    %p39 = scmp.eq.s32.totalorder %s17, 4
    %p40 = por %p38, %p39
    %p42 = scmp.ne.s32.totalorder %s25, %s41
    %p43 = scmp.eq.s32.totalorder %s17, 0
    %p44 = por %p42, %p43
    %s45 = sadd.s32 %s11, 1
    %s46 = smul.u32 %s45, 3
    %s47 = sadd.s32 %s18, 1
    %s48 = smul.u32 %s47, 3
    %s49 = ssub.s32 %s46, %s48
    %p50 = scmp.eq.s32.totalorder %s49, 0
    %s52 = sadd.s32 %s51, 1
    %s53 = scalar_select %p50, %s51, %s52
    %p56 = pneg %p50
    %p57 = scmp.eq.s32.totalorder %s11, 4
    %p58 = por %p56, %p57
    %p59 = scmp.ne.s32.totalorder %s51, %s54
    %p60 = scmp.eq.s32.totalorder %s11, 0
    %p61 = por %p59, %p60
    %p62 = scmp.ne.s32.totalorder %s51, %s54
    %p63 = scmp.eq.s32.totalorder %s16, 4
    %p64 = por %p62, %p63
    %p65 = scmp.ne.s32.totalorder %s54, %s55
    %p66 = scmp.eq.s32.totalorder %s16, 0
    %p67 = por %p65, %p66
    %p68 = scmp.ne.s32.totalorder %s54, %s55
    %p69 = scmp.eq.s32.totalorder %s17, 4
    %p70 = por %p68, %p69
    %p72 = scmp.ne.s32.totalorder %s55, %s71
    %p73 = scmp.eq.s32.totalorder %s17, 0
    %p74 = por %p72, %p73
    %s76 = sadd.s32 %s75, 1
    %p79 = scmp.eq.s32.totalorder %s11, 4
    %p80 = scmp.ne.s32.totalorder %s75, %s77
    %p81 = scmp.eq.s32.totalorder %s11, 0
    %p82 = por %p80, %p81
    %p83 = scmp.ne.s32.totalorder %s75, %s77
    %p84 = scmp.eq.s32.totalorder %s16, 4
    %p85 = por %p83, %p84
    %p86 = scmp.ne.s32.totalorder %s77, %s78
    %p87 = scmp.eq.s32.totalorder %s16, 0
    %p88 = por %p86, %p87
    %p89 = scmp.ne.s32.totalorder %s77, %s78
    %p90 = scmp.eq.s32.totalorder %s17, 4
    %p91 = por %p89, %p90
    %p93 = scmp.ne.s32.totalorder %s78, %s92
    %p94 = scmp.eq.s32.totalorder %s17, 0
    %p95 = por %p93, %p94
    %s96 = ssub.s32 %s11, %s18
    %p97 = scmp.eq.s32.totalorder %s96, 0
    %s99 = sadd.s32 %s98, 1
    %s100 = scalar_select %p97, %s98, %s99
    %p103 = pneg %p97
    %p104 = scmp.eq.s32.totalorder %s11, 4
    %p105 = por %p103, %p104
    %p106 = scmp.ne.s32.totalorder %s98, %s101
    %p107 = scmp.eq.s32.totalorder %s11, 0
    %p108 = por %p106, %p107
    %p109 = scmp.ne.s32.totalorder %s98, %s101
    %p110 = scmp.eq.s32.totalorder %s16, 4
    %p111 = por %p109, %p110
    %p112 = scmp.ne.s32.totalorder %s101, %s102
    %p113 = scmp.eq.s32.totalorder %s16, 0
    %p114 = por %p112, %p113
    %p115 = scmp.ne.s32.totalorder %s101, %s102
    %p116 = scmp.eq.s32.totalorder %s17, 4
    %p117 = por %p115, %p116
    %p119 = scmp.ne.s32.totalorder %s102, %s118
    %p120 = scmp.eq.s32.totalorder %s17, 0
    %p121 = por %p119, %p120
    %s122 = ssub.s32 %s11, %s18
    %p123 = scmp.eq.s32.totalorder %s122, 0
    %s125 = sadd.s32 %s124, 1
    %s126 = scalar_select %p123, %s124, %s125
    %p129 = pneg %p123
    %p130 = scmp.eq.s32.totalorder %s11, 4
    %p131 = por %p129, %p130
    %p132 = scmp.ne.s32.totalorder %s124, %s127
    %p133 = scmp.eq.s32.totalorder %s11, 0
    %p134 = por %p132, %p133
    %p135 = scmp.ne.s32.totalorder %s124, %s127
    %p136 = scmp.eq.s32.totalorder %s16, 4
    %p137 = por %p135, %p136
    %p138 = scmp.ne.s32.totalorder %s127, %s128
    %p139 = scmp.eq.s32.totalorder %s16, 0
    %p140 = por %p138, %p139
    %p141 = scmp.ne.s32.totalorder %s127, %s128
    %p142 = scmp.eq.s32.totalorder %s17, 4
    %p143 = por %p141, %p142
    %p145 = scmp.ne.s32.totalorder %s128, %s144
    %p146 = scmp.eq.s32.totalorder %s17, 0
    %p147 = por %p145, %p146
    %p148 = scmp.le.s32.totalorder 1, %s11
    %p149 = scmp.lt.s32.totalorder %s11, 6
    %p150 = pnand %p148, %p149
    %p151 = pneg %p150
    // Predicated region
    $region9: #{conv_block_forward.4} parent=5 // pred_check
      _
    $region10: #{conv_block_forward.4} parent=5 // pred_check_branch
      %153 = sbr.rel (%p150) target = $region12
    $region11: #{conv_block_forward.4} parent=5 // pred_region
      %s154 = ssub.s32 %s11, 1
      // Predicated region
      $region13: #{conv_block_forward.4} parent=11 // pred_check
        %p155 = pneg %p88
      $region14: #{conv_block_forward.4} parent=11 // pred_check_branch
        %157 = sbr.rel (%p155) target = $region16
      $region15: #{conv_block_forward.4} parent=11 // pred_region
        _
      $region16: #{conv_block_forward.4} parent=11 // pred_fallthru
        _
    $region12: #{conv_block_forward.4} parent=5 // pred_fallthru
      _
    %p158 = scmp.lt.s32.totalorder %s11, 5
    // Predicated region
    $region17: #{conv_block_forward.4} parent=5 // pred_check
      %p159 = pneg %p158
    $region18: #{conv_block_forward.4} parent=5 // pred_check_branch
      %161 = sbr.rel (%p159) target = $region20
    $region19: #{conv_block_forward.4} parent=5 // pred_region
      // Predicated region
      $region21: #{conv_block_forward.4} parent=19 // pred_check
        %p162 = pneg %p31
      $region22: #{conv_block_forward.4} parent=19 // pred_check_branch
        %164 = sbr.rel (%p162) target = $region24
      $region23: #{conv_block_forward.4} parent=19 // pred_region
        %s165 = smul.u32 18, %s11
        %s166 = ssub.s32 96, %s165
        %p167 = scmp.lt.s32.totalorder %s166, 18
        %s168 = scalar_select %p167, %s166, 18
        %s169 = smul.u32 64, %s168
        %p170 = scmp.lt.s32.totalorder %s165, 95
        %s171 = scalar_select %p170, %s165, 95
        %s172 = smul.addr %s171, 4
        %s173 = scalar_lea.vmem %s0, %s172
        %s174 = smul.u32 18, %s11
        %s175 = ssub.s32 96, %s174
        %p176 = scmp.lt.s32.totalorder %s175, 18
        %s177 = scalar_select %p176, %s175, 18
        %s178 = smul.u32 64, %s177
      $region24: #{conv_block_forward.4} parent=19 // pred_fallthru
        _
      // Predicated region
      $region25: #{conv_block_forward.4} parent=19 // pred_check
        %p179 = pneg %p61
      $region26: #{conv_block_forward.4} parent=19 // pred_check_branch
        %181 = sbr.rel (%p179) target = $region28
      $region27: #{conv_block_forward.4} parent=19 // pred_region
        %s182 = sadd.s32 %s11, 1
        %s183 = smul.u32 %s182, 3
        %s184 = smul.u32 6, %s183
        %p185 = scmp.lt.s32.totalorder %s184, 95
        %s186 = scalar_select %p185, %s184, 95
        %s187 = smul.addr %s186, 4
        %s188 = scalar_lea.vmem %s1, %s187
        %s189 = sadd.s32 %s11, 1
        %s190 = smul.u32 %s189, 3
        %s191 = smul.u32 6, %s190
      $region28: #{conv_block_forward.4} parent=19 // pred_fallthru
        _
    $region20: #{conv_block_forward.4} parent=5 // pred_fallthru
      _
    %p192 = scmp.le.s32.totalorder 1, %s11
    %p193 = scmp.lt.s32.totalorder %s11, 6
    %p194 = pnand %p192, %p193
    %p195 = pneg %p194
    // Predicated region
    $region29: #{conv_block_forward.4} parent=5 // pred_check
      _
    $region30: #{conv_block_forward.4} parent=5 // pred_check_branch
      %197 = sbr.rel (%p194) target = $region32
    $region31: #{conv_block_forward.4} parent=5 // pred_region
      %s198 = ssub.s32 %s11, 1
      %s199 = smul.u32 18, %s16
      %s200 = ssub.s32 96, %s199
      %p201 = scmp.lt.s32.totalorder %s200, 18
      %s202 = scalar_select %p201, %s200, 18
      %s203 = smul.u32 64, %s202
      %p204 = scmp.lt.s32.totalorder %s199, 95
      %s205 = scalar_select %p204, %s199, 95
      %s206 = smul.addr %s205, 4
      %s207 = scalar_lea.vmem %s0, %s206
      %p208 = pneg %p37
      %p209 = pneg %p34
      %s210 = sadd.s32 %s16, 1
      %s211 = smul.u32 %s210, 3
      %s212 = smul.u32 6, %s211
      %p213 = scmp.lt.s32.totalorder %s212, 95
      %s214 = scalar_select %p213, %s212, 95
      %s215 = smul.addr %s214, 4
      %s216 = scalar_lea.vmem %s1, %s215
      %p217 = pneg %p67
      %p218 = pneg %p64
      %p219 = pneg %p88
      %p220 = pneg %p85
      %p221 = pneg %p114
      %p222 = pneg %p111
      %s223 = smul.u32 18, %s16
      %p224 = scmp.lt.s32.totalorder %s223, 89
      %s225 = scalar_select %p224, %s223, 89
      %s226 = smul.addr %s225, 4
      %s227 = scalar_lea.vmem %s3, %s226
      %p228 = pneg %p140
      %p229 = pneg %p137
      %p230 = scmp.lt.s32.totalorder %s16, 4
      %s231 = scalar_select %p230, %s16, 4
      %s232 = smul.addr %s231, 8
      %s233 = scalar_lea.vmem %s4, %s232
      %s234 = smul.u32 18, %s16
      %s235 = ssub.s32 96, %s234
      %p236 = scmp.lt.s32.totalorder %s235, 18
      %s237 = scalar_select %p236, %s235, 18
      %s238 = smul.u32 64, %s237
      %p239 = scmp.lt.s32.totalorder %s234, 95
      %s240 = scalar_select %p239, %s234, 95
      %s241 = smul.addr %s240, 4
      %s242 = scalar_lea.vmem %s0, %s241
      %s243 = smul.u32 18, %s16
      %s244 = ssub.s32 96, %s243
      %p245 = scmp.lt.s32.totalorder %s244, 18
      %s246 = scalar_select %p245, %s244, 18
      %s247 = smul.u32 64, %s246
      %s248 = sadd.s32 %s16, 1
      %s249 = smul.u32 %s248, 3
      %s250 = smul.u32 6, %s249
      %p251 = scmp.lt.s32.totalorder %s250, 95
      %s252 = scalar_select %p251, %s250, 95
      %s253 = smul.addr %s252, 4
      %s254 = scalar_lea.vmem %s1, %s253
      %s255 = sadd.s32 %s16, 1
      %s256 = smul.u32 %s255, 3
      %s257 = smul.u32 6, %s256
      %s258 = smul.u32 18, %s16
      %p259 = scmp.lt.s32.totalorder %s258, 89
      %s260 = scalar_select %p259, %s258, 89
      %s261 = smul.addr %s260, 4
      %s262 = scalar_lea.vmem %s3, %s261
      %s263 = smul.u32 18, %s16
      %p264 = scmp.lt.s32.totalorder %s16, 4
      %s265 = scalar_select %p264, %s16, 4
      %s266 = smul.addr %s265, 8
      %s267 = scalar_lea.vmem %s4, %s266
      %v269 = vld [vmem:[%s242] sm:$0xf]
      %v270 = vld [vmem:[%s242 + $0x4] sm:$0xf]
      %v271 = vld [vmem:[%s242 + $0x8] sm:$0xf]
      %v272 = vld [vmem:[%s242 + $0xc] sm:$0xf]
      %v273 = vld [vmem:[%s242 + $0x10] sm:$0xf]
      %v274 = vld [vmem:[%s242 + $0x14] sm:$0xf]
      %v275 = vld [vmem:[%s242 + $0x18] sm:$0xf]
      %v276 = vld [vmem:[%s242 + $0x1c] sm:$0xf]
      %v277 = vld [vmem:[%s242 + $0x20] sm:$0xf]
      %v278 = vld [vmem:[%s242 + $0x24] sm:$0xf]
      %v279 = vld [vmem:[%s242 + $0x28] sm:$0xf]
      %v280 = vld [vmem:[%s242 + $0x2c] sm:$0xf]
      %v281 = vld [vmem:[%s242 + $0x30] sm:$0xf]
      %v282 = vld [vmem:[%s242 + $0x34] sm:$0xf]
      %v283 = vld [vmem:[%s242 + $0x38] sm:$0xf]
      %v284 = vld [vmem:[%s242 + $0x3c] sm:$0xf]
      %v285 = vld [vmem:[%s242 + $0x40] sm:$0xf]
      %v286 = vld [vmem:[%s242 + $0x44] sm:$0xf]
      %v287 = vunpack.c.l.bf16 %v269
      %v288 = vunpack.c.l.bf16 %v270
      %v289 = vunpack.c.l.bf16 %v271
      %v290 = vunpack.c.l.bf16 %v272
      %v291 = vunpack.c.l.bf16 %v273
      %v292 = vunpack.c.l.bf16 %v274
      %v293 = vunpack.c.l.bf16 %v275
      %v294 = vunpack.c.l.bf16 %v276
      %v295 = vunpack.c.l.bf16 %v277
      %v296 = vunpack.c.l.bf16 %v278
      %v297 = vunpack.c.l.bf16 %v279
      %v298 = vunpack.c.l.bf16 %v280
      %v299 = vunpack.c.l.bf16 %v281
      %v300 = vunpack.c.l.bf16 %v282
      %v301 = vunpack.c.l.bf16 %v283
      %v302 = vunpack.c.l.bf16 %v284
      %v303 = vunpack.c.l.bf16 %v285
      %v304 = vunpack.c.l.bf16 %v286
      %v305 = vld [vmem:[%s254] sm:$0xf]
      %v306 = vld [vmem:[%s254 + $0x4] sm:$0xf]
      %v307 = vld [vmem:[%s254 + $0x8] sm:$0xf]
      %v308 = vld [vmem:[%s254 + $0xc] sm:$0xf]
      %v309 = vld [vmem:[%s254 + $0x10] sm:$0xf]
      %v310 = vunpack.c.l.bf16 %v305
      %v311 = vunpack.c.l.bf16 %v306
      %v312 = vunpack.c.l.bf16 %v307
      %v313 = vunpack.c.l.bf16 %v308
      %v314 = vunpack.c.l.bf16 %v309
      %vm334 = vcmask 1046528
      %v335 = vrot.slane %v287, 1
      %v336 = vrot.slane %v288, 1
      %v337 = vsel %vm334, %v335, %v336
      %v338 = vrot.slane %v289, 1
      %v339 = vsel %vm334, %v336, %v338
      %v340 = vrot.slane %v290, 1
      %v341 = vsel %vm334, %v338, %v340
      %v342 = vrot.slane %v291, 1
      %v343 = vsel %vm334, %v340, %v342
      %v344 = vrot.slane %v292, 1
      %v345 = vsel %vm334, %v342, %v344
      %v346 = vrot.slane %v293, 1
      %v347 = vsel %vm334, %v344, %v346
      %v348 = vrot.slane %v294, 1
      %v349 = vsel %vm334, %v346, %v348
      %v350 = vrot.slane %v295, 1
      %v351 = vsel %vm334, %v348, %v350
      %v352 = vrot.slane %v296, 1
      %v353 = vsel %vm334, %v350, %v352
      %v354 = vrot.slane %v297, 1
      %v355 = vsel %vm334, %v352, %v354
      %v356 = vrot.slane %v298, 1
      %v357 = vsel %vm334, %v354, %v356
      %v358 = vrot.slane %v299, 1
      %v359 = vsel %vm334, %v356, %v358
      %v360 = vrot.slane %v300, 1
      %v361 = vsel %vm334, %v358, %v360
      %v362 = vrot.slane %v301, 1
      %v363 = vsel %vm334, %v360, %v362
      %v364 = vrot.slane %v302, 1
      %v365 = vsel %vm334, %v362, %v364
      %v366 = vrot.slane %v303, 1
      %v367 = vsel %vm334, %v364, %v366
      %v368 = vrot.slane %v304, 1
      %v369 = vsel %vm334, %v366, %v368
      %v370 = vrot.slane %v310, 1
      %v371 = vsel %vm334, %v368, %v370
      %372 = vrot.lane.b32.xlu0 %v337, 4
      %v373 = vpop.permute.xlu0 %372
      %374 = vrot.lane.b32.xlu0 %v339, 4
      %v375 = vpop.permute.xlu0 %374
      %376 = vrot.lane.b32.xlu0 %v341, 4
      %v377 = vpop.permute.xlu0 %376
      %378 = vrot.lane.b32.xlu0 %v343, 4
      %v379 = vpop.permute.xlu0 %378
      %380 = vrot.lane.b32.xlu0 %v345, 4
      %v381 = vpop.permute.xlu0 %380
      %382 = vrot.lane.b32.xlu0 %v347, 4
      %v383 = vpop.permute.xlu0 %382
      %384 = vrot.lane.b32.xlu0 %v349, 4
      %v385 = vpop.permute.xlu0 %384
      %386 = vrot.lane.b32.xlu0 %v351, 4
      %v387 = vpop.permute.xlu0 %386
      %388 = vrot.lane.b32.xlu0 %v353, 4
      %v389 = vpop.permute.xlu0 %388
      %390 = vrot.lane.b32.xlu0 %v355, 4
      %v391 = vpop.permute.xlu0 %390
      %392 = vrot.lane.b32.xlu0 %v357, 4
      %v393 = vpop.permute.xlu0 %392
      %394 = vrot.lane.b32.xlu0 %v359, 4
      %v395 = vpop.permute.xlu0 %394
      %396 = vrot.lane.b32.xlu0 %v361, 4
      %v397 = vpop.permute.xlu0 %396
      %398 = vrot.lane.b32.xlu0 %v363, 4
      %v399 = vpop.permute.xlu0 %398
      %400 = vrot.lane.b32.xlu0 %v365, 4
      %v401 = vpop.permute.xlu0 %400
      %402 = vrot.lane.b32.xlu0 %v367, 4
      %v403 = vpop.permute.xlu0 %402
      %404 = vrot.lane.b32.xlu0 %v369, 4
      %v405 = vpop.permute.xlu0 %404
      %406 = vrot.lane.b32.xlu0 %v371, 4
      %v407 = vpop.permute.xlu0 %406
      %vm426 = vcmask 1045504
      %v427 = vrot.slane %v287, 2
      %v428 = vrot.slane %v288, 2
      %v429 = vsel %vm426, %v427, %v428
      %v430 = vrot.slane %v289, 2
      %v431 = vsel %vm426, %v428, %v430
      %v432 = vrot.slane %v290, 2
      %v433 = vsel %vm426, %v430, %v432
      %v434 = vrot.slane %v291, 2
      %v435 = vsel %vm426, %v432, %v434
      %v436 = vrot.slane %v292, 2
      %v437 = vsel %vm426, %v434, %v436
      %v438 = vrot.slane %v293, 2
      %v439 = vsel %vm426, %v436, %v438
      %v440 = vrot.slane %v294, 2
      %v441 = vsel %vm426, %v438, %v440
      %v442 = vrot.slane %v295, 2
      %v443 = vsel %vm426, %v440, %v442
      %v444 = vrot.slane %v296, 2
      %v445 = vsel %vm426, %v442, %v444
      %v446 = vrot.slane %v297, 2
      %v447 = vsel %vm426, %v444, %v446
      %v448 = vrot.slane %v298, 2
      %v449 = vsel %vm426, %v446, %v448
      %v450 = vrot.slane %v299, 2
      %v451 = vsel %vm426, %v448, %v450
      %v452 = vrot.slane %v300, 2
      %v453 = vsel %vm426, %v450, %v452
      %v454 = vrot.slane %v301, 2
      %v455 = vsel %vm426, %v452, %v454
      %v456 = vrot.slane %v302, 2
      %v457 = vsel %vm426, %v454, %v456
      %v458 = vrot.slane %v303, 2
      %v459 = vsel %vm426, %v456, %v458
      %v460 = vrot.slane %v304, 2
      %v461 = vsel %vm426, %v458, %v460
      %v462 = vrot.slane %v310, 2
      %v463 = vsel %vm426, %v460, %v462
      %464 = vrot.lane.b32.xlu0 %v429, 8
      %v465 = vpop.permute.xlu0 %464
      %466 = vrot.lane.b32.xlu0 %v431, 8
      %v467 = vpop.permute.xlu0 %466
      %468 = vrot.lane.b32.xlu0 %v433, 8
      %v469 = vpop.permute.xlu0 %468
      %470 = vrot.lane.b32.xlu0 %v435, 8
      %v471 = vpop.permute.xlu0 %470
      %472 = vrot.lane.b32.xlu0 %v437, 8
      %v473 = vpop.permute.xlu0 %472
      %474 = vrot.lane.b32.xlu0 %v439, 8
      %v475 = vpop.permute.xlu0 %474
      %476 = vrot.lane.b32.xlu0 %v441, 8
      %v477 = vpop.permute.xlu0 %476
      %478 = vrot.lane.b32.xlu0 %v443, 8
      %v479 = vpop.permute.xlu0 %478
      %480 = vrot.lane.b32.xlu0 %v445, 8
      %v481 = vpop.permute.xlu0 %480
      %482 = vrot.lane.b32.xlu0 %v447, 8
      %v483 = vpop.permute.xlu0 %482
      %484 = vrot.lane.b32.xlu0 %v449, 8
      %v485 = vpop.permute.xlu0 %484
      %486 = vrot.lane.b32.xlu0 %v451, 8
      %v487 = vpop.permute.xlu0 %486
      %488 = vrot.lane.b32.xlu0 %v453, 8
      %v489 = vpop.permute.xlu0 %488
      %490 = vrot.lane.b32.xlu0 %v455, 8
      %v491 = vpop.permute.xlu0 %490
      %492 = vrot.lane.b32.xlu0 %v457, 8
      %v493 = vpop.permute.xlu0 %492
      %494 = vrot.lane.b32.xlu0 %v459, 8
      %v495 = vpop.permute.xlu0 %494
      %496 = vrot.lane.b32.xlu0 %v461, 8
      %v497 = vpop.permute.xlu0 %496
      %498 = vrot.lane.b32.xlu0 %v463, 8
      %v499 = vpop.permute.xlu0 %498
      %v520 = vrot.slane %v311, 2
      %v521 = vsel %vm426, %v462, %v520
      %v522 = vrot.slane %v312, 2
      %v523 = vsel %vm426, %v520, %v522
      %524 = vrot.lane.b32.xlu0 %v433, 12
      %v525 = vpop.permute.xlu0 %524
      %526 = vrot.lane.b32.xlu0 %v435, 12
      %v527 = vpop.permute.xlu0 %526
      %528 = vrot.lane.b32.xlu0 %v437, 12
      %v529 = vpop.permute.xlu0 %528
      %530 = vrot.lane.b32.xlu0 %v439, 12
      %v531 = vpop.permute.xlu0 %530
      %532 = vrot.lane.b32.xlu0 %v441, 12
      %v533 = vpop.permute.xlu0 %532
      %534 = vrot.lane.b32.xlu0 %v443, 12
      %v535 = vpop.permute.xlu0 %534
      %536 = vrot.lane.b32.xlu0 %v445, 12
      %v537 = vpop.permute.xlu0 %536
      %538 = vrot.lane.b32.xlu0 %v447, 12
      %v539 = vpop.permute.xlu0 %538
      %540 = vrot.lane.b32.xlu0 %v449, 12
      %v541 = vpop.permute.xlu0 %540
      %542 = vrot.lane.b32.xlu0 %v451, 12
      %v543 = vpop.permute.xlu0 %542
      %544 = vrot.lane.b32.xlu0 %v453, 12
      %v545 = vpop.permute.xlu0 %544
      %546 = vrot.lane.b32.xlu0 %v455, 12
      %v547 = vpop.permute.xlu0 %546
      %548 = vrot.lane.b32.xlu0 %v457, 12
      %v549 = vpop.permute.xlu0 %548
      %550 = vrot.lane.b32.xlu0 %v459, 12
      %v551 = vpop.permute.xlu0 %550
      %552 = vrot.lane.b32.xlu0 %v461, 12
      %v553 = vpop.permute.xlu0 %552
      %554 = vrot.lane.b32.xlu0 %v463, 12
      %v555 = vpop.permute.xlu0 %554
      %556 = vrot.lane.b32.xlu0 %v521, 12
      %v557 = vpop.permute.xlu0 %556
      %558 = vrot.lane.b32.xlu0 %v523, 12
      %v559 = vpop.permute.xlu0 %558
      %vm578 = vcmask 1044480
      %v579 = vrot.slane %v289, 3
      %v580 = vrot.slane %v290, 3
      %v581 = vsel %vm578, %v579, %v580
      %v582 = vrot.slane %v291, 3
      %v583 = vsel %vm578, %v580, %v582
      %v584 = vrot.slane %v292, 3
      %v585 = vsel %vm578, %v582, %v584
      %v586 = vrot.slane %v293, 3
      %v587 = vsel %vm578, %v584, %v586
      %v588 = vrot.slane %v294, 3
      %v589 = vsel %vm578, %v586, %v588
      %v590 = vrot.slane %v295, 3
      %v591 = vsel %vm578, %v588, %v590
      %v592 = vrot.slane %v296, 3
      %v593 = vsel %vm578, %v590, %v592
      %v594 = vrot.slane %v297, 3
      %v595 = vsel %vm578, %v592, %v594
      %v596 = vrot.slane %v298, 3
      %v597 = vsel %vm578, %v594, %v596
      %v598 = vrot.slane %v299, 3
      %v599 = vsel %vm578, %v596, %v598
      %v600 = vrot.slane %v300, 3
      %v601 = vsel %vm578, %v598, %v600
      %v602 = vrot.slane %v301, 3
      %v603 = vsel %vm578, %v600, %v602
      %v604 = vrot.slane %v302, 3
      %v605 = vsel %vm578, %v602, %v604
      %v606 = vrot.slane %v303, 3
      %v607 = vsel %vm578, %v604, %v606
      %v608 = vrot.slane %v304, 3
      %v609 = vsel %vm578, %v606, %v608
      %v610 = vrot.slane %v310, 3
      %v611 = vsel %vm578, %v608, %v610
      %v612 = vrot.slane %v311, 3
      %v613 = vsel %vm578, %v610, %v612
      %v614 = vrot.slane %v312, 3
      %v615 = vsel %vm578, %v612, %v614
      %616 = vrot.lane.b32.xlu0 %v581, 16
      %v617 = vpop.permute.xlu0 %616
      %618 = vrot.lane.b32.xlu0 %v583, 16
      %v619 = vpop.permute.xlu0 %618
      %620 = vrot.lane.b32.xlu0 %v585, 16
      %v621 = vpop.permute.xlu0 %620
      %622 = vrot.lane.b32.xlu0 %v587, 16
      %v623 = vpop.permute.xlu0 %622
      %624 = vrot.lane.b32.xlu0 %v589, 16
      %v625 = vpop.permute.xlu0 %624
      %626 = vrot.lane.b32.xlu0 %v591, 16
      %v627 = vpop.permute.xlu0 %626
      %628 = vrot.lane.b32.xlu0 %v593, 16
      %v629 = vpop.permute.xlu0 %628
      %630 = vrot.lane.b32.xlu0 %v595, 16
      %v631 = vpop.permute.xlu0 %630
      %632 = vrot.lane.b32.xlu0 %v597, 16
      %v633 = vpop.permute.xlu0 %632
      %634 = vrot.lane.b32.xlu0 %v599, 16
      %v635 = vpop.permute.xlu0 %634
      %636 = vrot.lane.b32.xlu0 %v601, 16
      %v637 = vpop.permute.xlu0 %636
      %638 = vrot.lane.b32.xlu0 %v603, 16
      %v639 = vpop.permute.xlu0 %638
      %640 = vrot.lane.b32.xlu0 %v605, 16
      %v641 = vpop.permute.xlu0 %640
      %642 = vrot.lane.b32.xlu0 %v607, 16
      %v643 = vpop.permute.xlu0 %642
      %644 = vrot.lane.b32.xlu0 %v609, 16
      %v645 = vpop.permute.xlu0 %644
      %646 = vrot.lane.b32.xlu0 %v611, 16
      %v647 = vpop.permute.xlu0 %646
      %648 = vrot.lane.b32.xlu0 %v613, 16
      %v649 = vpop.permute.xlu0 %648
      %650 = vrot.lane.b32.xlu0 %v615, 16
      %v651 = vpop.permute.xlu0 %650
      %vm670 = vcmask 1043456
      %v671 = vrot.slane %v289, 4
      %v672 = vrot.slane %v290, 4
      %v673 = vsel %vm670, %v671, %v672
      %v674 = vrot.slane %v291, 4
      %v675 = vsel %vm670, %v672, %v674
      %v676 = vrot.slane %v292, 4
      %v677 = vsel %vm670, %v674, %v676
      %v678 = vrot.slane %v293, 4
      %v679 = vsel %vm670, %v676, %v678
      %v680 = vrot.slane %v294, 4
      %v681 = vsel %vm670, %v678, %v680
      %v682 = vrot.slane %v295, 4
      %v683 = vsel %vm670, %v680, %v682
      %v684 = vrot.slane %v296, 4
      %v685 = vsel %vm670, %v682, %v684
      %v686 = vrot.slane %v297, 4
      %v687 = vsel %vm670, %v684, %v686
      %v688 = vrot.slane %v298, 4
      %v689 = vsel %vm670, %v686, %v688
      %v690 = vrot.slane %v299, 4
      %v691 = vsel %vm670, %v688, %v690
      %v692 = vrot.slane %v300, 4
      %v693 = vsel %vm670, %v690, %v692
      %v694 = vrot.slane %v301, 4
      %v695 = vsel %vm670, %v692, %v694
      %v696 = vrot.slane %v302, 4
      %v697 = vsel %vm670, %v694, %v696
      %v698 = vrot.slane %v303, 4
      %v699 = vsel %vm670, %v696, %v698
      %v700 = vrot.slane %v304, 4
      %v701 = vsel %vm670, %v698, %v700
      %v702 = vrot.slane %v310, 4
      %v703 = vsel %vm670, %v700, %v702
      %v704 = vrot.slane %v311, 4
      %v705 = vsel %vm670, %v702, %v704
      %v706 = vrot.slane %v312, 4
      %v707 = vsel %vm670, %v704, %v706
      %708 = vrot.lane.b32.xlu0 %v673, 20
      %v709 = vpop.permute.xlu0 %708
      %710 = vrot.lane.b32.xlu0 %v675, 20
      %v711 = vpop.permute.xlu0 %710
      %712 = vrot.lane.b32.xlu0 %v677, 20
      %v713 = vpop.permute.xlu0 %712
      %714 = vrot.lane.b32.xlu0 %v679, 20
      %v715 = vpop.permute.xlu0 %714
      %716 = vrot.lane.b32.xlu0 %v681, 20
      %v717 = vpop.permute.xlu0 %716
      %718 = vrot.lane.b32.xlu0 %v683, 20
      %v719 = vpop.permute.xlu0 %718
      %720 = vrot.lane.b32.xlu0 %v685, 20
      %v721 = vpop.permute.xlu0 %720
      %722 = vrot.lane.b32.xlu0 %v687, 20
      %v723 = vpop.permute.xlu0 %722
      %724 = vrot.lane.b32.xlu0 %v689, 20
      %v725 = vpop.permute.xlu0 %724
      %726 = vrot.lane.b32.xlu0 %v691, 20
      %v727 = vpop.permute.xlu0 %726
      %728 = vrot.lane.b32.xlu0 %v693, 20
      %v729 = vpop.permute.xlu0 %728
      %730 = vrot.lane.b32.xlu0 %v695, 20
      %v731 = vpop.permute.xlu0 %730
      %732 = vrot.lane.b32.xlu0 %v697, 20
      %v733 = vpop.permute.xlu0 %732
      %734 = vrot.lane.b32.xlu0 %v699, 20
      %v735 = vpop.permute.xlu0 %734
      %736 = vrot.lane.b32.xlu0 %v701, 20
      %v737 = vpop.permute.xlu0 %736
      %738 = vrot.lane.b32.xlu0 %v703, 20
      %v739 = vpop.permute.xlu0 %738
      %740 = vrot.lane.b32.xlu0 %v705, 20
      %v741 = vpop.permute.xlu0 %740
      %742 = vrot.lane.b32.xlu0 %v707, 20
      %v743 = vpop.permute.xlu0 %742
      %v764 = vrot.slane %v313, 4
      %v765 = vsel %vm670, %v706, %v764
      %v766 = vrot.slane %v314, 4
      %v767 = vsel %vm670, %v764, %v766
      %768 = vrot.lane.b32.xlu0 %v677, 24
      %v769 = vpop.permute.xlu0 %768
      %770 = vrot.lane.b32.xlu0 %v679, 24
      %v771 = vpop.permute.xlu0 %770
      %772 = vrot.lane.b32.xlu0 %v681, 24
      %v773 = vpop.permute.xlu0 %772
      %774 = vrot.lane.b32.xlu0 %v683, 24
      %v775 = vpop.permute.xlu0 %774
      %776 = vrot.lane.b32.xlu0 %v685, 24
      %v777 = vpop.permute.xlu0 %776
      %778 = vrot.lane.b32.xlu0 %v687, 24
      %v779 = vpop.permute.xlu0 %778
      %780 = vrot.lane.b32.xlu0 %v689, 24
      %v781 = vpop.permute.xlu0 %780
      %782 = vrot.lane.b32.xlu0 %v691, 24
      %v783 = vpop.permute.xlu0 %782
      %784 = vrot.lane.b32.xlu0 %v693, 24
      %v785 = vpop.permute.xlu0 %784
      %786 = vrot.lane.b32.xlu0 %v695, 24
      %v787 = vpop.permute.xlu0 %786
      %788 = vrot.lane.b32.xlu0 %v697, 24
      %v789 = vpop.permute.xlu0 %788
      %790 = vrot.lane.b32.xlu0 %v699, 24
      %v791 = vpop.permute.xlu0 %790
      %792 = vrot.lane.b32.xlu0 %v701, 24
      %v793 = vpop.permute.xlu0 %792
      %794 = vrot.lane.b32.xlu0 %v703, 24
      %v795 = vpop.permute.xlu0 %794
      %796 = vrot.lane.b32.xlu0 %v705, 24
      %v797 = vpop.permute.xlu0 %796
      %798 = vrot.lane.b32.xlu0 %v707, 24
      %v799 = vpop.permute.xlu0 %798
      %800 = vrot.lane.b32.xlu0 %v765, 24
      %v801 = vpop.permute.xlu0 %800
      %802 = vrot.lane.b32.xlu0 %v767, 24
      %v803 = vpop.permute.xlu0 %802
      %vm822 = vcmask 1042432
      %v823 = vrot.slane %v291, 5
      %v824 = vrot.slane %v292, 5
      %v825 = vsel %vm822, %v823, %v824
      %v826 = vrot.slane %v293, 5
      %v827 = vsel %vm822, %v824, %v826
      %v828 = vrot.slane %v294, 5
      %v829 = vsel %vm822, %v826, %v828
      %v830 = vrot.slane %v295, 5
      %v831 = vsel %vm822, %v828, %v830
      %v832 = vrot.slane %v296, 5
      %v833 = vsel %vm822, %v830, %v832
      %v834 = vrot.slane %v297, 5
      %v835 = vsel %vm822, %v832, %v834
      %v836 = vrot.slane %v298, 5
      %v837 = vsel %vm822, %v834, %v836
      %v838 = vrot.slane %v299, 5
      %v839 = vsel %vm822, %v836, %v838
      %v840 = vrot.slane %v300, 5
      %v841 = vsel %vm822, %v838, %v840
      %v842 = vrot.slane %v301, 5
      %v843 = vsel %vm822, %v840, %v842
      %v844 = vrot.slane %v302, 5
      %v845 = vsel %vm822, %v842, %v844
      %v846 = vrot.slane %v303, 5
      %v847 = vsel %vm822, %v844, %v846
      %v848 = vrot.slane %v304, 5
      %v849 = vsel %vm822, %v846, %v848
      %v850 = vrot.slane %v310, 5
      %v851 = vsel %vm822, %v848, %v850
      %v852 = vrot.slane %v311, 5
      %v853 = vsel %vm822, %v850, %v852
      %v854 = vrot.slane %v312, 5
      %v855 = vsel %vm822, %v852, %v854
      %v856 = vrot.slane %v313, 5
      %v857 = vsel %vm822, %v854, %v856
      %v858 = vrot.slane %v314, 5
      %v859 = vsel %vm822, %v856, %v858
      %860 = vrot.lane.b32.xlu0 %v825, 28
      %v861 = vpop.permute.xlu0 %860
      %862 = vrot.lane.b32.xlu0 %v827, 28
      %v863 = vpop.permute.xlu0 %862
      %864 = vrot.lane.b32.xlu0 %v829, 28
      %v865 = vpop.permute.xlu0 %864
      %866 = vrot.lane.b32.xlu0 %v831, 28
      %v867 = vpop.permute.xlu0 %866
      %868 = vrot.lane.b32.xlu0 %v833, 28
      %v869 = vpop.permute.xlu0 %868
      %870 = vrot.lane.b32.xlu0 %v835, 28
      %v871 = vpop.permute.xlu0 %870
      %872 = vrot.lane.b32.xlu0 %v837, 28
      %v873 = vpop.permute.xlu0 %872
      %874 = vrot.lane.b32.xlu0 %v839, 28
      %v875 = vpop.permute.xlu0 %874
      %876 = vrot.lane.b32.xlu0 %v841, 28
      %v877 = vpop.permute.xlu0 %876
      %878 = vrot.lane.b32.xlu0 %v843, 28
      %v879 = vpop.permute.xlu0 %878
      %880 = vrot.lane.b32.xlu0 %v845, 28
      %v881 = vpop.permute.xlu0 %880
      %882 = vrot.lane.b32.xlu0 %v847, 28
      %v883 = vpop.permute.xlu0 %882
      %884 = vrot.lane.b32.xlu0 %v849, 28
      %v885 = vpop.permute.xlu0 %884
      %886 = vrot.lane.b32.xlu0 %v851, 28
      %v887 = vpop.permute.xlu0 %886
      %888 = vrot.lane.b32.xlu0 %v853, 28
      %v889 = vpop.permute.xlu0 %888
      %890 = vrot.lane.b32.xlu0 %v855, 28
      %v891 = vpop.permute.xlu0 %890
      %892 = vrot.lane.b32.xlu0 %v857, 28
      %v893 = vpop.permute.xlu0 %892
      %894 = vrot.lane.b32.xlu0 %v859, 28
      %v895 = vpop.permute.xlu0 %894
      %vm914 = vcmask 1041408
      %v915 = vrot.slane %v291, 6
      %v916 = vrot.slane %v292, 6
      %v917 = vsel %vm914, %v915, %v916
      %v918 = vrot.slane %v293, 6
      %v919 = vsel %vm914, %v916, %v918
      %v920 = vrot.slane %v294, 6
      %v921 = vsel %vm914, %v918, %v920
      %v922 = vrot.slane %v295, 6
      %v923 = vsel %vm914, %v920, %v922
      %v924 = vrot.slane %v296, 6
      %v925 = vsel %vm914, %v922, %v924
      %v926 = vrot.slane %v297, 6
      %v927 = vsel %vm914, %v924, %v926
      %v928 = vrot.slane %v298, 6
      %v929 = vsel %vm914, %v926, %v928
      %v930 = vrot.slane %v299, 6
      %v931 = vsel %vm914, %v928, %v930
      %v932 = vrot.slane %v300, 6
      %v933 = vsel %vm914, %v930, %v932
      %v934 = vrot.slane %v301, 6
      %v935 = vsel %vm914, %v932, %v934
      %v936 = vrot.slane %v302, 6
      %v937 = vsel %vm914, %v934, %v936
      %v938 = vrot.slane %v303, 6
      %v939 = vsel %vm914, %v936, %v938
      %v940 = vrot.slane %v304, 6
      %v941 = vsel %vm914, %v938, %v940
      %v942 = vrot.slane %v310, 6
      %v943 = vsel %vm914, %v940, %v942
      %v944 = vrot.slane %v311, 6
      %v945 = vsel %vm914, %v942, %v944
      %v946 = vrot.slane %v312, 6
      %v947 = vsel %vm914, %v944, %v946
      %v948 = vrot.slane %v313, 6
      %v949 = vsel %vm914, %v946, %v948
      %v950 = vrot.slane %v314, 6
      %v951 = vsel %vm914, %v948, %v950
      %952 = vrot.lane.b32.xlu0 %v917, 32
      %v953 = vpop.permute.xlu0 %952
      %954 = vrot.lane.b32.xlu0 %v919, 32
      %v955 = vpop.permute.xlu0 %954
      %956 = vrot.lane.b32.xlu0 %v921, 32
      %v957 = vpop.permute.xlu0 %956
      %958 = vrot.lane.b32.xlu0 %v923, 32
      %v959 = vpop.permute.xlu0 %958
      %960 = vrot.lane.b32.xlu0 %v925, 32
      %v961 = vpop.permute.xlu0 %960
      %962 = vrot.lane.b32.xlu0 %v927, 32
      %v963 = vpop.permute.xlu0 %962
      %964 = vrot.lane.b32.xlu0 %v929, 32
      %v965 = vpop.permute.xlu0 %964
      %966 = vrot.lane.b32.xlu0 %v931, 32
      %v967 = vpop.permute.xlu0 %966
      %968 = vrot.lane.b32.xlu0 %v933, 32
      %v969 = vpop.permute.xlu0 %968
      %970 = vrot.lane.b32.xlu0 %v935, 32
      %v971 = vpop.permute.xlu0 %970
      %972 = vrot.lane.b32.xlu0 %v937, 32
      %v973 = vpop.permute.xlu0 %972
      %974 = vrot.lane.b32.xlu0 %v939, 32
      %v975 = vpop.permute.xlu0 %974
      %976 = vrot.lane.b32.xlu0 %v941, 32
      %v977 = vpop.permute.xlu0 %976
      %978 = vrot.lane.b32.xlu0 %v943, 32
      %v979 = vpop.permute.xlu0 %978
      %980 = vrot.lane.b32.xlu0 %v945, 32
      %v981 = vpop.permute.xlu0 %980
      %982 = vrot.lane.b32.xlu0 %v947, 32
      %v983 = vpop.permute.xlu0 %982
      %984 = vrot.lane.b32.xlu0 %v949, 32
      %v985 = vpop.permute.xlu0 %984
      %986 = vrot.lane.b32.xlu0 %v951, 32
      %v987 = vpop.permute.xlu0 %986
      %vm1006 = vcmask 31744
      %v1007 = vsel %vm1006, %v287, %v373
      %v1008 = vsel %vm1006, %v288, %v375
      %v1009 = vsel %vm1006, %v289, %v377
      %v1010 = vsel %vm1006, %v290, %v379
      %v1011 = vsel %vm1006, %v291, %v381
      %v1012 = vsel %vm1006, %v292, %v383
      %v1013 = vsel %vm1006, %v293, %v385
      %v1014 = vsel %vm1006, %v294, %v387
      %v1015 = vsel %vm1006, %v295, %v389
      %v1016 = vsel %vm1006, %v296, %v391
      %v1017 = vsel %vm1006, %v297, %v393
      %v1018 = vsel %vm1006, %v298, %v395
      %v1019 = vsel %vm1006, %v299, %v397
      %v1020 = vsel %vm1006, %v300, %v399
      %v1021 = vsel %vm1006, %v301, %v401
      %v1022 = vsel %vm1006, %v302, %v403
      %v1023 = vsel %vm1006, %v303, %v405
      %v1024 = vsel %vm1006, %v304, %v407
      %vm1025 = vcmask 64512
      %v1026 = vsel %vm1025, %v1007, %v465
      %v1027 = vsel %vm1025, %v1008, %v467
      %v1028 = vsel %vm1025, %v1009, %v469
      %v1029 = vsel %vm1025, %v1010, %v471
      %v1030 = vsel %vm1025, %v1011, %v473
      %v1031 = vsel %vm1025, %v1012, %v475
      %v1032 = vsel %vm1025, %v1013, %v477
      %v1033 = vsel %vm1025, %v1014, %v479
      %v1034 = vsel %vm1025, %v1015, %v481
      %v1035 = vsel %vm1025, %v1016, %v483
      %v1036 = vsel %vm1025, %v1017, %v485
      %v1037 = vsel %vm1025, %v1018, %v487
      %v1038 = vsel %vm1025, %v1019, %v489
      %v1039 = vsel %vm1025, %v1020, %v491
      %v1040 = vsel %vm1025, %v1021, %v493
      %v1041 = vsel %vm1025, %v1022, %v495
      %v1042 = vsel %vm1025, %v1023, %v497
      %v1043 = vsel %vm1025, %v1024, %v499
      %vm1044 = vcmask 97280
      %v1045 = vsel %vm1044, %v1026, %v525
      %v1046 = vsel %vm1044, %v1027, %v527
      %v1047 = vsel %vm1044, %v1028, %v529
      %v1048 = vsel %vm1044, %v1029, %v531
      %v1049 = vsel %vm1044, %v1030, %v533
      %v1050 = vsel %vm1044, %v1031, %v535
      %v1051 = vsel %vm1044, %v1032, %v537
      %v1052 = vsel %vm1044, %v1033, %v539
      %v1053 = vsel %vm1044, %v1034, %v541
      %v1054 = vsel %vm1044, %v1035, %v543
      %v1055 = vsel %vm1044, %v1036, %v545
      %v1056 = vsel %vm1044, %v1037, %v547
      %v1057 = vsel %vm1044, %v1038, %v549
      %v1058 = vsel %vm1044, %v1039, %v551
      %v1059 = vsel %vm1044, %v1040, %v553
      %v1060 = vsel %vm1044, %v1041, %v555
      %v1061 = vsel %vm1044, %v1042, %v557
      %v1062 = vsel %vm1044, %v1043, %v559
      %vm1063 = vcmask 130048
      %v1064 = vsel %vm1063, %v1045, %v617
      %v1065 = vsel %vm1063, %v1046, %v619
      %v1066 = vsel %vm1063, %v1047, %v621
      %v1067 = vsel %vm1063, %v1048, %v623
      %v1068 = vsel %vm1063, %v1049, %v625
      %v1069 = vsel %vm1063, %v1050, %v627
      %v1070 = vsel %vm1063, %v1051, %v629
      %v1071 = vsel %vm1063, %v1052, %v631
      %v1072 = vsel %vm1063, %v1053, %v633
      %v1073 = vsel %vm1063, %v1054, %v635
      %v1074 = vsel %vm1063, %v1055, %v637
      %v1075 = vsel %vm1063, %v1056, %v639
      %v1076 = vsel %vm1063, %v1057, %v641
      %v1077 = vsel %vm1063, %v1058, %v643
      %v1078 = vsel %vm1063, %v1059, %v645
      %v1079 = vsel %vm1063, %v1060, %v647
      %v1080 = vsel %vm1063, %v1061, %v649
      %v1081 = vsel %vm1063, %v1062, %v651
      %vm1082 = vcmask 162816
      %v1083 = vsel %vm1082, %v1064, %v709
      %v1084 = vsel %vm1082, %v1065, %v711
      %v1085 = vsel %vm1082, %v1066, %v713
      %v1086 = vsel %vm1082, %v1067, %v715
      %v1087 = vsel %vm1082, %v1068, %v717
      %v1088 = vsel %vm1082, %v1069, %v719
      %v1089 = vsel %vm1082, %v1070, %v721
      %v1090 = vsel %vm1082, %v1071, %v723
      %v1091 = vsel %vm1082, %v1072, %v725
      %v1092 = vsel %vm1082, %v1073, %v727
      %v1093 = vsel %vm1082, %v1074, %v729
      %v1094 = vsel %vm1082, %v1075, %v731
      %v1095 = vsel %vm1082, %v1076, %v733
      %v1096 = vsel %vm1082, %v1077, %v735
      %v1097 = vsel %vm1082, %v1078, %v737
      %v1098 = vsel %vm1082, %v1079, %v739
      %v1099 = vsel %vm1082, %v1080, %v741
      %v1100 = vsel %vm1082, %v1081, %v743
      %vm1101 = vcmask 195584
      %v1102 = vsel %vm1101, %v1083, %v769
      %v1103 = vsel %vm1101, %v1084, %v771
      %v1104 = vsel %vm1101, %v1085, %v773
      %v1105 = vsel %vm1101, %v1086, %v775
      %v1106 = vsel %vm1101, %v1087, %v777
      %v1107 = vsel %vm1101, %v1088, %v779
      %v1108 = vsel %vm1101, %v1089, %v781
      %v1109 = vsel %vm1101, %v1090, %v783
      %v1110 = vsel %vm1101, %v1091, %v785
      %v1111 = vsel %vm1101, %v1092, %v787
      %v1112 = vsel %vm1101, %v1093, %v789
      %v1113 = vsel %vm1101, %v1094, %v791
      %v1114 = vsel %vm1101, %v1095, %v793
      %v1115 = vsel %vm1101, %v1096, %v795
      %v1116 = vsel %vm1101, %v1097, %v797
      %v1117 = vsel %vm1101, %v1098, %v799
      %v1118 = vsel %vm1101, %v1099, %v801
      %v1119 = vsel %vm1101, %v1100, %v803
      %vm1120 = vcmask 228352
      %v1121 = vsel %vm1120, %v1102, %v861
      %v1122 = vsel %vm1120, %v1103, %v863
      %v1123 = vsel %vm1120, %v1104, %v865
      %v1124 = vsel %vm1120, %v1105, %v867
      %v1125 = vsel %vm1120, %v1106, %v869
      %v1126 = vsel %vm1120, %v1107, %v871
      %v1127 = vsel %vm1120, %v1108, %v873
      %v1128 = vsel %vm1120, %v1109, %v875
      %v1129 = vsel %vm1120, %v1110, %v877
      %v1130 = vsel %vm1120, %v1111, %v879
      %v1131 = vsel %vm1120, %v1112, %v881
      %v1132 = vsel %vm1120, %v1113, %v883
      %v1133 = vsel %vm1120, %v1114, %v885
      %v1134 = vsel %vm1120, %v1115, %v887
      %v1135 = vsel %vm1120, %v1116, %v889
      %v1136 = vsel %vm1120, %v1117, %v891
      %v1137 = vsel %vm1120, %v1118, %v893
      %v1138 = vsel %vm1120, %v1119, %v895
      %vm1139 = vcmask 261120
      %v1140 = vsel %vm1139, %v1121, %v953
      %v1141 = vsel %vm1139, %v1122, %v955
      %v1142 = vsel %vm1139, %v1123, %v957
      %v1143 = vsel %vm1139, %v1124, %v959
      %v1144 = vsel %vm1139, %v1125, %v961
      %v1145 = vsel %vm1139, %v1126, %v963
      %v1146 = vsel %vm1139, %v1127, %v965
      %v1147 = vsel %vm1139, %v1128, %v967
      %v1148 = vsel %vm1139, %v1129, %v969
      %v1149 = vsel %vm1139, %v1130, %v971
      %v1150 = vsel %vm1139, %v1131, %v973
      %v1151 = vsel %vm1139, %v1132, %v975
      %v1152 = vsel %vm1139, %v1133, %v977
      %v1153 = vsel %vm1139, %v1134, %v979
      %v1154 = vsel %vm1139, %v1135, %v981
      %v1155 = vsel %vm1139, %v1136, %v983
      %v1156 = vsel %vm1139, %v1137, %v985
      %v1157 = vsel %vm1139, %v1138, %v987
      %v1158 = vpack.c.bf16 %v1141, %v1140
      %v1159 = vpack.c.bf16 %v1143, %v1142
      %v1160 = vpack.c.bf16 %v1145, %v1144
      %v1161 = vpack.c.bf16 %v1147, %v1146
      %v1162 = vpack.c.bf16 %v1149, %v1148
      %v1163 = vpack.c.bf16 %v1151, %v1150
      %v1164 = vpack.c.bf16 %v1153, %v1152
      %v1165 = vpack.c.bf16 %v1155, %v1154
      %v1166 = vpack.c.bf16 %v1157, %v1156
      %v1167 = vld [vmem:[%s2] sm:$0xf]
      %v1168 = vld [vmem:[%s2 + $0x4] sm:$0xf]
      %v1169 = vld [vmem:[%s2 + $0x8] sm:$0xf]
      %v1170 = vld [vmem:[%s2 + $0xc] sm:$0xf]
      %v1171 = vld [vmem:[%s2 + $0x10] sm:$0x3]
      %v1177 = vunpack.c.l.b16 %v1167
      %v1178 = vunpack.c.l.b16 %v1168
      %v1179 = vunpack.c.l.b16 %v1169
      %v1180 = vunpack.c.l.b16 %v1170
      %v1181 = vunpack.c.l.b16 %v1171
      %v1182 = vpack.c.b16 %v1178, %v1177
      %v1183 = vpack.c.b16 %v1180, %v1179
      %v1184 = vpack.c.b16 %v1181, %v1181
      %vm1187 = vcmask 293888
      %v1189 = vsel %vm1187, %v1158, 0
      %v1192 = vsel %vm1187, %v1159, 0
      %v1195 = vsel %vm1187, %v1160, 0
      %v1198 = vsel %vm1187, %v1161, 0
      %v1201 = vsel %vm1187, %v1162, 0
      %v1204 = vsel %vm1187, %v1163, 0
      %v1207 = vsel %vm1187, %v1164, 0
      %v1210 = vsel %vm1187, %v1165, 0
      %v1213 = vsel %vm1187, %v1166, 0
      %v1216 = vsel %vm914, %v1184, 0
      %1218 = vmatprep.subr.bf16.mxu0 0
      %1219 = vmatpush1.bf16.msra.mxu0 %v1182
      %1220 = vmatprep.subr.bf16.mxu0 0
      %1221 = vmatpush1.bf16.msra.mxu0 %v1183
      %1222 = vmatprep.subr.bf16.mxu0 0
      %1223 = vmatpush1.bf16.msra.mxu0 %v1216
      %1224 = vmatprep.subr.bf16.mxu0 0
      %1225 = vmatpush1.bf16.msra.mxu0 0
      %1226 = vmatprep.subr.bf16.mxu0 0
      %1227 = vmatpush1.bf16.msra.mxu0 0
      %1228 = vmatprep.subr.bf16.mxu0 0
      %1229 = vmatpush1.bf16.msra.mxu0 0
      %1230 = vmatprep.subr.bf16.mxu0 0
      %1231 = vmatpush1.bf16.msra.mxu0 0
      %1232 = vmatprep.subr.bf16.mxu0 0
      %1233 = vmatpush1.bf16.msra.mxu0 0
      %1234 = vmatprep.subr.bf16.mxu0 0
      %1235 = vmatpush1.bf16.msra.mxu0 0
      %1236 = vmatprep.subr.bf16.mxu0 0
      %1237 = vmatpush1.bf16.msra.mxu0 0
      %1238 = vmatprep.subr.bf16.mxu0 0
      %1239 = vmatpush1.bf16.msra.mxu0 0
      %1240 = vmatprep.subr.bf16.mxu0 0
      %1241 = vmatpush1.bf16.msra.mxu0 0
      %1242 = vmatprep.subr.bf16.mxu0 0
      %1243 = vmatpush1.bf16.msra.mxu0 0
      %1244 = vmatprep.subr.bf16.mxu0 0
      %1245 = vmatpush1.bf16.msra.mxu0 0
      %1246 = vmatprep.subr.bf16.mxu0 0
      %1247 = vmatpush1.bf16.msra.mxu0 0
      %1248 = vmatprep.subr.bf16.mxu0 0
      %1249 = vmatpush1.bf16.msra.mxu0 0
      %1250 = vmatprep.mubr.bf16.mxu0 0
      %1251 = vmatmul.mubr.bf16.gmra.mrb[0].mxu0 %v1189
      %v1252 = vpop.f32.mrb[0].mxu0
      %v1253 = vadd.f32 0.0, %v1252
      %v1254 = vpop.f32.mrb[0].mxu0
      %v1255 = vpop.f32.mrb[0].mxu0
      %v1256 = vadd.f32 0.0, %v1255
      %v1257 = vpop.f32.mrb[0].mxu0
      %1258 = vmatprep.mubr.bf16.mxu0 0
      %1259 = vmatmul.mubr.bf16.gmra.mrb[0].mxu0 %v1192
      %v1260 = vpop.f32.mrb[0].mxu0
      %v1261 = vadd.f32 0.0, %v1260
      %v1262 = vpop.f32.mrb[0].mxu0
      %v1263 = vpop.f32.mrb[0].mxu0
      %v1264 = vadd.f32 0.0, %v1263
      %v1265 = vpop.f32.mrb[0].mxu0
      %1266 = vmatprep.mubr.bf16.mxu0 0
      %1267 = vmatmul.mubr.bf16.gmra.mrb[0].mxu0 %v1195
      %v1268 = vpop.f32.mrb[0].mxu0
      %v1269 = vadd.f32 0.0, %v1268
      %v1270 = vpop.f32.mrb[0].mxu0
      %v1271 = vpop.f32.mrb[0].mxu0
      %v1272 = vadd.f32 0.0, %v1271
      %v1273 = vpop.f32.mrb[0].mxu0
      %1274 = vmatprep.mubr.bf16.mxu0 0
      %1275 = vmatmul.mubr.bf16.gmra.mrb[0].mxu0 %v1198
      %v1276 = vpop.f32.mrb[0].mxu0
      %v1277 = vadd.f32 0.0, %v1276
      %v1278 = vpop.f32.mrb[0].mxu0
      %v1279 = vpop.f32.mrb[0].mxu0
      %v1280 = vadd.f32 0.0, %v1279
      %v1281 = vpop.f32.mrb[0].mxu0
      %1282 = vmatprep.mubr.bf16.mxu0 0
      %1283 = vmatmul.mubr.bf16.gmra.mrb[0].mxu0 %v1201
      %v1284 = vpop.f32.mrb[0].mxu0
      %v1285 = vadd.f32 0.0, %v1284
      %v1286 = vpop.f32.mrb[0].mxu0
      %v1287 = vpop.f32.mrb[0].mxu0
      %v1288 = vadd.f32 0.0, %v1287
      %v1289 = vpop.f32.mrb[0].mxu0
      %1290 = vmatprep.mubr.bf16.mxu0 0
      %1291 = vmatmul.mubr.bf16.gmra.mrb[0].mxu0 %v1204
      %v1292 = vpop.f32.mrb[0].mxu0
      %v1293 = vadd.f32 0.0, %v1292
      %v1294 = vpop.f32.mrb[0].mxu0
      %v1295 = vpop.f32.mrb[0].mxu0
      %v1296 = vadd.f32 0.0, %v1295
      %v1297 = vpop.f32.mrb[0].mxu0
      %1298 = vmatprep.mubr.bf16.mxu0 0
      %1299 = vmatmul.mubr.bf16.gmra.mrb[0].mxu0 %v1207
      %v1300 = vpop.f32.mrb[0].mxu0
      %v1301 = vadd.f32 0.0, %v1300
      %v1302 = vpop.f32.mrb[0].mxu0
      %v1303 = vpop.f32.mrb[0].mxu0
      %v1304 = vadd.f32 0.0, %v1303
      %v1305 = vpop.f32.mrb[0].mxu0
      %1306 = vmatprep.mubr.bf16.mxu0 0
      %1307 = vmatmul.mubr.bf16.gmra.mrb[0].mxu0 %v1210
      %v1308 = vpop.f32.mrb[0].mxu0
      %v1309 = vadd.f32 0.0, %v1308
      %v1310 = vpop.f32.mrb[0].mxu0
      %v1311 = vpop.f32.mrb[0].mxu0
      %v1312 = vadd.f32 0.0, %v1311
      %v1313 = vpop.f32.mrb[0].mxu0
      %1314 = vmatprep.mubr.bf16.mxu0 0
      %1315 = vmatmul.mubr.bf16.gmra.mrb[0].mxu0 %v1213
      %v1316 = vpop.f32.mrb[0].mxu0
      %v1317 = vadd.f32 0.0, %v1316
      %v1318 = vpop.f32.mrb[0].mxu0
      %v1319 = vpop.f32.mrb[0].mxu0
      %v1320 = vadd.f32 0.0, %v1319
      %v1321 = vpop.f32.mrb[0].mxu0
      %1322 = vdwg.mxu0
      %v1323 = vpack.c.bf16 %v1256, %v1253
      %v1324 = vpack.c.bf16 %v1264, %v1261
      %v1325 = vpack.c.bf16 %v1272, %v1269
      %v1326 = vpack.c.bf16 %v1280, %v1277
      %v1327 = vpack.c.bf16 %v1288, %v1285
      %v1328 = vpack.c.bf16 %v1296, %v1293
      %v1329 = vpack.c.bf16 %v1304, %v1301
      %v1330 = vpack.c.bf16 %v1312, %v1309
      %v1331 = vpack.c.bf16 %v1320, %v1317
      %v1341 = vunpack.c.l.b16 %v1323
      %v1342 = vunpack.c.h.b16 %v1323
      %v1343 = vunpack.c.l.b16 %v1324
      %v1344 = vunpack.c.h.b16 %v1324
      %v1345 = vunpack.c.l.b16 %v1325
      %v1346 = vunpack.c.h.b16 %v1325
      %v1347 = vunpack.c.l.b16 %v1326
      %v1348 = vunpack.c.h.b16 %v1326
      %v1349 = vunpack.c.l.b16 %v1327
      %v1350 = vunpack.c.h.b16 %v1327
      %v1351 = vunpack.c.l.b16 %v1328
      %v1352 = vunpack.c.h.b16 %v1328
      %v1353 = vunpack.c.l.b16 %v1329
      %v1354 = vunpack.c.h.b16 %v1329
      %v1355 = vunpack.c.l.b16 %v1330
      %v1356 = vunpack.c.h.b16 %v1330
      %v1357 = vunpack.c.l.b16 %v1331
      %v1358 = vunpack.c.h.b16 %v1331
      %v1359 = vpack.c.b16 %v1341, %v1341
      %v1360 = vpack.c.b16 %v1342, %v1342
      %v1361 = vpack.c.b16 %v1343, %v1343
      %v1362 = vpack.c.b16 %v1344, %v1344
      %v1363 = vpack.c.b16 %v1345, %v1345
      %v1364 = vpack.c.b16 %v1346, %v1346
      %v1365 = vpack.c.b16 %v1347, %v1347
      %v1366 = vpack.c.b16 %v1348, %v1348
      %v1367 = vpack.c.b16 %v1349, %v1349
      %v1368 = vpack.c.b16 %v1350, %v1350
      %v1369 = vpack.c.b16 %v1351, %v1351
      %v1370 = vpack.c.b16 %v1352, %v1352
      %v1371 = vpack.c.b16 %v1353, %v1353
      %v1372 = vpack.c.b16 %v1354, %v1354
      %v1373 = vpack.c.b16 %v1355, %v1355
      %v1374 = vpack.c.b16 %v1356, %v1356
      %v1375 = vpack.c.b16 %v1357, %v1357
      %v1376 = vpack.c.b16 %v1358, %v1358
      %1395 = vst [vmem:[%s262] sm:$0xf] %v1359
      %1396 = vst [vmem:[%s262 + $0x4] sm:$0xf] %v1360
      %1397 = vst [vmem:[%s262 + $0x8] sm:$0xf] %v1361
      %1398 = vst [vmem:[%s262 + $0xc] sm:$0xf] %v1362
      %1399 = vst [vmem:[%s262 + $0x10] sm:$0xf] %v1363
      %1400 = vst [vmem:[%s262 + $0x14] sm:$0xf] %v1364
      %1401 = vst [vmem:[%s262 + $0x18] sm:$0xf] %v1365
      %1402 = vst [vmem:[%s262 + $0x1c] sm:$0xf] %v1366
      %1403 = vst [vmem:[%s262 + $0x20] sm:$0xf] %v1367
      %1404 = vst [vmem:[%s262 + $0x24] sm:$0xf] %v1368
      %1405 = vst [vmem:[%s262 + $0x28] sm:$0xf] %v1369
      %1406 = vst [vmem:[%s262 + $0x2c] sm:$0xf] %v1370
      %1407 = vst [vmem:[%s262 + $0x30] sm:$0xf] %v1371
      %1408 = vst [vmem:[%s262 + $0x34] sm:$0xf] %v1372
      %1409 = vst [vmem:[%s262 + $0x38] sm:$0xf] %v1373
      %1410 = vst [vmem:[%s262 + $0x3c] sm:$0xf] %v1374
      %1411 = vst [vmem:[%s262 + $0x40] sm:$0xf] %v1375
      %1412 = vst [vmem:[%s262 + $0x44] sm:$0xf] %v1376
      %1413 = vset.pattern.permute.xlu0 4
      %1414 = vperm.xlu0 %1413, %v287
      %v1415 = vpop.permute.xlu0 %1414
      %1417 = vset.pattern.permute.xlu0 4
      %1418 = vperm.xlu0 %1417, %v288
      %v1419 = vpop.permute.xlu0 %1418
      %1421 = vset.pattern.permute.xlu0 4
      %1422 = vperm.xlu0 %1421, %v289
      %v1423 = vpop.permute.xlu0 %1422
      %1425 = vset.pattern.permute.xlu0 4
      %1426 = vperm.xlu0 %1425, %v290
      %v1427 = vpop.permute.xlu0 %1426
      %1429 = vset.pattern.permute.xlu0 4
      %1430 = vperm.xlu0 %1429, %v291
      %v1431 = vpop.permute.xlu0 %1430
      %1433 = vset.pattern.permute.xlu0 4
      %1434 = vperm.xlu0 %1433, %v292
      %v1435 = vpop.permute.xlu0 %1434
      %1437 = vset.pattern.permute.xlu0 4
      %1438 = vperm.xlu0 %1437, %v293
      %v1439 = vpop.permute.xlu0 %1438
      %1441 = vset.pattern.permute.xlu0 4
      %1442 = vperm.xlu0 %1441, %v294
      %v1443 = vpop.permute.xlu0 %1442
      %1445 = vset.pattern.permute.xlu0 4
      %1446 = vperm.xlu0 %1445, %v295
      %v1447 = vpop.permute.xlu0 %1446
      %1449 = vset.pattern.permute.xlu0 4
      %1450 = vperm.xlu0 %1449, %v296
      %v1451 = vpop.permute.xlu0 %1450
      %1453 = vset.pattern.permute.xlu0 4
      %1454 = vperm.xlu0 %1453, %v297
      %v1455 = vpop.permute.xlu0 %1454
      %1457 = vset.pattern.permute.xlu0 4
      %1458 = vperm.xlu0 %1457, %v298
      %v1459 = vpop.permute.xlu0 %1458
      %1461 = vset.pattern.permute.xlu0 4
      %1462 = vperm.xlu0 %1461, %v299
      %v1463 = vpop.permute.xlu0 %1462
      %1465 = vset.pattern.permute.xlu0 4
      %1466 = vperm.xlu0 %1465, %v300
      %v1467 = vpop.permute.xlu0 %1466
      %1469 = vset.pattern.permute.xlu0 4
      %1470 = vperm.xlu0 %1469, %v301
      %v1471 = vpop.permute.xlu0 %1470
      %1473 = vset.pattern.permute.xlu0 4
      %1474 = vperm.xlu0 %1473, %v302
      %v1475 = vpop.permute.xlu0 %1474
      %1477 = vset.pattern.permute.xlu0 4
      %1478 = vperm.xlu0 %1477, %v303
      %v1479 = vpop.permute.xlu0 %1478
      %1481 = vset.pattern.permute.xlu0 4
      %1482 = vperm.xlu0 %1481, %v304
      %v1483 = vpop.permute.xlu0 %1482
      %v1485 = vmul.f32 %v1253, %v1415
      %v1486 = vmul.f32 %v1256, %v1419
      %v1487 = vmul.f32 %v1261, %v1423
      %v1488 = vmul.f32 %v1264, %v1427
      %v1489 = vmul.f32 %v1269, %v1431
      %v1490 = vmul.f32 %v1272, %v1435
      %v1491 = vmul.f32 %v1277, %v1439
      %v1492 = vmul.f32 %v1280, %v1443
      %v1493 = vmul.f32 %v1285, %v1447
      %v1494 = vmul.f32 %v1288, %v1451
      %v1495 = vmul.f32 %v1293, %v1455
      %v1496 = vmul.f32 %v1296, %v1459
      %v1497 = vmul.f32 %v1301, %v1463
      %v1498 = vmul.f32 %v1304, %v1467
      %v1499 = vmul.f32 %v1309, %v1471
      %v1500 = vmul.f32 %v1312, %v1475
      %v1501 = vmul.f32 %v1317, %v1479
      %v1502 = vmul.f32 %v1320, %v1483
      %v1503 = vadd.f32 %v1485, %v1486
      %v1504 = vadd.f32 %v1503, %v1487
      %v1505 = vadd.f32 %v1504, %v1488
      %v1506 = vadd.f32 %v1505, %v1489
      %v1507 = vadd.f32 %v1506, %v1490
      %v1508 = vadd.f32 %v1507, %v1491
      %v1509 = vadd.f32 %v1508, %v1492
      %v1510 = vadd.f32 %v1509, %v1493
      %v1511 = vadd.f32 %v1510, %v1494
      %v1512 = vadd.f32 %v1511, %v1495
      %v1513 = vadd.f32 %v1512, %v1496
      %v1514 = vadd.f32 %v1513, %v1497
      %v1515 = vadd.f32 %v1514, %v1498
      %v1516 = vadd.f32 %v1515, %v1499
      %v1517 = vadd.f32 %v1516, %v1500
      %v1518 = vadd.f32 %v1517, %v1501
      %v1519 = vadd.f32 %v1518, %v1502
      %v1520 = vrot.slane %v1519, 4
      %v1521 = vadd.f32 %v1519, %v1520
      %v1522 = vrot.slane %v1521, 2
      %v1523 = vadd.f32 %v1521, %v1522
      %v1524 = vrot.slane %v1523, 1
      %v1525 = vadd.f32 %v1523, %v1524
      %v1526 = vmul.f32 %v1253, %v1485
      %v1527 = vmul.f32 %v1256, %v1486
      %v1528 = vmul.f32 %v1261, %v1487
      %v1529 = vmul.f32 %v1264, %v1488
      %v1530 = vmul.f32 %v1269, %v1489
      %v1531 = vmul.f32 %v1272, %v1490
      %v1532 = vmul.f32 %v1277, %v1491
      %v1533 = vmul.f32 %v1280, %v1492
      %v1534 = vmul.f32 %v1285, %v1493
      %v1535 = vmul.f32 %v1288, %v1494
      %v1536 = vmul.f32 %v1293, %v1495
      %v1537 = vmul.f32 %v1296, %v1496
      %v1538 = vmul.f32 %v1301, %v1497
      %v1539 = vmul.f32 %v1304, %v1498
      %v1540 = vmul.f32 %v1309, %v1499
      %v1541 = vmul.f32 %v1312, %v1500
      %v1542 = vmul.f32 %v1317, %v1501
      %v1543 = vmul.f32 %v1320, %v1502
      %v1544 = vadd.f32 %v1526, %v1527
      %v1545 = vadd.f32 %v1544, %v1528
      %v1546 = vadd.f32 %v1545, %v1529
      %v1547 = vadd.f32 %v1546, %v1530
      %v1548 = vadd.f32 %v1547, %v1531
      %v1549 = vadd.f32 %v1548, %v1532
      %v1550 = vadd.f32 %v1549, %v1533
      %v1551 = vadd.f32 %v1550, %v1534
      %v1552 = vadd.f32 %v1551, %v1535
      %v1553 = vadd.f32 %v1552, %v1536
      %v1554 = vadd.f32 %v1553, %v1537
      %v1555 = vadd.f32 %v1554, %v1538
      %v1556 = vadd.f32 %v1555, %v1539
      %v1557 = vadd.f32 %v1556, %v1540
      %v1558 = vadd.f32 %v1557, %v1541
      %v1559 = vadd.f32 %v1558, %v1542
      %v1560 = vadd.f32 %v1559, %v1543
      %v1561 = vrot.slane %v1560, 4
      %v1562 = vadd.f32 %v1560, %v1561
      %v1563 = vrot.slane %v1562, 2
      %v1564 = vadd.f32 %v1562, %v1563
      %v1565 = vrot.slane %v1564, 1
      %v1566 = vadd.f32 %v1564, %v1565
      %vm1567 = vcmask 1040384
      %v1568 = vsel %vm1567, %v1525, %v1566
      %v1569 = vsel %vm914, %v1568, 0.0
      %1570 = vst [vmem:[%s267] sm:$0xff] %v1569
      %s1571 = smul.u32 18, %s16
      %p1572 = scmp.lt.s32.totalorder %s1571, 89
      %s1573 = scalar_select %p1572, %s1571, 89
      %s1574 = smul.addr %s1573, 4
      %s1575 = scalar_lea.vmem %s3, %s1574
      %p1576 = scmp.lt.s32.totalorder %s16, 4
      %s1577 = scalar_select %p1576, %s16, 4
      %s1578 = smul.addr %s1577, 8
      %s1579 = scalar_lea.vmem %s4, %s1578
      // Predicated region
      $region33: #{conv_block_forward.4} parent=31 // pred_check
        %p1580 = pneg %p111
      $region34: #{conv_block_forward.4} parent=31 // pred_check_branch
        %1582 = sbr.rel (%p1580) target = $region36
      $region35: #{conv_block_forward.4} parent=31 // pred_region
        %s1583 = smul.u32 18, %s16
      $region36: #{conv_block_forward.4} parent=31 // pred_fallthru
        _
      // Predicated region
      $region37: #{conv_block_forward.4} parent=31 // pred_check
        %p1584 = pneg %p137
      $region38: #{conv_block_forward.4} parent=31 // pred_check_branch
        %1586 = sbr.rel (%p1584) target = $region40
      $region39: #{conv_block_forward.4} parent=31 // pred_region
        _
      $region40: #{conv_block_forward.4} parent=31 // pred_fallthru
        _
    $region32: #{conv_block_forward.4} parent=5 // pred_fallthru
      _
    %p1587 = scmp.le.s32.totalorder 2, %s11
    // Predicated region
    $region41: #{conv_block_forward.4} parent=5 // pred_check
      %p1588 = pneg %p1587
    $region42: #{conv_block_forward.4} parent=5 // pred_check_branch
      %1590 = sbr.rel (%p1588) target = $region44
    $region43: #{conv_block_forward.4} parent=5 // pred_region
      %s1591 = ssub.s32 %s11, 2
      // Predicated region
      $region45: #{conv_block_forward.4} parent=43 // pred_check
        %p1592 = pneg %p117
      $region46: #{conv_block_forward.4} parent=43 // pred_check_branch
        %1594 = sbr.rel (%p1592) target = $region48
      $region47: #{conv_block_forward.4} parent=43 // pred_region
        %s1595 = smul.u32 18, %s17
        %p1596 = scmp.lt.s32.totalorder %s1595, 89
        %s1597 = scalar_select %p1596, %s1595, 89
        %s1598 = smul.addr %s1597, 4
        %s1599 = scalar_lea.vmem %s3, %s1598
      $region48: #{conv_block_forward.4} parent=43 // pred_fallthru
        _
      // Predicated region
      $region49: #{conv_block_forward.4} parent=43 // pred_check
        %p1600 = pneg %p143
      $region50: #{conv_block_forward.4} parent=43 // pred_check_branch
        %1602 = sbr.rel (%p1600) target = $region52
      $region51: #{conv_block_forward.4} parent=43 // pred_region
        %p1603 = scmp.lt.s32.totalorder %s17, 4
        %s1604 = scalar_select %p1603, %s17, 4
        %s1605 = smul.addr %s1604, 8
        %s1606 = scalar_lea.vmem %s4, %s1605
      $region52: #{conv_block_forward.4} parent=43 // pred_fallthru
        _
    $region44: #{conv_block_forward.4} parent=5 // pred_fallthru
      _
  $region6: #{conv_block_forward.4} parent=0 // loop_footer
    %s15 = sadd.s32 1, %s11
  $region7: #{conv_block_forward.4} parent=0 // loop_footer_branch
    %10 = sbr.rel target = $region3
  $region8: #{conv_block_forward.4} parent=0 // loop_exit
    _

// kernel: conv_block_forward.6
$region0: #{conv_block_forward.6}
  #allocation0 [shape = 'u32[]', space=smem, size = 0x4, offset = 0x4, fixed_abs, tag = 'smem constant byte address 0x4 - core index']
  #allocation1 [shape = 'u32[144,128]{1,0:T(1,128)}', space=vmem, size = 0x12000, scoped, tag = 'internal scratch']
  %s0 = inlined_call_operand.vmem [shape: bf16[768,9], index: 0, kind: input, shape index: {}, may-alias: {0,1}]
  %s1 = inlined_call_operand.vmem [shape: bf16[768,9], index: 1, kind: input, shape index: {}, may-alias: {0,1}]
  %s2 = inlined_call_operand.vmem [shape: bf16[72,128], index: 2, kind: input, shape index: {}]
  %s3 = inlined_call_operand.vmem [shape: bf16[720,128], index: 3, kind: output, shape index: {0}]
  %s4 = inlined_call_operand.vmem [shape: f32[40,128], index: 4, kind: output, shape index: {1}]
  %5 = xla_tuple %s3, %s4
  %s6 = sld [smem:[#allocation0]]
  $region53: #{conv_block_forward.6} parent=0
    _
  %s8 = ssub.s32 1, %s6
  %s9 = scalar_select 0, %s8, %s6
  loop: start=0, step=1, limit=7
  $region2: #{conv_block_forward.6} parent=0 // loop_pre_header
    _
  $region3: #{conv_block_forward.6} parent=0 // loop_header
    %s11 = sphi 0, %s15
    %p12 = scmp.ge.s32.totalorder %s11, 7
    %s21 = sphi 0, %s23
    %s24 = sphi 0, %s21
    %s25 = sphi 0, %s24
    %s41 = sphi 0, %s25
    %s51 = sphi 0, %s53
    %s54 = sphi 0, %s51
    %s55 = sphi 0, %s54
    %s71 = sphi 0, %s55
    %s75 = sphi 0, %s75
    %s77 = sphi 0, %s75
    %s78 = sphi 0, %s77
    %s92 = sphi 0, %s78
    %s98 = sphi 0, %s100
    %s101 = sphi 0, %s98
    %s102 = sphi 0, %s101
    %s118 = sphi 0, %s102
    %s124 = sphi 0, %s126
    %s127 = sphi 0, %s124
    %s128 = sphi 0, %s127
    %s144 = sphi 0, %s128
  $region4: #{conv_block_forward.6} parent=0 // loop_header_branch
    %14 = sbr.rel (%p12) target = $region8
  $region5: #{conv_block_forward.6} parent=0 // loop_body
    %s16 = ssub.s32 %s11, 1
    %s17 = ssub.s32 %s11, 2
    %s18 = sadd.s32 %s11, 1
    %s19 = ssub.s32 %s11, %s18
    %p20 = scmp.eq.s32.totalorder %s19, 0
    %s22 = sadd.s32 %s21, 1
    %s23 = scalar_select %p20, %s21, %s22
    %p26 = pneg %p20
    %p27 = scmp.eq.s32.totalorder %s11, 4
    %p28 = por %p26, %p27
    %p29 = scmp.ne.s32.totalorder %s21, %s24
    %p30 = scmp.eq.s32.totalorder %s11, 0
    %p31 = por %p29, %p30
    %p32 = scmp.ne.s32.totalorder %s21, %s24
    %p33 = scmp.eq.s32.totalorder %s16, 4
    %p34 = por %p32, %p33
    %p35 = scmp.ne.s32.totalorder %s24, %s25
    %p36 = scmp.eq.s32.totalorder %s16, 0
    %p37 = por %p35, %p36
    %p38 = scmp.ne.s32.totalorder %s24, %s25
    %p39 = scmp.eq.s32.totalorder %s17, 4
    %p40 = por %p38, %p39
    %p42 = scmp.ne.s32.totalorder %s25, %s41
    %p43 = scmp.eq.s32.totalorder %s17, 0
    %p44 = por %p42, %p43
    %s45 = sadd.s32 %s11, 1
    %s46 = smul.u32 %s45, 3
    %s47 = sadd.s32 %s18, 1
    %s48 = smul.u32 %s47, 3
    %s49 = ssub.s32 %s46, %s48
    %p50 = scmp.eq.s32.totalorder %s49, 0
    %s52 = sadd.s32 %s51, 1
    %s53 = scalar_select %p50, %s51, %s52
    %p56 = pneg %p50
    %p57 = scmp.eq.s32.totalorder %s11, 4
    %p58 = por %p56, %p57
    %p59 = scmp.ne.s32.totalorder %s51, %s54
    %p60 = scmp.eq.s32.totalorder %s11, 0
    %p61 = por %p59, %p60
    %p62 = scmp.ne.s32.totalorder %s51, %s54
    %p63 = scmp.eq.s32.totalorder %s16, 4
    %p64 = por %p62, %p63
    %p65 = scmp.ne.s32.totalorder %s54, %s55
    %p66 = scmp.eq.s32.totalorder %s16, 0
    %p67 = por %p65, %p66
    %p68 = scmp.ne.s32.totalorder %s54, %s55
    %p69 = scmp.eq.s32.totalorder %s17, 4
    %p70 = por %p68, %p69
    %p72 = scmp.ne.s32.totalorder %s55, %s71
    %p73 = scmp.eq.s32.totalorder %s17, 0
    %p74 = por %p72, %p73
    %s76 = sadd.s32 %s75, 1
    %p79 = scmp.eq.s32.totalorder %s11, 4
    %p80 = scmp.ne.s32.totalorder %s75, %s77
    %p81 = scmp.eq.s32.totalorder %s11, 0
    %p82 = por %p80, %p81
    %p83 = scmp.ne.s32.totalorder %s75, %s77
    %p84 = scmp.eq.s32.totalorder %s16, 4
    %p85 = por %p83, %p84
    %p86 = scmp.ne.s32.totalorder %s77, %s78
    %p87 = scmp.eq.s32.totalorder %s16, 0
    %p88 = por %p86, %p87
    %p89 = scmp.ne.s32.totalorder %s77, %s78
    %p90 = scmp.eq.s32.totalorder %s17, 4
    %p91 = por %p89, %p90
    %p93 = scmp.ne.s32.totalorder %s78, %s92
    %p94 = scmp.eq.s32.totalorder %s17, 0
    %p95 = por %p93, %p94
    %s96 = ssub.s32 %s11, %s18
    %p97 = scmp.eq.s32.totalorder %s96, 0
    %s99 = sadd.s32 %s98, 1
    %s100 = scalar_select %p97, %s98, %s99
    %p103 = pneg %p97
    %p104 = scmp.eq.s32.totalorder %s11, 4
    %p105 = por %p103, %p104
    %p106 = scmp.ne.s32.totalorder %s98, %s101
    %p107 = scmp.eq.s32.totalorder %s11, 0
    %p108 = por %p106, %p107
    %p109 = scmp.ne.s32.totalorder %s98, %s101
    %p110 = scmp.eq.s32.totalorder %s16, 4
    %p111 = por %p109, %p110
    %p112 = scmp.ne.s32.totalorder %s101, %s102
    %p113 = scmp.eq.s32.totalorder %s16, 0
    %p114 = por %p112, %p113
    %p115 = scmp.ne.s32.totalorder %s101, %s102
    %p116 = scmp.eq.s32.totalorder %s17, 4
    %p117 = por %p115, %p116
    %p119 = scmp.ne.s32.totalorder %s102, %s118
    %p120 = scmp.eq.s32.totalorder %s17, 0
    %p121 = por %p119, %p120
    %s122 = ssub.s32 %s11, %s18
    %p123 = scmp.eq.s32.totalorder %s122, 0
    %s125 = sadd.s32 %s124, 1
    %s126 = scalar_select %p123, %s124, %s125
    %p129 = pneg %p123
    %p130 = scmp.eq.s32.totalorder %s11, 4
    %p131 = por %p129, %p130
    %p132 = scmp.ne.s32.totalorder %s124, %s127
    %p133 = scmp.eq.s32.totalorder %s11, 0
    %p134 = por %p132, %p133
    %p135 = scmp.ne.s32.totalorder %s124, %s127
    %p136 = scmp.eq.s32.totalorder %s16, 4
    %p137 = por %p135, %p136
    %p138 = scmp.ne.s32.totalorder %s127, %s128
    %p139 = scmp.eq.s32.totalorder %s16, 0
    %p140 = por %p138, %p139
    %p141 = scmp.ne.s32.totalorder %s127, %s128
    %p142 = scmp.eq.s32.totalorder %s17, 4
    %p143 = por %p141, %p142
    %p145 = scmp.ne.s32.totalorder %s128, %s144
    %p146 = scmp.eq.s32.totalorder %s17, 0
    %p147 = por %p145, %p146
    %p148 = scmp.le.s32.totalorder 1, %s11
    %p149 = scmp.lt.s32.totalorder %s11, 6
    %p150 = pnand %p148, %p149
    %p151 = pneg %p150
    // Predicated region
    $region9: #{conv_block_forward.6} parent=5 // pred_check
      _
    $region10: #{conv_block_forward.6} parent=5 // pred_check_branch
      %153 = sbr.rel (%p150) target = $region12
    $region11: #{conv_block_forward.6} parent=5 // pred_region
      %s154 = ssub.s32 %s11, 1
      // Predicated region
      $region13: #{conv_block_forward.6} parent=11 // pred_check
        %p155 = pneg %p88
      $region14: #{conv_block_forward.6} parent=11 // pred_check_branch
        %157 = sbr.rel (%p155) target = $region16
      $region15: #{conv_block_forward.6} parent=11 // pred_region
        _
      $region16: #{conv_block_forward.6} parent=11 // pred_fallthru
        _
    $region12: #{conv_block_forward.6} parent=5 // pred_fallthru
      _
    %p158 = scmp.lt.s32.totalorder %s11, 5
    // Predicated region
    $region17: #{conv_block_forward.6} parent=5 // pred_check
      %p159 = pneg %p158
    $region18: #{conv_block_forward.6} parent=5 // pred_check_branch
      %161 = sbr.rel (%p159) target = $region20
    $region19: #{conv_block_forward.6} parent=5 // pred_region
      // Predicated region
      $region21: #{conv_block_forward.6} parent=19 // pred_check
        %p162 = pneg %p31
      $region22: #{conv_block_forward.6} parent=19 // pred_check_branch
        %164 = sbr.rel (%p162) target = $region24
      $region23: #{conv_block_forward.6} parent=19 // pred_region
        %s165 = smul.u32 18, %s11
        %s166 = ssub.s32 96, %s165
        %p167 = scmp.lt.s32.totalorder %s166, 18
        %s168 = scalar_select %p167, %s166, 18
        %s169 = smul.u32 64, %s168
        %p170 = scmp.lt.s32.totalorder %s165, 95
        %s171 = scalar_select %p170, %s165, 95
        %s172 = smul.addr %s171, 4
        %s173 = scalar_lea.vmem %s0, %s172
        %s174 = smul.u32 18, %s11
        %s175 = ssub.s32 96, %s174
        %p176 = scmp.lt.s32.totalorder %s175, 18
        %s177 = scalar_select %p176, %s175, 18
        %s178 = smul.u32 64, %s177
      $region24: #{conv_block_forward.6} parent=19 // pred_fallthru
        _
      // Predicated region
      $region25: #{conv_block_forward.6} parent=19 // pred_check
        %p179 = pneg %p61
      $region26: #{conv_block_forward.6} parent=19 // pred_check_branch
        %181 = sbr.rel (%p179) target = $region28
      $region27: #{conv_block_forward.6} parent=19 // pred_region
        %s182 = sadd.s32 %s11, 1
        %s183 = smul.u32 %s182, 3
        %s184 = smul.u32 6, %s183
        %p185 = scmp.lt.s32.totalorder %s184, 95
        %s186 = scalar_select %p185, %s184, 95
        %s187 = smul.addr %s186, 4
        %s188 = scalar_lea.vmem %s1, %s187
        %s189 = sadd.s32 %s11, 1
        %s190 = smul.u32 %s189, 3
        %s191 = smul.u32 6, %s190
      $region28: #{conv_block_forward.6} parent=19 // pred_fallthru
        _
    $region20: #{conv_block_forward.6} parent=5 // pred_fallthru
      _
    %p192 = scmp.le.s32.totalorder 1, %s11
    %p193 = scmp.lt.s32.totalorder %s11, 6
    %p194 = pnand %p192, %p193
    %p195 = pneg %p194
    // Predicated region
    $region29: #{conv_block_forward.6} parent=5 // pred_check
      _
    $region30: #{conv_block_forward.6} parent=5 // pred_check_branch
      %197 = sbr.rel (%p194) target = $region32
    $region31: #{conv_block_forward.6} parent=5 // pred_region
      %s198 = ssub.s32 %s11, 1
      %s199 = smul.u32 18, %s16
      %s200 = ssub.s32 96, %s199
      %p201 = scmp.lt.s32.totalorder %s200, 18
      %s202 = scalar_select %p201, %s200, 18
      %s203 = smul.u32 64, %s202
      %p204 = scmp.lt.s32.totalorder %s199, 95
      %s205 = scalar_select %p204, %s199, 95
      %s206 = smul.addr %s205, 4
      %s207 = scalar_lea.vmem %s0, %s206
      %p208 = pneg %p37
      %p209 = pneg %p34
      %s210 = sadd.s32 %s16, 1
      %s211 = smul.u32 %s210, 3
      %s212 = smul.u32 6, %s211
      %p213 = scmp.lt.s32.totalorder %s212, 95
      %s214 = scalar_select %p213, %s212, 95
      %s215 = smul.addr %s214, 4
      %s216 = scalar_lea.vmem %s1, %s215
      %p217 = pneg %p67
      %p218 = pneg %p64
      %p219 = pneg %p88
      %p220 = pneg %p85
      %p221 = pneg %p114
      %p222 = pneg %p111
      %s223 = smul.u32 18, %s16
      %p224 = scmp.lt.s32.totalorder %s223, 89
      %s225 = scalar_select %p224, %s223, 89
      %s226 = smul.addr %s225, 4
      %s227 = scalar_lea.vmem %s3, %s226
      %p228 = pneg %p140
      %p229 = pneg %p137
      %p230 = scmp.lt.s32.totalorder %s16, 4
      %s231 = scalar_select %p230, %s16, 4
      %s232 = smul.addr %s231, 8
      %s233 = scalar_lea.vmem %s4, %s232
      %s234 = smul.u32 18, %s16
      %s235 = ssub.s32 96, %s234
      %p236 = scmp.lt.s32.totalorder %s235, 18
      %s237 = scalar_select %p236, %s235, 18
      %s238 = smul.u32 64, %s237
      %p239 = scmp.lt.s32.totalorder %s234, 95
      %s240 = scalar_select %p239, %s234, 95
      %s241 = smul.addr %s240, 4
      %s242 = scalar_lea.vmem %s0, %s241
      %s243 = smul.u32 18, %s16
      %s244 = ssub.s32 96, %s243
      %p245 = scmp.lt.s32.totalorder %s244, 18
      %s246 = scalar_select %p245, %s244, 18
      %s247 = smul.u32 64, %s246
      %s248 = sadd.s32 %s16, 1
      %s249 = smul.u32 %s248, 3
      %s250 = smul.u32 6, %s249
      %p251 = scmp.lt.s32.totalorder %s250, 95
      %s252 = scalar_select %p251, %s250, 95
      %s253 = smul.addr %s252, 4
      %s254 = scalar_lea.vmem %s1, %s253
      %s255 = sadd.s32 %s16, 1
      %s256 = smul.u32 %s255, 3
      %s257 = smul.u32 6, %s256
      %s258 = smul.u32 18, %s16
      %p259 = scmp.lt.s32.totalorder %s258, 89
      %s260 = scalar_select %p259, %s258, 89
      %s261 = smul.addr %s260, 4
      %s262 = scalar_lea.vmem %s3, %s261
      %s263 = smul.u32 18, %s16
      %p264 = scmp.lt.s32.totalorder %s16, 4
      %s265 = scalar_select %p264, %s16, 4
      %s266 = smul.addr %s265, 8
      %s267 = scalar_lea.vmem %s4, %s266
      %v269 = vld [vmem:[%s242] sm:$0xf]
      %v270 = vld [vmem:[%s242 + $0x4] sm:$0xf]
      %v271 = vld [vmem:[%s242 + $0x8] sm:$0xf]
      %v272 = vld [vmem:[%s242 + $0xc] sm:$0xf]
      %v273 = vld [vmem:[%s242 + $0x10] sm:$0xf]
      %v274 = vld [vmem:[%s242 + $0x14] sm:$0xf]
      %v275 = vld [vmem:[%s242 + $0x18] sm:$0xf]
      %v276 = vld [vmem:[%s242 + $0x1c] sm:$0xf]
      %v277 = vld [vmem:[%s242 + $0x20] sm:$0xf]
      %v278 = vld [vmem:[%s242 + $0x24] sm:$0xf]
      %v279 = vld [vmem:[%s242 + $0x28] sm:$0xf]
      %v280 = vld [vmem:[%s242 + $0x2c] sm:$0xf]
      %v281 = vld [vmem:[%s242 + $0x30] sm:$0xf]
      %v282 = vld [vmem:[%s242 + $0x34] sm:$0xf]
      %v283 = vld [vmem:[%s242 + $0x38] sm:$0xf]
      %v284 = vld [vmem:[%s242 + $0x3c] sm:$0xf]
      %v285 = vld [vmem:[%s242 + $0x40] sm:$0xf]
      %v286 = vld [vmem:[%s242 + $0x44] sm:$0xf]
      %v287 = vunpack.c.l.bf16 %v269
      %v288 = vunpack.c.l.bf16 %v270
      %v289 = vunpack.c.l.bf16 %v271
      %v290 = vunpack.c.l.bf16 %v272
      %v291 = vunpack.c.l.bf16 %v273
      %v292 = vunpack.c.l.bf16 %v274
      %v293 = vunpack.c.l.bf16 %v275
      %v294 = vunpack.c.l.bf16 %v276
      %v295 = vunpack.c.l.bf16 %v277
      %v296 = vunpack.c.l.bf16 %v278
      %v297 = vunpack.c.l.bf16 %v279
      %v298 = vunpack.c.l.bf16 %v280
      %v299 = vunpack.c.l.bf16 %v281
      %v300 = vunpack.c.l.bf16 %v282
      %v301 = vunpack.c.l.bf16 %v283
      %v302 = vunpack.c.l.bf16 %v284
      %v303 = vunpack.c.l.bf16 %v285
      %v304 = vunpack.c.l.bf16 %v286
      %v305 = vld [vmem:[%s254] sm:$0xf]
      %v306 = vld [vmem:[%s254 + $0x4] sm:$0xf]
      %v307 = vld [vmem:[%s254 + $0x8] sm:$0xf]
      %v308 = vld [vmem:[%s254 + $0xc] sm:$0xf]
      %v309 = vld [vmem:[%s254 + $0x10] sm:$0xf]
      %v310 = vunpack.c.l.bf16 %v305
      %v311 = vunpack.c.l.bf16 %v306
      %v312 = vunpack.c.l.bf16 %v307
      %v313 = vunpack.c.l.bf16 %v308
      %v314 = vunpack.c.l.bf16 %v309
      %vm334 = vcmask 1046528
      %v335 = vrot.slane %v287, 1
      %v336 = vrot.slane %v288, 1
      %v337 = vsel %vm334, %v335, %v336
      %v338 = vrot.slane %v289, 1
      %v339 = vsel %vm334, %v336, %v338
      %v340 = vrot.slane %v290, 1
      %v341 = vsel %vm334, %v338, %v340
      %v342 = vrot.slane %v291, 1
      %v343 = vsel %vm334, %v340, %v342
      %v344 = vrot.slane %v292, 1
      %v345 = vsel %vm334, %v342, %v344
      %v346 = vrot.slane %v293, 1
      %v347 = vsel %vm334, %v344, %v346
      %v348 = vrot.slane %v294, 1
      %v349 = vsel %vm334, %v346, %v348
      %v350 = vrot.slane %v295, 1
      %v351 = vsel %vm334, %v348, %v350
      %v352 = vrot.slane %v296, 1
      %v353 = vsel %vm334, %v350, %v352
      %v354 = vrot.slane %v297, 1
      %v355 = vsel %vm334, %v352, %v354
      %v356 = vrot.slane %v298, 1
      %v357 = vsel %vm334, %v354, %v356
      %v358 = vrot.slane %v299, 1
      %v359 = vsel %vm334, %v356, %v358
      %v360 = vrot.slane %v300, 1
      %v361 = vsel %vm334, %v358, %v360
      %v362 = vrot.slane %v301, 1
      %v363 = vsel %vm334, %v360, %v362
      %v364 = vrot.slane %v302, 1
      %v365 = vsel %vm334, %v362, %v364
      %v366 = vrot.slane %v303, 1
      %v367 = vsel %vm334, %v364, %v366
      %v368 = vrot.slane %v304, 1
      %v369 = vsel %vm334, %v366, %v368
      %v370 = vrot.slane %v310, 1
      %v371 = vsel %vm334, %v368, %v370
      %372 = vrot.lane.b32.xlu0 %v337, 8
      %v373 = vpop.permute.xlu0 %372
      %374 = vrot.lane.b32.xlu0 %v339, 8
      %v375 = vpop.permute.xlu0 %374
      %376 = vrot.lane.b32.xlu0 %v341, 8
      %v377 = vpop.permute.xlu0 %376
      %378 = vrot.lane.b32.xlu0 %v343, 8
      %v379 = vpop.permute.xlu0 %378
      %380 = vrot.lane.b32.xlu0 %v345, 8
      %v381 = vpop.permute.xlu0 %380
      %382 = vrot.lane.b32.xlu0 %v347, 8
      %v383 = vpop.permute.xlu0 %382
      %384 = vrot.lane.b32.xlu0 %v349, 8
      %v385 = vpop.permute.xlu0 %384
      %386 = vrot.lane.b32.xlu0 %v351, 8
      %v387 = vpop.permute.xlu0 %386
      %388 = vrot.lane.b32.xlu0 %v353, 8
      %v389 = vpop.permute.xlu0 %388
      %390 = vrot.lane.b32.xlu0 %v355, 8
      %v391 = vpop.permute.xlu0 %390
      %392 = vrot.lane.b32.xlu0 %v357, 8
      %v393 = vpop.permute.xlu0 %392
      %394 = vrot.lane.b32.xlu0 %v359, 8
      %v395 = vpop.permute.xlu0 %394
      %396 = vrot.lane.b32.xlu0 %v361, 8
      %v397 = vpop.permute.xlu0 %396
      %398 = vrot.lane.b32.xlu0 %v363, 8
      %v399 = vpop.permute.xlu0 %398
      %400 = vrot.lane.b32.xlu0 %v365, 8
      %v401 = vpop.permute.xlu0 %400
      %402 = vrot.lane.b32.xlu0 %v367, 8
      %v403 = vpop.permute.xlu0 %402
      %404 = vrot.lane.b32.xlu0 %v369, 8
      %v405 = vpop.permute.xlu0 %404
      %406 = vrot.lane.b32.xlu0 %v371, 8
      %v407 = vpop.permute.xlu0 %406
      %vm426 = vcmask 1045504
      %v427 = vrot.slane %v287, 2
      %v428 = vrot.slane %v288, 2
      %v429 = vsel %vm426, %v427, %v428
      %v430 = vrot.slane %v289, 2
      %v431 = vsel %vm426, %v428, %v430
      %v432 = vrot.slane %v290, 2
      %v433 = vsel %vm426, %v430, %v432
      %v434 = vrot.slane %v291, 2
      %v435 = vsel %vm426, %v432, %v434
      %v436 = vrot.slane %v292, 2
      %v437 = vsel %vm426, %v434, %v436
      %v438 = vrot.slane %v293, 2
      %v439 = vsel %vm426, %v436, %v438
      %v440 = vrot.slane %v294, 2
      %v441 = vsel %vm426, %v438, %v440
      %v442 = vrot.slane %v295, 2
      %v443 = vsel %vm426, %v440, %v442
      %v444 = vrot.slane %v296, 2
      %v445 = vsel %vm426, %v442, %v444
      %v446 = vrot.slane %v297, 2
      %v447 = vsel %vm426, %v444, %v446
      %v448 = vrot.slane %v298, 2
      %v449 = vsel %vm426, %v446, %v448
      %v450 = vrot.slane %v299, 2
      %v451 = vsel %vm426, %v448, %v450
      %v452 = vrot.slane %v300, 2
      %v453 = vsel %vm426, %v450, %v452
      %v454 = vrot.slane %v301, 2
      %v455 = vsel %vm426, %v452, %v454
      %v456 = vrot.slane %v302, 2
      %v457 = vsel %vm426, %v454, %v456
      %v458 = vrot.slane %v303, 2
      %v459 = vsel %vm426, %v456, %v458
      %v460 = vrot.slane %v304, 2
      %v461 = vsel %vm426, %v458, %v460
      %v462 = vrot.slane %v310, 2
      %v463 = vsel %vm426, %v460, %v462
      %464 = vrot.lane.b32.xlu0 %v429, 16
      %v465 = vpop.permute.xlu0 %464
      %466 = vrot.lane.b32.xlu0 %v431, 16
      %v467 = vpop.permute.xlu0 %466
      %468 = vrot.lane.b32.xlu0 %v433, 16
      %v469 = vpop.permute.xlu0 %468
      %470 = vrot.lane.b32.xlu0 %v435, 16
      %v471 = vpop.permute.xlu0 %470
      %472 = vrot.lane.b32.xlu0 %v437, 16
      %v473 = vpop.permute.xlu0 %472
      %474 = vrot.lane.b32.xlu0 %v439, 16
      %v475 = vpop.permute.xlu0 %474
      %476 = vrot.lane.b32.xlu0 %v441, 16
      %v477 = vpop.permute.xlu0 %476
      %478 = vrot.lane.b32.xlu0 %v443, 16
      %v479 = vpop.permute.xlu0 %478
      %480 = vrot.lane.b32.xlu0 %v445, 16
      %v481 = vpop.permute.xlu0 %480
      %482 = vrot.lane.b32.xlu0 %v447, 16
      %v483 = vpop.permute.xlu0 %482
      %484 = vrot.lane.b32.xlu0 %v449, 16
      %v485 = vpop.permute.xlu0 %484
      %486 = vrot.lane.b32.xlu0 %v451, 16
      %v487 = vpop.permute.xlu0 %486
      %488 = vrot.lane.b32.xlu0 %v453, 16
      %v489 = vpop.permute.xlu0 %488
      %490 = vrot.lane.b32.xlu0 %v455, 16
      %v491 = vpop.permute.xlu0 %490
      %492 = vrot.lane.b32.xlu0 %v457, 16
      %v493 = vpop.permute.xlu0 %492
      %494 = vrot.lane.b32.xlu0 %v459, 16
      %v495 = vpop.permute.xlu0 %494
      %496 = vrot.lane.b32.xlu0 %v461, 16
      %v497 = vpop.permute.xlu0 %496
      %498 = vrot.lane.b32.xlu0 %v463, 16
      %v499 = vpop.permute.xlu0 %498
      %v520 = vrot.slane %v311, 2
      %v521 = vsel %vm426, %v462, %v520
      %v522 = vrot.slane %v312, 2
      %v523 = vsel %vm426, %v520, %v522
      %524 = vrot.lane.b32.xlu0 %v433, 24
      %v525 = vpop.permute.xlu0 %524
      %526 = vrot.lane.b32.xlu0 %v435, 24
      %v527 = vpop.permute.xlu0 %526
      %528 = vrot.lane.b32.xlu0 %v437, 24
      %v529 = vpop.permute.xlu0 %528
      %530 = vrot.lane.b32.xlu0 %v439, 24
      %v531 = vpop.permute.xlu0 %530
      %532 = vrot.lane.b32.xlu0 %v441, 24
      %v533 = vpop.permute.xlu0 %532
      %534 = vrot.lane.b32.xlu0 %v443, 24
      %v535 = vpop.permute.xlu0 %534
      %536 = vrot.lane.b32.xlu0 %v445, 24
      %v537 = vpop.permute.xlu0 %536
      %538 = vrot.lane.b32.xlu0 %v447, 24
      %v539 = vpop.permute.xlu0 %538
      %540 = vrot.lane.b32.xlu0 %v449, 24
      %v541 = vpop.permute.xlu0 %540
      %542 = vrot.lane.b32.xlu0 %v451, 24
      %v543 = vpop.permute.xlu0 %542
      %544 = vrot.lane.b32.xlu0 %v453, 24
      %v545 = vpop.permute.xlu0 %544
      %546 = vrot.lane.b32.xlu0 %v455, 24
      %v547 = vpop.permute.xlu0 %546
      %548 = vrot.lane.b32.xlu0 %v457, 24
      %v549 = vpop.permute.xlu0 %548
      %550 = vrot.lane.b32.xlu0 %v459, 24
      %v551 = vpop.permute.xlu0 %550
      %552 = vrot.lane.b32.xlu0 %v461, 24
      %v553 = vpop.permute.xlu0 %552
      %554 = vrot.lane.b32.xlu0 %v463, 24
      %v555 = vpop.permute.xlu0 %554
      %556 = vrot.lane.b32.xlu0 %v521, 24
      %v557 = vpop.permute.xlu0 %556
      %558 = vrot.lane.b32.xlu0 %v523, 24
      %v559 = vpop.permute.xlu0 %558
      %vm578 = vcmask 1044480
      %v579 = vrot.slane %v289, 3
      %v580 = vrot.slane %v290, 3
      %v581 = vsel %vm578, %v579, %v580
      %v582 = vrot.slane %v291, 3
      %v583 = vsel %vm578, %v580, %v582
      %v584 = vrot.slane %v292, 3
      %v585 = vsel %vm578, %v582, %v584
      %v586 = vrot.slane %v293, 3
      %v587 = vsel %vm578, %v584, %v586
      %v588 = vrot.slane %v294, 3
      %v589 = vsel %vm578, %v586, %v588
      %v590 = vrot.slane %v295, 3
      %v591 = vsel %vm578, %v588, %v590
      %v592 = vrot.slane %v296, 3
      %v593 = vsel %vm578, %v590, %v592
      %v594 = vrot.slane %v297, 3
      %v595 = vsel %vm578, %v592, %v594
      %v596 = vrot.slane %v298, 3
      %v597 = vsel %vm578, %v594, %v596
      %v598 = vrot.slane %v299, 3
      %v599 = vsel %vm578, %v596, %v598
      %v600 = vrot.slane %v300, 3
      %v601 = vsel %vm578, %v598, %v600
      %v602 = vrot.slane %v301, 3
      %v603 = vsel %vm578, %v600, %v602
      %v604 = vrot.slane %v302, 3
      %v605 = vsel %vm578, %v602, %v604
      %v606 = vrot.slane %v303, 3
      %v607 = vsel %vm578, %v604, %v606
      %v608 = vrot.slane %v304, 3
      %v609 = vsel %vm578, %v606, %v608
      %v610 = vrot.slane %v310, 3
      %v611 = vsel %vm578, %v608, %v610
      %v612 = vrot.slane %v311, 3
      %v613 = vsel %vm578, %v610, %v612
      %v614 = vrot.slane %v312, 3
      %v615 = vsel %vm578, %v612, %v614
      %616 = vrot.lane.b32.xlu0 %v581, 32
      %v617 = vpop.permute.xlu0 %616
      %618 = vrot.lane.b32.xlu0 %v583, 32
      %v619 = vpop.permute.xlu0 %618
      %620 = vrot.lane.b32.xlu0 %v585, 32
      %v621 = vpop.permute.xlu0 %620
      %622 = vrot.lane.b32.xlu0 %v587, 32
      %v623 = vpop.permute.xlu0 %622
      %624 = vrot.lane.b32.xlu0 %v589, 32
      %v625 = vpop.permute.xlu0 %624
      %626 = vrot.lane.b32.xlu0 %v591, 32
      %v627 = vpop.permute.xlu0 %626
      %628 = vrot.lane.b32.xlu0 %v593, 32
      %v629 = vpop.permute.xlu0 %628
      %630 = vrot.lane.b32.xlu0 %v595, 32
      %v631 = vpop.permute.xlu0 %630
      %632 = vrot.lane.b32.xlu0 %v597, 32
      %v633 = vpop.permute.xlu0 %632
      %634 = vrot.lane.b32.xlu0 %v599, 32
      %v635 = vpop.permute.xlu0 %634
      %636 = vrot.lane.b32.xlu0 %v601, 32
      %v637 = vpop.permute.xlu0 %636
      %638 = vrot.lane.b32.xlu0 %v603, 32
      %v639 = vpop.permute.xlu0 %638
      %640 = vrot.lane.b32.xlu0 %v605, 32
      %v641 = vpop.permute.xlu0 %640
      %642 = vrot.lane.b32.xlu0 %v607, 32
      %v643 = vpop.permute.xlu0 %642
      %644 = vrot.lane.b32.xlu0 %v609, 32
      %v645 = vpop.permute.xlu0 %644
      %646 = vrot.lane.b32.xlu0 %v611, 32
      %v647 = vpop.permute.xlu0 %646
      %648 = vrot.lane.b32.xlu0 %v613, 32
      %v649 = vpop.permute.xlu0 %648
      %650 = vrot.lane.b32.xlu0 %v615, 32
      %v651 = vpop.permute.xlu0 %650
      %vm670 = vcmask 1043456
      %v671 = vrot.slane %v289, 4
      %v672 = vrot.slane %v290, 4
      %v673 = vsel %vm670, %v671, %v672
      %v674 = vrot.slane %v291, 4
      %v675 = vsel %vm670, %v672, %v674
      %v676 = vrot.slane %v292, 4
      %v677 = vsel %vm670, %v674, %v676
      %v678 = vrot.slane %v293, 4
      %v679 = vsel %vm670, %v676, %v678
      %v680 = vrot.slane %v294, 4
      %v681 = vsel %vm670, %v678, %v680
      %v682 = vrot.slane %v295, 4
      %v683 = vsel %vm670, %v680, %v682
      %v684 = vrot.slane %v296, 4
      %v685 = vsel %vm670, %v682, %v684
      %v686 = vrot.slane %v297, 4
      %v687 = vsel %vm670, %v684, %v686
      %v688 = vrot.slane %v298, 4
      %v689 = vsel %vm670, %v686, %v688
      %v690 = vrot.slane %v299, 4
      %v691 = vsel %vm670, %v688, %v690
      %v692 = vrot.slane %v300, 4
      %v693 = vsel %vm670, %v690, %v692
      %v694 = vrot.slane %v301, 4
      %v695 = vsel %vm670, %v692, %v694
      %v696 = vrot.slane %v302, 4
      %v697 = vsel %vm670, %v694, %v696
      %v698 = vrot.slane %v303, 4
      %v699 = vsel %vm670, %v696, %v698
      %v700 = vrot.slane %v304, 4
      %v701 = vsel %vm670, %v698, %v700
      %v702 = vrot.slane %v310, 4
      %v703 = vsel %vm670, %v700, %v702
      %v704 = vrot.slane %v311, 4
      %v705 = vsel %vm670, %v702, %v704
      %v706 = vrot.slane %v312, 4
      %v707 = vsel %vm670, %v704, %v706
      %708 = vrot.lane.b32.xlu0 %v673, 40
      %v709 = vpop.permute.xlu0 %708
      %710 = vrot.lane.b32.xlu0 %v675, 40
      %v711 = vpop.permute.xlu0 %710
      %712 = vrot.lane.b32.xlu0 %v677, 40
      %v713 = vpop.permute.xlu0 %712
      %714 = vrot.lane.b32.xlu0 %v679, 40
      %v715 = vpop.permute.xlu0 %714
      %716 = vrot.lane.b32.xlu0 %v681, 40
      %v717 = vpop.permute.xlu0 %716
      %718 = vrot.lane.b32.xlu0 %v683, 40
      %v719 = vpop.permute.xlu0 %718
      %720 = vrot.lane.b32.xlu0 %v685, 40
      %v721 = vpop.permute.xlu0 %720
      %722 = vrot.lane.b32.xlu0 %v687, 40
      %v723 = vpop.permute.xlu0 %722
      %724 = vrot.lane.b32.xlu0 %v689, 40
      %v725 = vpop.permute.xlu0 %724
      %726 = vrot.lane.b32.xlu0 %v691, 40
      %v727 = vpop.permute.xlu0 %726
      %728 = vrot.lane.b32.xlu0 %v693, 40
      %v729 = vpop.permute.xlu0 %728
      %730 = vrot.lane.b32.xlu0 %v695, 40
      %v731 = vpop.permute.xlu0 %730
      %732 = vrot.lane.b32.xlu0 %v697, 40
      %v733 = vpop.permute.xlu0 %732
      %734 = vrot.lane.b32.xlu0 %v699, 40
      %v735 = vpop.permute.xlu0 %734
      %736 = vrot.lane.b32.xlu0 %v701, 40
      %v737 = vpop.permute.xlu0 %736
      %738 = vrot.lane.b32.xlu0 %v703, 40
      %v739 = vpop.permute.xlu0 %738
      %740 = vrot.lane.b32.xlu0 %v705, 40
      %v741 = vpop.permute.xlu0 %740
      %742 = vrot.lane.b32.xlu0 %v707, 40
      %v743 = vpop.permute.xlu0 %742
      %v764 = vrot.slane %v313, 4
      %v765 = vsel %vm670, %v706, %v764
      %v766 = vrot.slane %v314, 4
      %v767 = vsel %vm670, %v764, %v766
      %768 = vrot.lane.b32.xlu0 %v677, 48
      %v769 = vpop.permute.xlu0 %768
      %770 = vrot.lane.b32.xlu0 %v679, 48
      %v771 = vpop.permute.xlu0 %770
      %772 = vrot.lane.b32.xlu0 %v681, 48
      %v773 = vpop.permute.xlu0 %772
      %774 = vrot.lane.b32.xlu0 %v683, 48
      %v775 = vpop.permute.xlu0 %774
      %776 = vrot.lane.b32.xlu0 %v685, 48
      %v777 = vpop.permute.xlu0 %776
      %778 = vrot.lane.b32.xlu0 %v687, 48
      %v779 = vpop.permute.xlu0 %778
      %780 = vrot.lane.b32.xlu0 %v689, 48
      %v781 = vpop.permute.xlu0 %780
      %782 = vrot.lane.b32.xlu0 %v691, 48
      %v783 = vpop.permute.xlu0 %782
      %784 = vrot.lane.b32.xlu0 %v693, 48
      %v785 = vpop.permute.xlu0 %784
      %786 = vrot.lane.b32.xlu0 %v695, 48
      %v787 = vpop.permute.xlu0 %786
      %788 = vrot.lane.b32.xlu0 %v697, 48
      %v789 = vpop.permute.xlu0 %788
      %790 = vrot.lane.b32.xlu0 %v699, 48
      %v791 = vpop.permute.xlu0 %790
      %792 = vrot.lane.b32.xlu0 %v701, 48
      %v793 = vpop.permute.xlu0 %792
      %794 = vrot.lane.b32.xlu0 %v703, 48
      %v795 = vpop.permute.xlu0 %794
      %796 = vrot.lane.b32.xlu0 %v705, 48
      %v797 = vpop.permute.xlu0 %796
      %798 = vrot.lane.b32.xlu0 %v707, 48
      %v799 = vpop.permute.xlu0 %798
      %800 = vrot.lane.b32.xlu0 %v765, 48
      %v801 = vpop.permute.xlu0 %800
      %802 = vrot.lane.b32.xlu0 %v767, 48
      %v803 = vpop.permute.xlu0 %802
      %vm822 = vcmask 1042432
      %v823 = vrot.slane %v291, 5
      %v824 = vrot.slane %v292, 5
      %v825 = vsel %vm822, %v823, %v824
      %v826 = vrot.slane %v293, 5
      %v827 = vsel %vm822, %v824, %v826
      %v828 = vrot.slane %v294, 5
      %v829 = vsel %vm822, %v826, %v828
      %v830 = vrot.slane %v295, 5
      %v831 = vsel %vm822, %v828, %v830
      %v832 = vrot.slane %v296, 5
      %v833 = vsel %vm822, %v830, %v832
      %v834 = vrot.slane %v297, 5
      %v835 = vsel %vm822, %v832, %v834
      %v836 = vrot.slane %v298, 5
      %v837 = vsel %vm822, %v834, %v836
      %v838 = vrot.slane %v299, 5
      %v839 = vsel %vm822, %v836, %v838
      %v840 = vrot.slane %v300, 5
      %v841 = vsel %vm822, %v838, %v840
      %v842 = vrot.slane %v301, 5
      %v843 = vsel %vm822, %v840, %v842
      %v844 = vrot.slane %v302, 5
      %v845 = vsel %vm822, %v842, %v844
      %v846 = vrot.slane %v303, 5
      %v847 = vsel %vm822, %v844, %v846
      %v848 = vrot.slane %v304, 5
      %v849 = vsel %vm822, %v846, %v848
      %v850 = vrot.slane %v310, 5
      %v851 = vsel %vm822, %v848, %v850
      %v852 = vrot.slane %v311, 5
      %v853 = vsel %vm822, %v850, %v852
      %v854 = vrot.slane %v312, 5
      %v855 = vsel %vm822, %v852, %v854
      %v856 = vrot.slane %v313, 5
      %v857 = vsel %vm822, %v854, %v856
      %v858 = vrot.slane %v314, 5
      %v859 = vsel %vm822, %v856, %v858
      %860 = vrot.lane.b32.xlu0 %v825, 56
      %v861 = vpop.permute.xlu0 %860
      %862 = vrot.lane.b32.xlu0 %v827, 56
      %v863 = vpop.permute.xlu0 %862
      %864 = vrot.lane.b32.xlu0 %v829, 56
      %v865 = vpop.permute.xlu0 %864
      %866 = vrot.lane.b32.xlu0 %v831, 56
      %v867 = vpop.permute.xlu0 %866
      %868 = vrot.lane.b32.xlu0 %v833, 56
      %v869 = vpop.permute.xlu0 %868
      %870 = vrot.lane.b32.xlu0 %v835, 56
      %v871 = vpop.permute.xlu0 %870
      %872 = vrot.lane.b32.xlu0 %v837, 56
      %v873 = vpop.permute.xlu0 %872
      %874 = vrot.lane.b32.xlu0 %v839, 56
      %v875 = vpop.permute.xlu0 %874
      %876 = vrot.lane.b32.xlu0 %v841, 56
      %v877 = vpop.permute.xlu0 %876
      %878 = vrot.lane.b32.xlu0 %v843, 56
      %v879 = vpop.permute.xlu0 %878
      %880 = vrot.lane.b32.xlu0 %v845, 56
      %v881 = vpop.permute.xlu0 %880
      %882 = vrot.lane.b32.xlu0 %v847, 56
      %v883 = vpop.permute.xlu0 %882
      %884 = vrot.lane.b32.xlu0 %v849, 56
      %v885 = vpop.permute.xlu0 %884
      %886 = vrot.lane.b32.xlu0 %v851, 56
      %v887 = vpop.permute.xlu0 %886
      %888 = vrot.lane.b32.xlu0 %v853, 56
      %v889 = vpop.permute.xlu0 %888
      %890 = vrot.lane.b32.xlu0 %v855, 56
      %v891 = vpop.permute.xlu0 %890
      %892 = vrot.lane.b32.xlu0 %v857, 56
      %v893 = vpop.permute.xlu0 %892
      %894 = vrot.lane.b32.xlu0 %v859, 56
      %v895 = vpop.permute.xlu0 %894
      %vm914 = vcmask 1041408
      %v915 = vrot.slane %v291, 6
      %v916 = vrot.slane %v292, 6
      %v917 = vsel %vm914, %v915, %v916
      %v918 = vrot.slane %v293, 6
      %v919 = vsel %vm914, %v916, %v918
      %v920 = vrot.slane %v294, 6
      %v921 = vsel %vm914, %v918, %v920
      %v922 = vrot.slane %v295, 6
      %v923 = vsel %vm914, %v920, %v922
      %v924 = vrot.slane %v296, 6
      %v925 = vsel %vm914, %v922, %v924
      %v926 = vrot.slane %v297, 6
      %v927 = vsel %vm914, %v924, %v926
      %v928 = vrot.slane %v298, 6
      %v929 = vsel %vm914, %v926, %v928
      %v930 = vrot.slane %v299, 6
      %v931 = vsel %vm914, %v928, %v930
      %v932 = vrot.slane %v300, 6
      %v933 = vsel %vm914, %v930, %v932
      %v934 = vrot.slane %v301, 6
      %v935 = vsel %vm914, %v932, %v934
      %v936 = vrot.slane %v302, 6
      %v937 = vsel %vm914, %v934, %v936
      %v938 = vrot.slane %v303, 6
      %v939 = vsel %vm914, %v936, %v938
      %v940 = vrot.slane %v304, 6
      %v941 = vsel %vm914, %v938, %v940
      %v942 = vrot.slane %v310, 6
      %v943 = vsel %vm914, %v940, %v942
      %v944 = vrot.slane %v311, 6
      %v945 = vsel %vm914, %v942, %v944
      %v946 = vrot.slane %v312, 6
      %v947 = vsel %vm914, %v944, %v946
      %v948 = vrot.slane %v313, 6
      %v949 = vsel %vm914, %v946, %v948
      %v950 = vrot.slane %v314, 6
      %v951 = vsel %vm914, %v948, %v950
      %952 = vrot.lane.b32.xlu0 %v917, 64
      %v953 = vpop.permute.xlu0 %952
      %954 = vrot.lane.b32.xlu0 %v919, 64
      %v955 = vpop.permute.xlu0 %954
      %956 = vrot.lane.b32.xlu0 %v921, 64
      %v957 = vpop.permute.xlu0 %956
      %958 = vrot.lane.b32.xlu0 %v923, 64
      %v959 = vpop.permute.xlu0 %958
      %960 = vrot.lane.b32.xlu0 %v925, 64
      %v961 = vpop.permute.xlu0 %960
      %962 = vrot.lane.b32.xlu0 %v927, 64
      %v963 = vpop.permute.xlu0 %962
      %964 = vrot.lane.b32.xlu0 %v929, 64
      %v965 = vpop.permute.xlu0 %964
      %966 = vrot.lane.b32.xlu0 %v931, 64
      %v967 = vpop.permute.xlu0 %966
      %968 = vrot.lane.b32.xlu0 %v933, 64
      %v969 = vpop.permute.xlu0 %968
      %970 = vrot.lane.b32.xlu0 %v935, 64
      %v971 = vpop.permute.xlu0 %970
      %972 = vrot.lane.b32.xlu0 %v937, 64
      %v973 = vpop.permute.xlu0 %972
      %974 = vrot.lane.b32.xlu0 %v939, 64
      %v975 = vpop.permute.xlu0 %974
      %976 = vrot.lane.b32.xlu0 %v941, 64
      %v977 = vpop.permute.xlu0 %976
      %978 = vrot.lane.b32.xlu0 %v943, 64
      %v979 = vpop.permute.xlu0 %978
      %980 = vrot.lane.b32.xlu0 %v945, 64
      %v981 = vpop.permute.xlu0 %980
      %982 = vrot.lane.b32.xlu0 %v947, 64
      %v983 = vpop.permute.xlu0 %982
      %984 = vrot.lane.b32.xlu0 %v949, 64
      %v985 = vpop.permute.xlu0 %984
      %986 = vrot.lane.b32.xlu0 %v951, 64
      %v987 = vpop.permute.xlu0 %986
      %vm1006 = vcmask 64512
      %v1007 = vsel %vm1006, %v287, %v373
      %v1008 = vsel %vm1006, %v288, %v375
      %v1009 = vsel %vm1006, %v289, %v377
      %v1010 = vsel %vm1006, %v290, %v379
      %v1011 = vsel %vm1006, %v291, %v381
      %v1012 = vsel %vm1006, %v292, %v383
      %v1013 = vsel %vm1006, %v293, %v385
      %v1014 = vsel %vm1006, %v294, %v387
      %v1015 = vsel %vm1006, %v295, %v389
      %v1016 = vsel %vm1006, %v296, %v391
      %v1017 = vsel %vm1006, %v297, %v393
      %v1018 = vsel %vm1006, %v298, %v395
      %v1019 = vsel %vm1006, %v299, %v397
      %v1020 = vsel %vm1006, %v300, %v399
      %v1021 = vsel %vm1006, %v301, %v401
      %v1022 = vsel %vm1006, %v302, %v403
      %v1023 = vsel %vm1006, %v303, %v405
      %v1024 = vsel %vm1006, %v304, %v407
      %vm1025 = vcmask 130048
      %v1026 = vsel %vm1025, %v1007, %v465
      %v1027 = vsel %vm1025, %v1008, %v467
      %v1028 = vsel %vm1025, %v1009, %v469
      %v1029 = vsel %vm1025, %v1010, %v471
      %v1030 = vsel %vm1025, %v1011, %v473
      %v1031 = vsel %vm1025, %v1012, %v475
      %v1032 = vsel %vm1025, %v1013, %v477
      %v1033 = vsel %vm1025, %v1014, %v479
      %v1034 = vsel %vm1025, %v1015, %v481
      %v1035 = vsel %vm1025, %v1016, %v483
      %v1036 = vsel %vm1025, %v1017, %v485
      %v1037 = vsel %vm1025, %v1018, %v487
      %v1038 = vsel %vm1025, %v1019, %v489
      %v1039 = vsel %vm1025, %v1020, %v491
      %v1040 = vsel %vm1025, %v1021, %v493
      %v1041 = vsel %vm1025, %v1022, %v495
      %v1042 = vsel %vm1025, %v1023, %v497
      %v1043 = vsel %vm1025, %v1024, %v499
      %vm1044 = vcmask 195584
      %v1045 = vsel %vm1044, %v1026, %v525
      %v1046 = vsel %vm1044, %v1027, %v527
      %v1047 = vsel %vm1044, %v1028, %v529
      %v1048 = vsel %vm1044, %v1029, %v531
      %v1049 = vsel %vm1044, %v1030, %v533
      %v1050 = vsel %vm1044, %v1031, %v535
      %v1051 = vsel %vm1044, %v1032, %v537
      %v1052 = vsel %vm1044, %v1033, %v539
      %v1053 = vsel %vm1044, %v1034, %v541
      %v1054 = vsel %vm1044, %v1035, %v543
      %v1055 = vsel %vm1044, %v1036, %v545
      %v1056 = vsel %vm1044, %v1037, %v547
      %v1057 = vsel %vm1044, %v1038, %v549
      %v1058 = vsel %vm1044, %v1039, %v551
      %v1059 = vsel %vm1044, %v1040, %v553
      %v1060 = vsel %vm1044, %v1041, %v555
      %v1061 = vsel %vm1044, %v1042, %v557
      %v1062 = vsel %vm1044, %v1043, %v559
      %vm1063 = vcmask 261120
      %v1064 = vsel %vm1063, %v1045, %v617
      %v1065 = vsel %vm1063, %v1046, %v619
      %v1066 = vsel %vm1063, %v1047, %v621
      %v1067 = vsel %vm1063, %v1048, %v623
      %v1068 = vsel %vm1063, %v1049, %v625
      %v1069 = vsel %vm1063, %v1050, %v627
      %v1070 = vsel %vm1063, %v1051, %v629
      %v1071 = vsel %vm1063, %v1052, %v631
      %v1072 = vsel %vm1063, %v1053, %v633
      %v1073 = vsel %vm1063, %v1054, %v635
      %v1074 = vsel %vm1063, %v1055, %v637
      %v1075 = vsel %vm1063, %v1056, %v639
      %v1076 = vsel %vm1063, %v1057, %v641
      %v1077 = vsel %vm1063, %v1058, %v643
      %v1078 = vsel %vm1063, %v1059, %v645
      %v1079 = vsel %vm1063, %v1060, %v647
      %v1080 = vsel %vm1063, %v1061, %v649
      %v1081 = vsel %vm1063, %v1062, %v651
      %vm1082 = vcmask 326656
      %v1083 = vsel %vm1082, %v1064, %v709
      %v1084 = vsel %vm1082, %v1065, %v711
      %v1085 = vsel %vm1082, %v1066, %v713
      %v1086 = vsel %vm1082, %v1067, %v715
      %v1087 = vsel %vm1082, %v1068, %v717
      %v1088 = vsel %vm1082, %v1069, %v719
      %v1089 = vsel %vm1082, %v1070, %v721
      %v1090 = vsel %vm1082, %v1071, %v723
      %v1091 = vsel %vm1082, %v1072, %v725
      %v1092 = vsel %vm1082, %v1073, %v727
      %v1093 = vsel %vm1082, %v1074, %v729
      %v1094 = vsel %vm1082, %v1075, %v731
      %v1095 = vsel %vm1082, %v1076, %v733
      %v1096 = vsel %vm1082, %v1077, %v735
      %v1097 = vsel %vm1082, %v1078, %v737
      %v1098 = vsel %vm1082, %v1079, %v739
      %v1099 = vsel %vm1082, %v1080, %v741
      %v1100 = vsel %vm1082, %v1081, %v743
      %vm1101 = vcmask 392192
      %v1102 = vsel %vm1101, %v1083, %v769
      %v1103 = vsel %vm1101, %v1084, %v771
      %v1104 = vsel %vm1101, %v1085, %v773
      %v1105 = vsel %vm1101, %v1086, %v775
      %v1106 = vsel %vm1101, %v1087, %v777
      %v1107 = vsel %vm1101, %v1088, %v779
      %v1108 = vsel %vm1101, %v1089, %v781
      %v1109 = vsel %vm1101, %v1090, %v783
      %v1110 = vsel %vm1101, %v1091, %v785
      %v1111 = vsel %vm1101, %v1092, %v787
      %v1112 = vsel %vm1101, %v1093, %v789
      %v1113 = vsel %vm1101, %v1094, %v791
      %v1114 = vsel %vm1101, %v1095, %v793
      %v1115 = vsel %vm1101, %v1096, %v795
      %v1116 = vsel %vm1101, %v1097, %v797
      %v1117 = vsel %vm1101, %v1098, %v799
      %v1118 = vsel %vm1101, %v1099, %v801
      %v1119 = vsel %vm1101, %v1100, %v803
      %vm1120 = vcmask 457728
      %v1121 = vsel %vm1120, %v1102, %v861
      %v1122 = vsel %vm1120, %v1103, %v863
      %v1123 = vsel %vm1120, %v1104, %v865
      %v1124 = vsel %vm1120, %v1105, %v867
      %v1125 = vsel %vm1120, %v1106, %v869
      %v1126 = vsel %vm1120, %v1107, %v871
      %v1127 = vsel %vm1120, %v1108, %v873
      %v1128 = vsel %vm1120, %v1109, %v875
      %v1129 = vsel %vm1120, %v1110, %v877
      %v1130 = vsel %vm1120, %v1111, %v879
      %v1131 = vsel %vm1120, %v1112, %v881
      %v1132 = vsel %vm1120, %v1113, %v883
      %v1133 = vsel %vm1120, %v1114, %v885
      %v1134 = vsel %vm1120, %v1115, %v887
      %v1135 = vsel %vm1120, %v1116, %v889
      %v1136 = vsel %vm1120, %v1117, %v891
      %v1137 = vsel %vm1120, %v1118, %v893
      %v1138 = vsel %vm1120, %v1119, %v895
      %vm1139 = vcmask 523264
      %v1140 = vsel %vm1139, %v1121, %v953
      %v1141 = vsel %vm1139, %v1122, %v955
      %v1142 = vsel %vm1139, %v1123, %v957
      %v1143 = vsel %vm1139, %v1124, %v959
      %v1144 = vsel %vm1139, %v1125, %v961
      %v1145 = vsel %vm1139, %v1126, %v963
      %v1146 = vsel %vm1139, %v1127, %v965
      %v1147 = vsel %vm1139, %v1128, %v967
      %v1148 = vsel %vm1139, %v1129, %v969
      %v1149 = vsel %vm1139, %v1130, %v971
      %v1150 = vsel %vm1139, %v1131, %v973
      %v1151 = vsel %vm1139, %v1132, %v975
      %v1152 = vsel %vm1139, %v1133, %v977
      %v1153 = vsel %vm1139, %v1134, %v979
      %v1154 = vsel %vm1139, %v1135, %v981
      %v1155 = vsel %vm1139, %v1136, %v983
      %v1156 = vsel %vm1139, %v1137, %v985
      %v1157 = vsel %vm1139, %v1138, %v987
      %v1158 = vpack.c.bf16 %v1141, %v1140
      %v1159 = vpack.c.bf16 %v1143, %v1142
      %v1160 = vpack.c.bf16 %v1145, %v1144
      %v1161 = vpack.c.bf16 %v1147, %v1146
      %v1162 = vpack.c.bf16 %v1149, %v1148
      %v1163 = vpack.c.bf16 %v1151, %v1150
      %v1164 = vpack.c.bf16 %v1153, %v1152
      %v1165 = vpack.c.bf16 %v1155, %v1154
      %v1166 = vpack.c.bf16 %v1157, %v1156
      %v1167 = vld [vmem:[%s2] sm:$0xf]
      %v1168 = vld [vmem:[%s2 + $0x4] sm:$0xf]
      %v1169 = vld [vmem:[%s2 + $0x8] sm:$0xf]
      %v1170 = vld [vmem:[%s2 + $0xc] sm:$0xf]
      %v1171 = vld [vmem:[%s2 + $0x10] sm:$0xf]
      %v1172 = vld [vmem:[%s2 + $0x14] sm:$0xf]
      %v1173 = vld [vmem:[%s2 + $0x18] sm:$0xf]
      %v1174 = vld [vmem:[%s2 + $0x1c] sm:$0xf]
      %v1175 = vld [vmem:[%s2 + $0x20] sm:$0xf]
      %v1185 = vunpack.c.l.b16 %v1167
      %v1186 = vunpack.c.l.b16 %v1168
      %v1187 = vunpack.c.l.b16 %v1169
      %v1188 = vunpack.c.l.b16 %v1170
      %v1189 = vunpack.c.l.b16 %v1171
      %v1190 = vunpack.c.l.b16 %v1172
      %v1191 = vunpack.c.l.b16 %v1173
      %v1192 = vunpack.c.l.b16 %v1174
      %v1193 = vunpack.c.l.b16 %v1175
      %v1194 = vpack.c.b16 %v1186, %v1185
      %v1195 = vpack.c.b16 %v1188, %v1187
      %v1196 = vpack.c.b16 %v1190, %v1189
      %v1197 = vpack.c.b16 %v1192, %v1191
      %v1198 = vpack.c.b16 %v1193, %v1193
      %vm1203 = vcmask 588800
      %v1205 = vsel %vm1203, %v1158, 0
      %v1208 = vsel %vm1203, %v1159, 0
      %v1211 = vsel %vm1203, %v1160, 0
      %v1214 = vsel %vm1203, %v1161, 0
      %v1217 = vsel %vm1203, %v1162, 0
      %v1220 = vsel %vm1203, %v1163, 0
      %v1223 = vsel %vm1203, %v1164, 0
      %v1226 = vsel %vm1203, %v1165, 0
      %v1229 = vsel %vm1203, %v1166, 0
      %v1232 = vsel %vm670, %v1198, 0
      %1234 = vmatprep.subr.bf16.mxu0 0
      %1235 = vmatpush1.bf16.msra.mxu0 %v1194
      %1236 = vmatprep.subr.bf16.mxu0 0
      %1237 = vmatpush1.bf16.msra.mxu0 %v1195
      %1238 = vmatprep.subr.bf16.mxu0 0
      %1239 = vmatpush1.bf16.msra.mxu0 %v1196
      %1240 = vmatprep.subr.bf16.mxu0 0
      %1241 = vmatpush1.bf16.msra.mxu0 %v1197
      %1242 = vmatprep.subr.bf16.mxu0 0
      %1243 = vmatpush1.bf16.msra.mxu0 %v1232
      %1244 = vmatprep.subr.bf16.mxu0 0
      %1245 = vmatpush1.bf16.msra.mxu0 0
      %1246 = vmatprep.subr.bf16.mxu0 0
      %1247 = vmatpush1.bf16.msra.mxu0 0
      %1248 = vmatprep.subr.bf16.mxu0 0
      %1249 = vmatpush1.bf16.msra.mxu0 0
      %1250 = vmatprep.subr.bf16.mxu0 0
      %1251 = vmatpush1.bf16.msra.mxu0 0
      %1252 = vmatprep.subr.bf16.mxu0 0
      %1253 = vmatpush1.bf16.msra.mxu0 0
      %1254 = vmatprep.subr.bf16.mxu0 0
      %1255 = vmatpush1.bf16.msra.mxu0 0
      %1256 = vmatprep.subr.bf16.mxu0 0
      %1257 = vmatpush1.bf16.msra.mxu0 0
      %1258 = vmatprep.subr.bf16.mxu0 0
      %1259 = vmatpush1.bf16.msra.mxu0 0
      %1260 = vmatprep.subr.bf16.mxu0 0
      %1261 = vmatpush1.bf16.msra.mxu0 0
      %1262 = vmatprep.subr.bf16.mxu0 0
      %1263 = vmatpush1.bf16.msra.mxu0 0
      %1264 = vmatprep.subr.bf16.mxu0 0
      %1265 = vmatpush1.bf16.msra.mxu0 0
      %1266 = vmatprep.mubr.bf16.mxu0 0
      %1267 = vmatmul.mubr.bf16.gmra.mrb[0].mxu0 %v1205
      %v1268 = vpop.f32.mrb[0].mxu0
      %v1269 = vadd.f32 0.0, %v1268
      %v1270 = vpop.f32.mrb[0].mxu0
      %v1271 = vpop.f32.mrb[0].mxu0
      %v1272 = vadd.f32 0.0, %v1271
      %v1273 = vpop.f32.mrb[0].mxu0
      %1274 = vmatprep.mubr.bf16.mxu0 0
      %1275 = vmatmul.mubr.bf16.gmra.mrb[0].mxu0 %v1208
      %v1276 = vpop.f32.mrb[0].mxu0
      %v1277 = vadd.f32 0.0, %v1276
      %v1278 = vpop.f32.mrb[0].mxu0
      %v1279 = vpop.f32.mrb[0].mxu0
      %v1280 = vadd.f32 0.0, %v1279
      %v1281 = vpop.f32.mrb[0].mxu0
      %1282 = vmatprep.mubr.bf16.mxu0 0
      %1283 = vmatmul.mubr.bf16.gmra.mrb[0].mxu0 %v1211
      %v1284 = vpop.f32.mrb[0].mxu0
      %v1285 = vadd.f32 0.0, %v1284
      %v1286 = vpop.f32.mrb[0].mxu0
      %v1287 = vpop.f32.mrb[0].mxu0
      %v1288 = vadd.f32 0.0, %v1287
      %v1289 = vpop.f32.mrb[0].mxu0
      %1290 = vmatprep.mubr.bf16.mxu0 0
      %1291 = vmatmul.mubr.bf16.gmra.mrb[0].mxu0 %v1214
      %v1292 = vpop.f32.mrb[0].mxu0
      %v1293 = vadd.f32 0.0, %v1292
      %v1294 = vpop.f32.mrb[0].mxu0
      %v1295 = vpop.f32.mrb[0].mxu0
      %v1296 = vadd.f32 0.0, %v1295
      %v1297 = vpop.f32.mrb[0].mxu0
      %1298 = vmatprep.mubr.bf16.mxu0 0
      %1299 = vmatmul.mubr.bf16.gmra.mrb[0].mxu0 %v1217
      %v1300 = vpop.f32.mrb[0].mxu0
      %v1301 = vadd.f32 0.0, %v1300
      %v1302 = vpop.f32.mrb[0].mxu0
      %v1303 = vpop.f32.mrb[0].mxu0
      %v1304 = vadd.f32 0.0, %v1303
      %v1305 = vpop.f32.mrb[0].mxu0
      %1306 = vmatprep.mubr.bf16.mxu0 0
      %1307 = vmatmul.mubr.bf16.gmra.mrb[0].mxu0 %v1220
      %v1308 = vpop.f32.mrb[0].mxu0
      %v1309 = vadd.f32 0.0, %v1308
      %v1310 = vpop.f32.mrb[0].mxu0
      %v1311 = vpop.f32.mrb[0].mxu0
      %v1312 = vadd.f32 0.0, %v1311
      %v1313 = vpop.f32.mrb[0].mxu0
      %1314 = vmatprep.mubr.bf16.mxu0 0
      %1315 = vmatmul.mubr.bf16.gmra.mrb[0].mxu0 %v1223
      %v1316 = vpop.f32.mrb[0].mxu0
      %v1317 = vadd.f32 0.0, %v1316
      %v1318 = vpop.f32.mrb[0].mxu0
      %v1319 = vpop.f32.mrb[0].mxu0
      %v1320 = vadd.f32 0.0, %v1319
      %v1321 = vpop.f32.mrb[0].mxu0
      %1322 = vmatprep.mubr.bf16.mxu0 0
      %1323 = vmatmul.mubr.bf16.gmra.mrb[0].mxu0 %v1226
      %v1324 = vpop.f32.mrb[0].mxu0
      %v1325 = vadd.f32 0.0, %v1324
      %v1326 = vpop.f32.mrb[0].mxu0
      %v1327 = vpop.f32.mrb[0].mxu0
      %v1328 = vadd.f32 0.0, %v1327
      %v1329 = vpop.f32.mrb[0].mxu0
      %1330 = vmatprep.mubr.bf16.mxu0 0
      %1331 = vmatmul.mubr.bf16.gmra.mrb[0].mxu0 %v1229
      %v1332 = vpop.f32.mrb[0].mxu0
      %v1333 = vadd.f32 0.0, %v1332
      %v1334 = vpop.f32.mrb[0].mxu0
      %v1335 = vpop.f32.mrb[0].mxu0
      %v1336 = vadd.f32 0.0, %v1335
      %v1337 = vpop.f32.mrb[0].mxu0
      %1338 = vdwg.mxu0
      %v1339 = vpack.c.bf16 %v1272, %v1269
      %v1340 = vpack.c.bf16 %v1280, %v1277
      %v1341 = vpack.c.bf16 %v1288, %v1285
      %v1342 = vpack.c.bf16 %v1296, %v1293
      %v1343 = vpack.c.bf16 %v1304, %v1301
      %v1344 = vpack.c.bf16 %v1312, %v1309
      %v1345 = vpack.c.bf16 %v1320, %v1317
      %v1346 = vpack.c.bf16 %v1328, %v1325
      %v1347 = vpack.c.bf16 %v1336, %v1333
      %v1357 = vunpack.c.l.b16 %v1339
      %v1358 = vunpack.c.h.b16 %v1339
      %v1359 = vunpack.c.l.b16 %v1340
      %v1360 = vunpack.c.h.b16 %v1340
      %v1361 = vunpack.c.l.b16 %v1341
      %v1362 = vunpack.c.h.b16 %v1341
      %v1363 = vunpack.c.l.b16 %v1342
      %v1364 = vunpack.c.h.b16 %v1342
      %v1365 = vunpack.c.l.b16 %v1343
      %v1366 = vunpack.c.h.b16 %v1343
      %v1367 = vunpack.c.l.b16 %v1344
      %v1368 = vunpack.c.h.b16 %v1344
      %v1369 = vunpack.c.l.b16 %v1345
      %v1370 = vunpack.c.h.b16 %v1345
      %v1371 = vunpack.c.l.b16 %v1346
      %v1372 = vunpack.c.h.b16 %v1346
      %v1373 = vunpack.c.l.b16 %v1347
      %v1374 = vunpack.c.h.b16 %v1347
      %v1375 = vpack.c.b16 %v1357, %v1357
      %v1376 = vpack.c.b16 %v1358, %v1358
      %v1377 = vpack.c.b16 %v1359, %v1359
      %v1378 = vpack.c.b16 %v1360, %v1360
      %v1379 = vpack.c.b16 %v1361, %v1361
      %v1380 = vpack.c.b16 %v1362, %v1362
      %v1381 = vpack.c.b16 %v1363, %v1363
      %v1382 = vpack.c.b16 %v1364, %v1364
      %v1383 = vpack.c.b16 %v1365, %v1365
      %v1384 = vpack.c.b16 %v1366, %v1366
      %v1385 = vpack.c.b16 %v1367, %v1367
      %v1386 = vpack.c.b16 %v1368, %v1368
      %v1387 = vpack.c.b16 %v1369, %v1369
      %v1388 = vpack.c.b16 %v1370, %v1370
      %v1389 = vpack.c.b16 %v1371, %v1371
      %v1390 = vpack.c.b16 %v1372, %v1372
      %v1391 = vpack.c.b16 %v1373, %v1373
      %v1392 = vpack.c.b16 %v1374, %v1374
      %1411 = vst [vmem:[%s262] sm:$0xf] %v1375
      %1412 = vst [vmem:[%s262 + $0x4] sm:$0xf] %v1376
      %1413 = vst [vmem:[%s262 + $0x8] sm:$0xf] %v1377
      %1414 = vst [vmem:[%s262 + $0xc] sm:$0xf] %v1378
      %1415 = vst [vmem:[%s262 + $0x10] sm:$0xf] %v1379
      %1416 = vst [vmem:[%s262 + $0x14] sm:$0xf] %v1380
      %1417 = vst [vmem:[%s262 + $0x18] sm:$0xf] %v1381
      %1418 = vst [vmem:[%s262 + $0x1c] sm:$0xf] %v1382
      %1419 = vst [vmem:[%s262 + $0x20] sm:$0xf] %v1383
      %1420 = vst [vmem:[%s262 + $0x24] sm:$0xf] %v1384
      %1421 = vst [vmem:[%s262 + $0x28] sm:$0xf] %v1385
      %1422 = vst [vmem:[%s262 + $0x2c] sm:$0xf] %v1386
      %1423 = vst [vmem:[%s262 + $0x30] sm:$0xf] %v1387
      %1424 = vst [vmem:[%s262 + $0x34] sm:$0xf] %v1388
      %1425 = vst [vmem:[%s262 + $0x38] sm:$0xf] %v1389
      %1426 = vst [vmem:[%s262 + $0x3c] sm:$0xf] %v1390
      %1427 = vst [vmem:[%s262 + $0x40] sm:$0xf] %v1391
      %1428 = vst [vmem:[%s262 + $0x44] sm:$0xf] %v1392
      %1429 = vset.pattern.permute.xlu0 8
      %1430 = vperm.xlu0 %1429, %v287
      %v1431 = vpop.permute.xlu0 %1430
      %1433 = vset.pattern.permute.xlu0 8
      %1434 = vperm.xlu0 %1433, %v288
      %v1435 = vpop.permute.xlu0 %1434
      %1437 = vset.pattern.permute.xlu0 8
      %1438 = vperm.xlu0 %1437, %v289
      %v1439 = vpop.permute.xlu0 %1438
      %1441 = vset.pattern.permute.xlu0 8
      %1442 = vperm.xlu0 %1441, %v290
      %v1443 = vpop.permute.xlu0 %1442
      %1445 = vset.pattern.permute.xlu0 8
      %1446 = vperm.xlu0 %1445, %v291
      %v1447 = vpop.permute.xlu0 %1446
      %1449 = vset.pattern.permute.xlu0 8
      %1450 = vperm.xlu0 %1449, %v292
      %v1451 = vpop.permute.xlu0 %1450
      %1453 = vset.pattern.permute.xlu0 8
      %1454 = vperm.xlu0 %1453, %v293
      %v1455 = vpop.permute.xlu0 %1454
      %1457 = vset.pattern.permute.xlu0 8
      %1458 = vperm.xlu0 %1457, %v294
      %v1459 = vpop.permute.xlu0 %1458
      %1461 = vset.pattern.permute.xlu0 8
      %1462 = vperm.xlu0 %1461, %v295
      %v1463 = vpop.permute.xlu0 %1462
      %1465 = vset.pattern.permute.xlu0 8
      %1466 = vperm.xlu0 %1465, %v296
      %v1467 = vpop.permute.xlu0 %1466
      %1469 = vset.pattern.permute.xlu0 8
      %1470 = vperm.xlu0 %1469, %v297
      %v1471 = vpop.permute.xlu0 %1470
      %1473 = vset.pattern.permute.xlu0 8
      %1474 = vperm.xlu0 %1473, %v298
      %v1475 = vpop.permute.xlu0 %1474
      %1477 = vset.pattern.permute.xlu0 8
      %1478 = vperm.xlu0 %1477, %v299
      %v1479 = vpop.permute.xlu0 %1478
      %1481 = vset.pattern.permute.xlu0 8
      %1482 = vperm.xlu0 %1481, %v300
      %v1483 = vpop.permute.xlu0 %1482
      %1485 = vset.pattern.permute.xlu0 8
      %1486 = vperm.xlu0 %1485, %v301
      %v1487 = vpop.permute.xlu0 %1486
      %1489 = vset.pattern.permute.xlu0 8
      %1490 = vperm.xlu0 %1489, %v302
      %v1491 = vpop.permute.xlu0 %1490
      %1493 = vset.pattern.permute.xlu0 8
      %1494 = vperm.xlu0 %1493, %v303
      %v1495 = vpop.permute.xlu0 %1494
      %1497 = vset.pattern.permute.xlu0 8
      %1498 = vperm.xlu0 %1497, %v304
      %v1499 = vpop.permute.xlu0 %1498
      %v1501 = vmul.f32 %v1269, %v1431
      %v1502 = vmul.f32 %v1272, %v1435
      %v1503 = vmul.f32 %v1277, %v1439
      %v1504 = vmul.f32 %v1280, %v1443
      %v1505 = vmul.f32 %v1285, %v1447
      %v1506 = vmul.f32 %v1288, %v1451
      %v1507 = vmul.f32 %v1293, %v1455
      %v1508 = vmul.f32 %v1296, %v1459
      %v1509 = vmul.f32 %v1301, %v1463
      %v1510 = vmul.f32 %v1304, %v1467
      %v1511 = vmul.f32 %v1309, %v1471
      %v1512 = vmul.f32 %v1312, %v1475
      %v1513 = vmul.f32 %v1317, %v1479
      %v1514 = vmul.f32 %v1320, %v1483
      %v1515 = vmul.f32 %v1325, %v1487
      %v1516 = vmul.f32 %v1328, %v1491
      %v1517 = vmul.f32 %v1333, %v1495
      %v1518 = vmul.f32 %v1336, %v1499
      %v1519 = vadd.f32 %v1501, %v1502
      %v1520 = vadd.f32 %v1519, %v1503
      %v1521 = vadd.f32 %v1520, %v1504
      %v1522 = vadd.f32 %v1521, %v1505
      %v1523 = vadd.f32 %v1522, %v1506
      %v1524 = vadd.f32 %v1523, %v1507
      %v1525 = vadd.f32 %v1524, %v1508
      %v1526 = vadd.f32 %v1525, %v1509
      %v1527 = vadd.f32 %v1526, %v1510
      %v1528 = vadd.f32 %v1527, %v1511
      %v1529 = vadd.f32 %v1528, %v1512
      %v1530 = vadd.f32 %v1529, %v1513
      %v1531 = vadd.f32 %v1530, %v1514
      %v1532 = vadd.f32 %v1531, %v1515
      %v1533 = vadd.f32 %v1532, %v1516
      %v1534 = vadd.f32 %v1533, %v1517
      %v1535 = vadd.f32 %v1534, %v1518
      %v1536 = vrot.slane %v1535, 4
      %v1537 = vadd.f32 %v1535, %v1536
      %v1538 = vrot.slane %v1537, 2
      %v1539 = vadd.f32 %v1537, %v1538
      %v1540 = vrot.slane %v1539, 1
      %v1541 = vadd.f32 %v1539, %v1540
      %v1542 = vmul.f32 %v1269, %v1501
      %v1543 = vmul.f32 %v1272, %v1502
      %v1544 = vmul.f32 %v1277, %v1503
      %v1545 = vmul.f32 %v1280, %v1504
      %v1546 = vmul.f32 %v1285, %v1505
      %v1547 = vmul.f32 %v1288, %v1506
      %v1548 = vmul.f32 %v1293, %v1507
      %v1549 = vmul.f32 %v1296, %v1508
      %v1550 = vmul.f32 %v1301, %v1509
      %v1551 = vmul.f32 %v1304, %v1510
      %v1552 = vmul.f32 %v1309, %v1511
      %v1553 = vmul.f32 %v1312, %v1512
      %v1554 = vmul.f32 %v1317, %v1513
      %v1555 = vmul.f32 %v1320, %v1514
      %v1556 = vmul.f32 %v1325, %v1515
      %v1557 = vmul.f32 %v1328, %v1516
      %v1558 = vmul.f32 %v1333, %v1517
      %v1559 = vmul.f32 %v1336, %v1518
      %v1560 = vadd.f32 %v1542, %v1543
      %v1561 = vadd.f32 %v1560, %v1544
      %v1562 = vadd.f32 %v1561, %v1545
      %v1563 = vadd.f32 %v1562, %v1546
      %v1564 = vadd.f32 %v1563, %v1547
      %v1565 = vadd.f32 %v1564, %v1548
      %v1566 = vadd.f32 %v1565, %v1549
      %v1567 = vadd.f32 %v1566, %v1550
      %v1568 = vadd.f32 %v1567, %v1551
      %v1569 = vadd.f32 %v1568, %v1552
      %v1570 = vadd.f32 %v1569, %v1553
      %v1571 = vadd.f32 %v1570, %v1554
      %v1572 = vadd.f32 %v1571, %v1555
      %v1573 = vadd.f32 %v1572, %v1556
      %v1574 = vadd.f32 %v1573, %v1557
      %v1575 = vadd.f32 %v1574, %v1558
      %v1576 = vadd.f32 %v1575, %v1559
      %v1577 = vrot.slane %v1576, 4
      %v1578 = vadd.f32 %v1576, %v1577
      %v1579 = vrot.slane %v1578, 2
      %v1580 = vadd.f32 %v1578, %v1579
      %v1581 = vrot.slane %v1580, 1
      %v1582 = vadd.f32 %v1580, %v1581
      %vm1583 = vcmask 1040384
      %v1584 = vsel %vm1583, %v1541, %v1582
      %v1585 = vsel %vm914, %v1584, 0.0
      %1586 = vst [vmem:[%s267] sm:$0xff] %v1585
      %s1587 = smul.u32 18, %s16
      %p1588 = scmp.lt.s32.totalorder %s1587, 89
      %s1589 = scalar_select %p1588, %s1587, 89
      %s1590 = smul.addr %s1589, 4
      %s1591 = scalar_lea.vmem %s3, %s1590
      %p1592 = scmp.lt.s32.totalorder %s16, 4
      %s1593 = scalar_select %p1592, %s16, 4
      %s1594 = smul.addr %s1593, 8
      %s1595 = scalar_lea.vmem %s4, %s1594
      // Predicated region
      $region33: #{conv_block_forward.6} parent=31 // pred_check
        %p1596 = pneg %p111
      $region34: #{conv_block_forward.6} parent=31 // pred_check_branch
        %1598 = sbr.rel (%p1596) target = $region36
      $region35: #{conv_block_forward.6} parent=31 // pred_region
        %s1599 = smul.u32 18, %s16
      $region36: #{conv_block_forward.6} parent=31 // pred_fallthru
        _
      // Predicated region
      $region37: #{conv_block_forward.6} parent=31 // pred_check
        %p1600 = pneg %p137
      $region38: #{conv_block_forward.6} parent=31 // pred_check_branch
        %1602 = sbr.rel (%p1600) target = $region40
      $region39: #{conv_block_forward.6} parent=31 // pred_region
        _
      $region40: #{conv_block_forward.6} parent=31 // pred_fallthru
        _
    $region32: #{conv_block_forward.6} parent=5 // pred_fallthru
      _
    %p1603 = scmp.le.s32.totalorder 2, %s11
    // Predicated region
    $region41: #{conv_block_forward.6} parent=5 // pred_check
      %p1604 = pneg %p1603
    $region42: #{conv_block_forward.6} parent=5 // pred_check_branch
      %1606 = sbr.rel (%p1604) target = $region44
    $region43: #{conv_block_forward.6} parent=5 // pred_region
      %s1607 = ssub.s32 %s11, 2
      // Predicated region
      $region45: #{conv_block_forward.6} parent=43 // pred_check
        %p1608 = pneg %p117
      $region46: #{conv_block_forward.6} parent=43 // pred_check_branch
        %1610 = sbr.rel (%p1608) target = $region48
      $region47: #{conv_block_forward.6} parent=43 // pred_region
        %s1611 = smul.u32 18, %s17
        %p1612 = scmp.lt.s32.totalorder %s1611, 89
        %s1613 = scalar_select %p1612, %s1611, 89
        %s1614 = smul.addr %s1613, 4
        %s1615 = scalar_lea.vmem %s3, %s1614
      $region48: #{conv_block_forward.6} parent=43 // pred_fallthru
        _
      // Predicated region
      $region49: #{conv_block_forward.6} parent=43 // pred_check
        %p1616 = pneg %p143
      $region50: #{conv_block_forward.6} parent=43 // pred_check_branch
        %1618 = sbr.rel (%p1616) target = $region52
      $region51: #{conv_block_forward.6} parent=43 // pred_region
        %p1619 = scmp.lt.s32.totalorder %s17, 4
        %s1620 = scalar_select %p1619, %s17, 4
        %s1621 = smul.addr %s1620, 8
        %s1622 = scalar_lea.vmem %s4, %s1621
      $region52: #{conv_block_forward.6} parent=43 // pred_fallthru
        _
    $region44: #{conv_block_forward.6} parent=5 // pred_fallthru
      _
  $region6: #{conv_block_forward.6} parent=0 // loop_footer
    %s15 = sadd.s32 1, %s11
  $region7: #{conv_block_forward.6} parent=0 // loop_footer_branch
    %10 = sbr.rel target = $region3
  $region8: #{conv_block_forward.6} parent=0 // loop_exit
    _

</llo_original>
